<compile_context>
chip_gen: v6e
topology: v6e:2x2x1
jax: 0.10.0
libtpu: 0.0.40
codegen_flags: <defaults>
</compile_context>

<pallas_src>
import jax
import jax.numpy as jnp
from jax.experimental import pallas as pl
from jax.experimental.pallas import tpu as pltpu


def make_rdb_kernel(C0, Cpad, G, nD, H, W, M):
    HW = H * W
    Ctot = Cpad + nD * G
    Cread = Cpad + (nD - 1) * G      # rows ever read through a shifted window

    def kernel(*refs):
        x_ref = refs[0]                   # (1, Cpad, HW) f32 (zero-padded channels)
        wd_refs = refs[1:1 + nD]          # nD refs, each (3, G, 3*cin_l) bf16
        w1x1_ref = refs[1 + nD]           # (C0, Ctot) bf16
        mask_ref = refs[2 + nD]           # (2, HW) f32: row0 dw=-1 valid, row1 dw=+1 valid
        o_ref = refs[3 + nD]              # (1, C0, HW)
        feat_ref = refs[4 + nD]           # VMEM bf16 (Ctot, M + HW + M)
        stage_ref = refs[5 + nD]          # VMEM bf16 (2, 3*Cread, HW)

        fdt = feat_ref.dtype

        # Zero only the halo rows that shifted windows ever read (vertical
        # out-of-bounds taps resolve to these zeros).  Not gated on
        # program_id: under megacore sharding each core must do its own init.
        zcol = jnp.zeros((Cread, M), fdt)
        feat_ref[0:Cread, 0:M] = zcol
        feat_ref[0:Cread, M + HW:M + HW + M] = zcol

        # Stage the (already channel-padded) input into the payload region.
        feat_ref[0:Cpad, M:M + HW] = x_ref[0].astype(fdt)

        mask_l = mask_ref[0:1, :]         # (1, HW)  valid where w-1 >= 0
        mask_r = mask_ref[1:2, :]         # (1, HW)  valid where w+1 <= W-1

        # Dense layers.  For each kw group the three kh taps are stacked along
        # sublanes and contracted in a single MXU matmul with K = 3*cin.  Only
        # the dw=+-1 groups need a horizontal boundary mask.
        slot = [0]
        for l in range(nD):
            cin = Cpad + l * G
            w_l = wd_refs[l]              # (3, G, 3*cin)

            def group(dw, cin=cin, w_l=w_l):
                s_idx = slot[0] & 1       # alternate staging slabs (break WAR dep)
                slot[0] += 1
                for j in range(3):        # dh = j - 1
                    s = (j - 1) * W + dw
                    stage_ref[s_idx, j * cin:(j + 1) * cin, :] = \
                        feat_ref[0:cin, M + s:M + s + HW]
                return jnp.dot(w_l[dw + 1], stage_ref[s_idx, 0:3 * cin, :],
                               preferred_element_type=jnp.float32)

            acc = group(0)                            # centre column, unmasked
            acc = acc + group(-1) * mask_l
            acc = acc + group(1) * mask_r
            feat_ref[cin:cin + G, M:M + HW] = jnp.maximum(acc, 0.0).astype(fdt)

        # 1x1 fusion conv over the full stack + residual add (residual read
        # back from the f32 input ref, not held live across the layers).
        dense = feat_ref[:, M:M + HW]                 # (Ctot, HW) bf16
        res = jnp.dot(w1x1_ref[...], dense, preferred_element_type=jnp.float32)
        res = res + x_ref[0, 0:C0, :].astype(jnp.float32)
        o_ref[0] = res.astype(o_ref.dtype)

    return kernel


def rdb_forward(x, w_dense, w_1x1):
    """x: (N, C0, H, W); w_dense: list of (G, cin_l, 3, 3); w_1x1: (C0, cin_tot, 1, 1)."""
    N, C0, H, W = x.shape
    HW = H * W
    nD = len(w_dense)
    G = w_dense[0].shape[0]
    Cpad = ((C0 + 15) // 16) * 16        # bf16 sublane packing = 16 rows
    Ctot = Cpad + nD * G
    Cread = Cpad + (nD - 1) * G
    M = ((W + 1 + 127) // 128) * 128     # lane-aligned halo width (>= W+1)

    x_flat = x.reshape(N, C0, HW)
    if Cpad > C0:
        x_flat = jnp.concatenate(
            [x_flat, jnp.zeros((N, Cpad - C0, HW), x.dtype)], axis=1)

    def pad_in_channels(w):
        # Insert zero input-channel columns [C0, Cpad) so the padded feature
        # rows contribute nothing and every sublane slice stays 16-aligned.
        if Cpad == C0:
            return w
        z = jnp.zeros(w.shape[:1] + (Cpad - C0,) + w.shape[2:], w.dtype)
        return jnp.concatenate([w[:, :C0], z, w[:, C0:]], axis=1)

    # Per-layer kw-grouped weights: (3, G, 3*cin_p), the three kh taps
    # concatenated along the input-channel axis to match the dh-stacked slab.
    w_groups = []
    for w in w_dense:
        wp = pad_in_channels(w)                                    # (G, cin_p, 3, 3)
        g = jnp.stack(
            [jnp.concatenate([wp[:, :, kh, kw] for kh in range(3)], axis=1)
             for kw in range(3)], axis=0)
        w_groups.append(g.astype(jnp.bfloat16))
    w1x1 = pad_in_channels(w_1x1)[:, :, 0, 0].astype(jnp.bfloat16)  # (C0, Ctot)

    # Two horizontal-edge masks over the flattened H*W lane axis; vertical
    # out-of-bounds taps are handled by the zeroed halo instead of masks.
    ww = jnp.arange(HW, dtype=jnp.int32) % W
    masks = jnp.stack([(ww >= 1).astype(jnp.float32),
                       (ww <= W - 2).astype(jnp.float32)], axis=0)  # (2, HW)

    # TODO(synk): for production image sizes add a spatial (HW) grid axis with
    # overlapping +-W halos and set vmem_limit_bytes (v7x has 64 MiB VMEM).
    out_flat = pl.pallas_call(
        make_rdb_kernel(C0, Cpad, G, nD, H, W, M),
        out_shape=jax.ShapeDtypeStruct((N, C0, HW), x.dtype),
        grid=(N,),
        in_specs=[
            pl.BlockSpec((1, Cpad, HW), lambda n: (n, 0, 0)),       # x tile
            *[pl.BlockSpec(wg.shape, lambda n: (0, 0, 0)) for wg in w_groups],
            pl.BlockSpec(w1x1.shape, lambda n: (0, 0)),
            pl.BlockSpec(masks.shape, lambda n: (0, 0)),
        ],
        out_specs=pl.BlockSpec((1, C0, HW), lambda n: (n, 0, 0)),
        scratch_shapes=[
            pltpu.VMEM((Ctot, HW + 2 * M), jnp.bfloat16),   # halo'd feature stack
            pltpu.VMEM((2, 3 * Cread, HW), jnp.bfloat16),   # double-buffered staging slab
        ],
        compiler_params=pltpu.CompilerParams(
            dimension_semantics=("parallel",)),
    )(x_flat, *w_groups, w1x1, masks)

    return out_flat.reshape(N, C0, H, W)


def rdb_ref(x, w_dense, w_1x1):
    """Pure-JAX reference matching PyTorch RDB.forward."""
    feat = x
    for w in w_dense:
        out = jax.lax.conv_general_dilated(
            feat, w, window_strides=(1, 1), padding=((1, 1), (1, 1)),
            dimension_numbers=("NCHW", "OIHW", "NCHW"),
            precision=jax.lax.Precision.HIGHEST)
        feat = jnp.concatenate([feat, jax.nn.relu(out)], axis=1)
    out = jax.lax.conv_general_dilated(
        feat, w_1x1, window_strides=(1, 1), padding=((0, 0), (0, 0)),
        dimension_numbers=("NCHW", "OIHW", "NCHW"),
        precision=jax.lax.Precision.HIGHEST)
    return out + x


if __name__ == "__main__":
    key = jax.random.PRNGKey(0)
    N, C0, H, W = 2, 4, 16, 16
    G, nD = 32, 3

    keys = jax.random.split(key, 2 + nD)
    x = jax.random.normal(keys[0], (N, C0, H, W), dtype=jnp.float32)

    # Deterministic PyTorch-style uniform init (bound = 1/sqrt(fan_in)), no bias.
    w_dense = []
    cin = C0
    for i in range(nD):
        bound = 1.0 / ((cin * 9) ** 0.5)
        w_dense.append(jax.random.uniform(
            keys[1 + i], (G, cin, 3, 3), minval=-bound, maxval=bound,
            dtype=jnp.float32))
        cin += G
    bound = 1.0 / (cin ** 0.5)
    w_1x1 = jax.random.uniform(
        keys[1 + nD], (C0, cin, 1, 1), minval=-bound, maxval=bound,
        dtype=jnp.float32)

    out = jax.block_until_ready(rdb_forward(x, w_dense, w_1x1))
    ref = jax.block_until_ready(rdb_ref(x, w_dense, w_1x1))

    assert out.shape == (N, C0, H, W), out.shape
    # Kernel runs the convolutions with bf16 MXU operands (f32 accumulation),
    # so compare against the f32 reference at a bf16-appropriate tolerance.
    assert jnp.allclose(out, ref, atol=2e-2, rtol=2e-2), \
        f"max err {float(jnp.max(jnp.abs(out - ref)))}"

    print("KERNEL_OK")
</pallas_src>

<mosaic_0001>
module attributes {stable_mosaic.version = 11 : i64} {
  func.func @kernel(%arg0: i32, %arg1: memref<1x16x256xf32, #tpu.memory_space<vmem>>, %arg2: memref<3x32x48xbf16, #tpu.memory_space<vmem>>, %arg3: memref<3x32x144xbf16, #tpu.memory_space<vmem>>, %arg4: memref<3x32x240xbf16, #tpu.memory_space<vmem>>, %arg5: memref<4x112xbf16, #tpu.memory_space<vmem>>, %arg6: memref<2x256xf32, #tpu.memory_space<vmem>>, %arg7: memref<1x4x256xf32, #tpu.memory_space<vmem>>, %arg8: memref<112x512xbf16, #tpu.memory_space<vmem>>, %arg9: memref<2x240x256xbf16, #tpu.memory_space<vmem>>) attributes {dimension_semantics = [#tpu.dimension_semantics<parallel>], iteration_bounds = array<i64: 2>, scalar_prefetch = 0 : i64, scratch_operands = 2 : i64, tpu.core_type = #tpu.core_type<tc>, window_params = [{transform_indices = @transform_0, window_bounds = array<i64: 1, 16, 256>}, {pipeline_mode = #tpu.pipeline_mode<synchronous>, transform_indices = @transform_1, window_bounds = array<i64: 3, 32, 48>}, {pipeline_mode = #tpu.pipeline_mode<synchronous>, transform_indices = @transform_2, window_bounds = array<i64: 3, 32, 144>}, {pipeline_mode = #tpu.pipeline_mode<synchronous>, transform_indices = @transform_3, window_bounds = array<i64: 3, 32, 240>}, {pipeline_mode = #tpu.pipeline_mode<synchronous>, transform_indices = @transform_4, window_bounds = array<i64: 4, 112>}, {pipeline_mode = #tpu.pipeline_mode<synchronous>, transform_indices = @transform_5, window_bounds = array<i64: 2, 256>}, {transform_indices = @transform_6, window_bounds = array<i64: 1, 4, 256>}]} {
    %cst = arith.constant 0.000000e+00 : bf16
    %0 = vector.broadcast %cst : bf16 to vector<80x128xbf16>
    %c0 = arith.constant 0 : index
    %c0_0 = arith.constant 0 : index
    %1 = vector.load %arg8[%c0, %c0_0] : memref<112x512xbf16, #tpu.memory_space<vmem>>, vector<80x128xbf16>
    tpu.vector_store %arg8[%c0, %c0_0], %0 {strides = array<i32>} : memref<112x512xbf16, #tpu.memory_space<vmem>>, vector<80x128xbf16>,
    %c0_1 = arith.constant 0 : index
    %c384 = arith.constant 384 : index
    %2 = vector.load %arg8[%c0_1, %c384] : memref<112x512xbf16, #tpu.memory_space<vmem>>, vector<80x128xbf16>
    tpu.vector_store %arg8[%c0_1, %c384], %0 {strides = array<i32>} : memref<112x512xbf16, #tpu.memory_space<vmem>>, vector<80x128xbf16>,
    %c0_2 = arith.constant 0 : index
    %c0_3 = arith.constant 0 : index
    %c0_4 = arith.constant 0 : index
    %3 = vector.load %arg1[%c0_2, %c0_3, %c0_4] : memref<1x16x256xf32, #tpu.memory_space<vmem>>, vector<1x16x256xf32>
    %4 = vector.shape_cast %3 : vector<1x16x256xf32> to vector<16x256xf32>
    %5 = arith.truncf %4 : vector<16x256xf32> to vector<16x256xbf16>
    %c0_5 = arith.constant 0 : index
    %c128 = arith.constant 128 : index
    %6 = vector.load %arg8[%c0_5, %c128] : memref<112x512xbf16, #tpu.memory_space<vmem>>, vector<16x256xbf16>
    tpu.vector_store %arg8[%c0_5, %c128], %5 {strides = array<i32>} : memref<112x512xbf16, #tpu.memory_space<vmem>>, vector<16x256xbf16>,
    %c0_6 = arith.constant 0 : index
    %c0_7 = arith.constant 0 : index
    %7 = vector.load %arg6[%c0_6, %c0_7] : memref<2x256xf32, #tpu.memory_space<vmem>>, vector<1x256xf32>
    %c1 = arith.constant 1 : index
    %c0_8 = arith.constant 0 : index
    %8 = vector.load %arg6[%c1, %c0_8] : memref<2x256xf32, #tpu.memory_space<vmem>>, vector<1x256xf32>
    %c0_9 = arith.constant 0 : index
    %c112 = arith.constant 112 : index
    %9 = vector.load %arg8[%c0_9, %c112] : memref<112x512xbf16, #tpu.memory_space<vmem>>, vector<16x256xbf16>
    %c0_10 = arith.constant 0 : index
    %c0_11 = arith.constant 0 : index
    %c0_12 = arith.constant 0 : index
    %10 = vector.load %arg9[%c0_10, %c0_11, %c0_12] : memref<2x240x256xbf16, #tpu.memory_space<vmem>>, vector<1x16x256xbf16>
    %11 = vector.shape_cast %10 : vector<1x16x256xbf16> to vector<16x256xbf16>
    %12 = vector.shape_cast %9 : vector<16x256xbf16> to vector<1x16x256xbf16>
    tpu.vector_store %arg9[%c0_10, %c0_11, %c0_12], %12 {strides = array<i32>} : memref<2x240x256xbf16, #tpu.memory_space<vmem>>, vector<1x16x256xbf16>,
    %c0_13 = arith.constant 0 : index
    %c128_14 = arith.constant 128 : index
    %13 = vector.load %arg8[%c0_13, %c128_14] : memref<112x512xbf16, #tpu.memory_space<vmem>>, vector<16x256xbf16>
    %c0_15 = arith.constant 0 : index
    %c16 = arith.constant 16 : index
    %c0_16 = arith.constant 0 : index
    %14 = vector.load %arg9[%c0_15, %c16, %c0_16] : memref<2x240x256xbf16, #tpu.memory_space<vmem>>, vector<1x16x256xbf16>
    %15 = vector.shape_cast %14 : vector<1x16x256xbf16> to vector<16x256xbf16>
    %16 = vector.shape_cast %13 : vector<16x256xbf16> to vector<1x16x256xbf16>
    tpu.vector_store %arg9[%c0_15, %c16, %c0_16], %16 {strides = array<i32>} : memref<2x240x256xbf16, #tpu.memory_space<vmem>>, vector<1x16x256xbf16>,
    %c0_17 = arith.constant 0 : index
    %c144 = arith.constant 144 : index
    %17 = vector.load %arg8[%c0_17, %c144] : memref<112x512xbf16, #tpu.memory_space<vmem>>, vector<16x256xbf16>
    %c0_18 = arith.constant 0 : index
    %c32 = arith.constant 32 : index
    %c0_19 = arith.constant 0 : index
    %18 = vector.load %arg9[%c0_18, %c32, %c0_19] : memref<2x240x256xbf16, #tpu.memory_space<vmem>>, vector<1x16x256xbf16>
    %19 = vector.shape_cast %18 : vector<1x16x256xbf16> to vector<16x256xbf16>
    %20 = vector.shape_cast %17 : vector<16x256xbf16> to vector<1x16x256xbf16>
    tpu.vector_store %arg9[%c0_18, %c32, %c0_19], %20 {strides = array<i32>} : memref<2x240x256xbf16, #tpu.memory_space<vmem>>, vector<1x16x256xbf16>,
    %c1_20 = arith.constant 1 : index
    %c0_21 = arith.constant 0 : index
    %c0_22 = arith.constant 0 : index
    %21 = vector.load %arg2[%c1_20, %c0_21, %c0_22] : memref<3x32x48xbf16, #tpu.memory_space<vmem>>, vector<1x32x48xbf16>
    %22 = vector.shape_cast %21 : vector<1x32x48xbf16> to vector<32x48xbf16>
    %c0_23 = arith.constant 0 : index
    %c0_24 = arith.constant 0 : index
    %c0_25 = arith.constant 0 : index
    %23 = vector.load %arg9[%c0_23, %c0_24, %c0_25] : memref<2x240x256xbf16, #tpu.memory_space<vmem>>, vector<1x48x256xbf16>
    %24 = vector.shape_cast %23 : vector<1x48x256xbf16> to vector<48x256xbf16>
    %cst_26 = arith.constant dense<0.000000e+00> : vector<32x256xf32>
    %25 = tpu.matmul %22, %24, %cst_26 {dimension_numbers = #tpu.dot_dimension_numbers<[1], [0], [0], [1], [0, 0, 1, 1], [], []>} : vector<32x48xbf16>, vector<48x256xbf16>, vector<32x256xf32> -> vector<32x256xf32>
    %c0_27 = arith.constant 0 : index
    %c111 = arith.constant 111 : index
    %26 = vector.load %arg8[%c0_27, %c111] : memref<112x512xbf16, #tpu.memory_space<vmem>>, vector<16x256xbf16>
    %c1_28 = arith.constant 1 : index
    %c0_29 = arith.constant 0 : index
    %c0_30 = arith.constant 0 : index
    %27 = vector.load %arg9[%c1_28, %c0_29, %c0_30] : memref<2x240x256xbf16, #tpu.memory_space<vmem>>, vector<1x16x256xbf16>
    %28 = vector.shape_cast %27 : vector<1x16x256xbf16> to vector<16x256xbf16>
    %29 = vector.shape_cast %26 : vector<16x256xbf16> to vector<1x16x256xbf16>
    tpu.vector_store %arg9[%c1_28, %c0_29, %c0_30], %29 {strides = array<i32>} : memref<2x240x256xbf16, #tpu.memory_space<vmem>>, vector<1x16x256xbf16>,
    %c0_31 = arith.constant 0 : index
    %c127 = arith.constant 127 : index
    %30 = vector.load %arg8[%c0_31, %c127] : memref<112x512xbf16, #tpu.memory_space<vmem>>, vector<16x256xbf16>
    %c1_32 = arith.constant 1 : index
    %c16_33 = arith.constant 16 : index
    %c0_34 = arith.constant 0 : index
    %31 = vector.load %arg9[%c1_32, %c16_33, %c0_34] : memref<2x240x256xbf16, #tpu.memory_space<vmem>>, vector<1x16x256xbf16>
    %32 = vector.shape_cast %31 : vector<1x16x256xbf16> to vector<16x256xbf16>
    %33 = vector.shape_cast %30 : vector<16x256xbf16> to vector<1x16x256xbf16>
    tpu.vector_store %arg9[%c1_32, %c16_33, %c0_34], %33 {strides = array<i32>} : memref<2x240x256xbf16, #tpu.memory_space<vmem>>, vector<1x16x256xbf16>,
    %c0_35 = arith.constant 0 : index
    %c143 = arith.constant 143 : index
    %34 = vector.load %arg8[%c0_35, %c143] : memref<112x512xbf16, #tpu.memory_space<vmem>>, vector<16x256xbf16>
    %c1_36 = arith.constant 1 : index
    %c32_37 = arith.constant 32 : index
    %c0_38 = arith.constant 0 : index
    %35 = vector.load %arg9[%c1_36, %c32_37, %c0_38] : memref<2x240x256xbf16, #tpu.memory_space<vmem>>, vector<1x16x256xbf16>
    %36 = vector.shape_cast %35 : vector<1x16x256xbf16> to vector<16x256xbf16>
    %37 = vector.shape_cast %34 : vector<16x256xbf16> to vector<1x16x256xbf16>
    tpu.vector_store %arg9[%c1_36, %c32_37, %c0_38], %37 {strides = array<i32>} : memref<2x240x256xbf16, #tpu.memory_space<vmem>>, vector<1x16x256xbf16>,
    %c0_39 = arith.constant 0 : index
    %c0_40 = arith.constant 0 : index
    %c0_41 = arith.constant 0 : index
    %38 = vector.load %arg2[%c0_39, %c0_40, %c0_41] : memref<3x32x48xbf16, #tpu.memory_space<vmem>>, vector<1x32x48xbf16>
    %39 = vector.shape_cast %38 : vector<1x32x48xbf16> to vector<32x48xbf16>
    %c1_42 = arith.constant 1 : index
    %c0_43 = arith.constant 0 : index
    %c0_44 = arith.constant 0 : index
    %40 = vector.load %arg9[%c1_42, %c0_43, %c0_44] : memref<2x240x256xbf16, #tpu.memory_space<vmem>>, vector<1x48x256xbf16>
    %41 = vector.shape_cast %40 : vector<1x48x256xbf16> to vector<48x256xbf16>
    %cst_45 = arith.constant dense<0.000000e+00> : vector<32x256xf32>
    %42 = tpu.matmul %39, %41, %cst_45 {dimension_numbers = #tpu.dot_dimension_numbers<[1], [0], [0], [1], [0, 0, 1, 1], [], []>} : vector<32x48xbf16>, vector<48x256xbf16>, vector<32x256xf32> -> vector<32x256xf32>
    %43 = vector.broadcast %7 : vector<1x256xf32> to vector<32x256xf32>
    %44 = arith.mulf %42, %43 : vector<32x256xf32>
    %45 = arith.addf %25, %44 : vector<32x256xf32>
    %c0_46 = arith.constant 0 : index
    %c113 = arith.constant 113 : index
    %46 = vector.load %arg8[%c0_46, %c113] : memref<112x512xbf16, #tpu.memory_space<vmem>>, vector<16x256xbf16>
    %c0_47 = arith.constant 0 : index
    %c0_48 = arith.constant 0 : index
    %c0_49 = arith.constant 0 : index
    %47 = vector.load %arg9[%c0_47, %c0_48, %c0_49] : memref<2x240x256xbf16, #tpu.memory_space<vmem>>, vector<1x16x256xbf16>
    %48 = vector.shape_cast %47 : vector<1x16x256xbf16> to vector<16x256xbf16>
    %49 = vector.shape_cast %46 : vector<16x256xbf16> to vector<1x16x256xbf16>
    tpu.vector_store %arg9[%c0_47, %c0_48, %c0_49], %49 {strides = array<i32>} : memref<2x240x256xbf16, #tpu.memory_space<vmem>>, vector<1x16x256xbf16>,
    %c0_50 = arith.constant 0 : index
    %c129 = arith.constant 129 : index
    %50 = vector.load %arg8[%c0_50, %c129] : memref<112x512xbf16, #tpu.memory_space<vmem>>, vector<16x256xbf16>
    %c0_51 = arith.constant 0 : index
    %c16_52 = arith.constant 16 : index
    %c0_53 = arith.constant 0 : index
    %51 = vector.load %arg9[%c0_51, %c16_52, %c0_53] : memref<2x240x256xbf16, #tpu.memory_space<vmem>>, vector<1x16x256xbf16>
    %52 = vector.shape_cast %51 : vector<1x16x256xbf16> to vector<16x256xbf16>
    %53 = vector.shape_cast %50 : vector<16x256xbf16> to vector<1x16x256xbf16>
    tpu.vector_store %arg9[%c0_51, %c16_52, %c0_53], %53 {strides = array<i32>} : memref<2x240x256xbf16, #tpu.memory_space<vmem>>, vector<1x16x256xbf16>,
    %c0_54 = arith.constant 0 : index
    %c145 = arith.constant 145 : index
    %54 = vector.load %arg8[%c0_54, %c145] : memref<112x512xbf16, #tpu.memory_space<vmem>>, vector<16x256xbf16>
    %c0_55 = arith.constant 0 : index
    %c32_56 = arith.constant 32 : index
    %c0_57 = arith.constant 0 : index
    %55 = vector.load %arg9[%c0_55, %c32_56, %c0_57] : memref<2x240x256xbf16, #tpu.memory_space<vmem>>, vector<1x16x256xbf16>
    %56 = vector.shape_cast %55 : vector<1x16x256xbf16> to vector<16x256xbf16>
    %57 = vector.shape_cast %54 : vector<16x256xbf16> to vector<1x16x256xbf16>
    tpu.vector_store %arg9[%c0_55, %c32_56, %c0_57], %57 {strides = array<i32>} : memref<2x240x256xbf16, #tpu.memory_space<vmem>>, vector<1x16x256xbf16>,
    %c2 = arith.constant 2 : index
    %c0_58 = arith.constant 0 : index
    %c0_59 = arith.constant 0 : index
    %58 = vector.load %arg2[%c2, %c0_58, %c0_59] : memref<3x32x48xbf16, #tpu.memory_space<vmem>>, vector<1x32x48xbf16>
    %59 = vector.shape_cast %58 : vector<1x32x48xbf16> to vector<32x48xbf16>
    %c0_60 = arith.constant 0 : index
    %c0_61 = arith.constant 0 : index
    %c0_62 = arith.constant 0 : index
    %60 = vector.load %arg9[%c0_60, %c0_61, %c0_62] : memref<2x240x256xbf16, #tpu.memory_space<vmem>>, vector<1x48x256xbf16>
    %61 = vector.shape_cast %60 : vector<1x48x256xbf16> to vector<48x256xbf16>
    %cst_63 = arith.constant dense<0.000000e+00> : vector<32x256xf32>
    %62 = tpu.matmul %59, %61, %cst_63 {dimension_numbers = #tpu.dot_dimension_numbers<[1], [0], [0], [1], [0, 0, 1, 1], [], []>} : vector<32x48xbf16>, vector<48x256xbf16>, vector<32x256xf32> -> vector<32x256xf32>
    %63 = vector.broadcast %8 : vector<1x256xf32> to vector<32x256xf32>
    %64 = arith.mulf %62, %63 : vector<32x256xf32>
    %65 = arith.addf %45, %64 : vector<32x256xf32>
    %cst_64 = arith.constant 0.000000e+00 : f32
    %66 = vector.broadcast %cst_64 : f32 to vector<32x256xf32>
    %67 = arith.maximumf %65, %66 : vector<32x256xf32>
    %68 = arith.truncf %67 : vector<32x256xf32> to vector<32x256xbf16>
    %c16_65 = arith.constant 16 : index
    %c128_66 = arith.constant 128 : index
    %69 = vector.load %arg8[%c16_65, %c128_66] : memref<112x512xbf16, #tpu.memory_space<vmem>>, vector<32x256xbf16>
    tpu.vector_store %arg8[%c16_65, %c128_66], %68 {strides = array<i32>} : memref<112x512xbf16, #tpu.memory_space<vmem>>, vector<32x256xbf16>,
    %c0_67 = arith.constant 0 : index
    %c112_68 = arith.constant 112 : index
    %70 = vector.load %arg8[%c0_67, %c112_68] : memref<112x512xbf16, #tpu.memory_space<vmem>>, vector<48x256xbf16>
    %c1_69 = arith.constant 1 : index
    %c0_70 = arith.constant 0 : index
    %c0_71 = arith.constant 0 : index
    %71 = vector.load %arg9[%c1_69, %c0_70, %c0_71] : memref<2x240x256xbf16, #tpu.memory_space<vmem>>, vector<1x48x256xbf16>
    %72 = vector.shape_cast %71 : vector<1x48x256xbf16> to vector<48x256xbf16>
    %73 = vector.shape_cast %70 : vector<48x256xbf16> to vector<1x48x256xbf16>
    tpu.vector_store %arg9[%c1_69, %c0_70, %c0_71], %73 {strides = array<i32>} : memref<2x240x256xbf16, #tpu.memory_space<vmem>>, vector<1x48x256xbf16>,
    %c0_72 = arith.constant 0 : index
    %c128_73 = arith.constant 128 : index
    %74 = vector.load %arg8[%c0_72, %c128_73] : memref<112x512xbf16, #tpu.memory_space<vmem>>, vector<48x256xbf16>
    %c1_74 = arith.constant 1 : index
    %c48 = arith.constant 48 : index
    %c0_75 = arith.constant 0 : index
    %75 = vector.load %arg9[%c1_74, %c48, %c0_75] : memref<2x240x256xbf16, #tpu.memory_space<vmem>>, vector<1x48x256xbf16>
    %76 = vector.shape_cast %75 : vector<1x48x256xbf16> to vector<48x256xbf16>
    %77 = vector.shape_cast %74 : vector<48x256xbf16> to vector<1x48x256xbf16>
    tpu.vector_store %arg9[%c1_74, %c48, %c0_75], %77 {strides = array<i32>} : memref<2x240x256xbf16, #tpu.memory_space<vmem>>, vector<1x48x256xbf16>,
    %c0_76 = arith.constant 0 : index
    %c144_77 = arith.constant 144 : index
    %78 = vector.load %arg8[%c0_76, %c144_77] : memref<112x512xbf16, #tpu.memory_space<vmem>>, vector<48x256xbf16>
    %c1_78 = arith.constant 1 : index
    %c96 = arith.constant 96 : index
    %c0_79 = arith.constant 0 : index
    %79 = vector.load %arg9[%c1_78, %c96, %c0_79] : memref<2x240x256xbf16, #tpu.memory_space<vmem>>, vector<1x48x256xbf16>
    %80 = vector.shape_cast %79 : vector<1x48x256xbf16> to vector<48x256xbf16>
    %81 = vector.shape_cast %78 : vector<48x256xbf16> to vector<1x48x256xbf16>
    tpu.vector_store %arg9[%c1_78, %c96, %c0_79], %81 {strides = array<i32>} : memref<2x240x256xbf16, #tpu.memory_space<vmem>>, vector<1x48x256xbf16>,
    %c1_80 = arith.constant 1 : index
    %c0_81 = arith.constant 0 : index
    %c0_82 = arith.constant 0 : index
    %82 = vector.load %arg3[%c1_80, %c0_81, %c0_82] : memref<3x32x144xbf16, #tpu.memory_space<vmem>>, vector<1x32x144xbf16>
    %83 = vector.shape_cast %82 : vector<1x32x144xbf16> to vector<32x144xbf16>
    %c1_83 = arith.constant 1 : index
    %c0_84 = arith.constant 0 : index
    %c0_85 = arith.constant 0 : index
    %84 = vector.load %arg9[%c1_83, %c0_84, %c0_85] : memref<2x240x256xbf16, #tpu.memory_space<vmem>>, vector<1x144x256xbf16>
    %85 = vector.shape_cast %84 : vector<1x144x256xbf16> to vector<144x256xbf16>
    %cst_86 = arith.constant dense<0.000000e+00> : vector<32x256xf32>
    %86 = tpu.matmul %83, %85, %cst_86 {dimension_numbers = #tpu.dot_dimension_numbers<[1], [0], [0], [1], [0, 0, 1, 1], [], []>} : vector<32x144xbf16>, vector<144x256xbf16>, vector<32x256xf32> -> vector<32x256xf32>
    %c0_87 = arith.constant 0 : index
    %c111_88 = arith.constant 111 : index
    %87 = vector.load %arg8[%c0_87, %c111_88] : memref<112x512xbf16, #tpu.memory_space<vmem>>, vector<48x256xbf16>
    %c0_89 = arith.constant 0 : index
    %c0_90 = arith.constant 0 : index
    %c0_91 = arith.constant 0 : index
    %88 = vector.load %arg9[%c0_89, %c0_90, %c0_91] : memref<2x240x256xbf16, #tpu.memory_space<vmem>>, vector<1x48x256xbf16>
    %89 = vector.shape_cast %88 : vector<1x48x256xbf16> to vector<48x256xbf16>
    %90 = vector.shape_cast %87 : vector<48x256xbf16> to vector<1x48x256xbf16>
    tpu.vector_store %arg9[%c0_89, %c0_90, %c0_91], %90 {strides = array<i32>} : memref<2x240x256xbf16, #tpu.memory_space<vmem>>, vector<1x48x256xbf16>,
    %c0_92 = arith.constant 0 : index
    %c127_93 = arith.constant 127 : index
    %91 = vector.load %arg8[%c0_92, %c127_93] : memref<112x512xbf16, #tpu.memory_space<vmem>>, vector<48x256xbf16>
    %c0_94 = arith.constant 0 : index
    %c48_95 = arith.constant 48 : index
    %c0_96 = arith.constant 0 : index
    %92 = vector.load %arg9[%c0_94, %c48_95, %c0_96] : memref<2x240x256xbf16, #tpu.memory_space<vmem>>, vector<1x48x256xbf16>
    %93 = vector.shape_cast %92 : vector<1x48x256xbf16> to vector<48x256xbf16>
    %94 = vector.shape_cast %91 : vector<48x256xbf16> to vector<1x48x256xbf16>
    tpu.vector_store %arg9[%c0_94, %c48_95, %c0_96], %94 {strides = array<i32>} : memref<2x240x256xbf16, #tpu.memory_space<vmem>>, vector<1x48x256xbf16>,
    %c0_97 = arith.constant 0 : index
    %c143_98 = arith.constant 143 : index
    %95 = vector.load %arg8[%c0_97, %c143_98] : memref<112x512xbf16, #tpu.memory_space<vmem>>, vector<48x256xbf16>
    %c0_99 = arith.constant 0 : index
    %c96_100 = arith.constant 96 : index
    %c0_101 = arith.constant 0 : index
    %96 = vector.load %arg9[%c0_99, %c96_100, %c0_101] : memref<2x240x256xbf16, #tpu.memory_space<vmem>>, vector<1x48x256xbf16>
    %97 = vector.shape_cast %96 : vector<1x48x256xbf16> to vector<48x256xbf16>
    %98 = vector.shape_cast %95 : vector<48x256xbf16> to vector<1x48x256xbf16>
    tpu.vector_store %arg9[%c0_99, %c96_100, %c0_101], %98 {strides = array<i32>} : memref<2x240x256xbf16, #tpu.memory_space<vmem>>, vector<1x48x256xbf16>,
    %c0_102 = arith.constant 0 : index
    %c0_103 = arith.constant 0 : index
    %c0_104 = arith.constant 0 : index
    %99 = vector.load %arg3[%c0_102, %c0_103, %c0_104] : memref<3x32x144xbf16, #tpu.memory_space<vmem>>, vector<1x32x144xbf16>
    %100 = vector.shape_cast %99 : vector<1x32x144xbf16> to vector<32x144xbf16>
    %c0_105 = arith.constant 0 : index
    %c0_106 = arith.constant 0 : index
    %c0_107 = arith.constant 0 : index
    %101 = vector.load %arg9[%c0_105, %c0_106, %c0_107] : memref<2x240x256xbf16, #tpu.memory_space<vmem>>, vector<1x144x256xbf16>
    %102 = vector.shape_cast %101 : vector<1x144x256xbf16> to vector<144x256xbf16>
    %cst_108 = arith.constant dense<0.000000e+00> : vector<32x256xf32>
    %103 = tpu.matmul %100, %102, %cst_108 {dimension_numbers = #tpu.dot_dimension_numbers<[1], [0], [0], [1], [0, 0, 1, 1], [], []>} : vector<32x144xbf16>, vector<144x256xbf16>, vector<32x256xf32> -> vector<32x256xf32>
    %104 = vector.broadcast %7 : vector<1x256xf32> to vector<32x256xf32>
    %105 = arith.mulf %103, %104 : vector<32x256xf32>
    %106 = arith.addf %86, %105 : vector<32x256xf32>
    %c0_109 = arith.constant 0 : index
    %c113_110 = arith.constant 113 : index
    %107 = vector.load %arg8[%c0_109, %c113_110] : memref<112x512xbf16, #tpu.memory_space<vmem>>, vector<48x256xbf16>
    %c1_111 = arith.constant 1 : index
    %c0_112 = arith.constant 0 : index
    %c0_113 = arith.constant 0 : index
    %108 = vector.load %arg9[%c1_111, %c0_112, %c0_113] : memref<2x240x256xbf16, #tpu.memory_space<vmem>>, vector<1x48x256xbf16>
    %109 = vector.shape_cast %108 : vector<1x48x256xbf16> to vector<48x256xbf16>
    %110 = vector.shape_cast %107 : vector<48x256xbf16> to vector<1x48x256xbf16>
    tpu.vector_store %arg9[%c1_111, %c0_112, %c0_113], %110 {strides = array<i32>} : memref<2x240x256xbf16, #tpu.memory_space<vmem>>, vector<1x48x256xbf16>,
    %c0_114 = arith.constant 0 : index
    %c129_115 = arith.constant 129 : index
    %111 = vector.load %arg8[%c0_114, %c129_115] : memref<112x512xbf16, #tpu.memory_space<vmem>>, vector<48x256xbf16>
    %c1_116 = arith.constant 1 : index
    %c48_117 = arith.constant 48 : index
    %c0_118 = arith.constant 0 : index
    %112 = vector.load %arg9[%c1_116, %c48_117, %c0_118] : memref<2x240x256xbf16, #tpu.memory_space<vmem>>, vector<1x48x256xbf16>
    %113 = vector.shape_cast %112 : vector<1x48x256xbf16> to vector<48x256xbf16>
    %114 = vector.shape_cast %111 : vector<48x256xbf16> to vector<1x48x256xbf16>
    tpu.vector_store %arg9[%c1_116, %c48_117, %c0_118], %114 {strides = array<i32>} : memref<2x240x256xbf16, #tpu.memory_space<vmem>>, vector<1x48x256xbf16>,
    %c0_119 = arith.constant 0 : index
    %c145_120 = arith.constant 145 : index
    %115 = vector.load %arg8[%c0_119, %c145_120] : memref<112x512xbf16, #tpu.memory_space<vmem>>, vector<48x256xbf16>
    %c1_121 = arith.constant 1 : index
    %c96_122 = arith.constant 96 : index
    %c0_123 = arith.constant 0 : index
    %116 = vector.load %arg9[%c1_121, %c96_122, %c0_123] : memref<2x240x256xbf16, #tpu.memory_space<vmem>>, vector<1x48x256xbf16>
    %117 = vector.shape_cast %116 : vector<1x48x256xbf16> to vector<48x256xbf16>
    %118 = vector.shape_cast %115 : vector<48x256xbf16> to vector<1x48x256xbf16>
    tpu.vector_store %arg9[%c1_121, %c96_122, %c0_123], %118 {strides = array<i32>} : memref<2x240x256xbf16, #tpu.memory_space<vmem>>, vector<1x48x256xbf16>,
    %c2_124 = arith.constant 2 : index
    %c0_125 = arith.constant 0 : index
    %c0_126 = arith.constant 0 : index
    %119 = vector.load %arg3[%c2_124, %c0_125, %c0_126] : memref<3x32x144xbf16, #tpu.memory_space<vmem>>, vector<1x32x144xbf16>
    %120 = vector.shape_cast %119 : vector<1x32x144xbf16> to vector<32x144xbf16>
    %c1_127 = arith.constant 1 : index
    %c0_128 = arith.constant 0 : index
    %c0_129 = arith.constant 0 : index
    %121 = vector.load %arg9[%c1_127, %c0_128, %c0_129] : memref<2x240x256xbf16, #tpu.memory_space<vmem>>, vector<1x144x256xbf16>
    %122 = vector.shape_cast %121 : vector<1x144x256xbf16> to vector<144x256xbf16>
    %cst_130 = arith.constant dense<0.000000e+00> : vector<32x256xf32>
    %123 = tpu.matmul %120, %122, %cst_130 {dimension_numbers = #tpu.dot_dimension_numbers<[1], [0], [0], [1], [0, 0, 1, 1], [], []>} : vector<32x144xbf16>, vector<144x256xbf16>, vector<32x256xf32> -> vector<32x256xf32>
    %124 = vector.broadcast %8 : vector<1x256xf32> to vector<32x256xf32>
    %125 = arith.mulf %123, %124 : vector<32x256xf32>
    %126 = arith.addf %106, %125 : vector<32x256xf32>
    %cst_131 = arith.constant 0.000000e+00 : f32
    %127 = vector.broadcast %cst_131 : f32 to vector<32x256xf32>
    %128 = arith.maximumf %126, %127 : vector<32x256xf32>
    %129 = arith.truncf %128 : vector<32x256xf32> to vector<32x256xbf16>
    %c48_132 = arith.constant 48 : index
    %c128_133 = arith.constant 128 : index
    %130 = vector.load %arg8[%c48_132, %c128_133] : memref<112x512xbf16, #tpu.memory_space<vmem>>, vector<32x256xbf16>
    tpu.vector_store %arg8[%c48_132, %c128_133], %129 {strides = array<i32>} : memref<112x512xbf16, #tpu.memory_space<vmem>>, vector<32x256xbf16>,
    %c0_134 = arith.constant 0 : index
    %c112_135 = arith.constant 112 : index
    %131 = vector.load %arg8[%c0_134, %c112_135] : memref<112x512xbf16, #tpu.memory_space<vmem>>, vector<80x256xbf16>
    %c0_136 = arith.constant 0 : index
    %c0_137 = arith.constant 0 : index
    %c0_138 = arith.constant 0 : index
    %132 = vector.load %arg9[%c0_136, %c0_137, %c0_138] : memref<2x240x256xbf16, #tpu.memory_space<vmem>>, vector<1x80x256xbf16>
    %133 = vector.shape_cast %132 : vector<1x80x256xbf16> to vector<80x256xbf16>
    %134 = vector.shape_cast %131 : vector<80x256xbf16> to vector<1x80x256xbf16>
    tpu.vector_store %arg9[%c0_136, %c0_137, %c0_138], %134 {strides = array<i32>} : memref<2x240x256xbf16, #tpu.memory_space<vmem>>, vector<1x80x256xbf16>,
    %c0_139 = arith.constant 0 : index
    %c128_140 = arith.constant 128 : index
    %135 = vector.load %arg8[%c0_139, %c128_140] : memref<112x512xbf16, #tpu.memory_space<vmem>>, vector<80x256xbf16>
    %c0_141 = arith.constant 0 : index
    %c80 = arith.constant 80 : index
    %c0_142 = arith.constant 0 : index
    %136 = vector.load %arg9[%c0_141, %c80, %c0_142] : memref<2x240x256xbf16, #tpu.memory_space<vmem>>, vector<1x80x256xbf16>
    %137 = vector.shape_cast %136 : vector<1x80x256xbf16> to vector<80x256xbf16>
    %138 = vector.shape_cast %135 : vector<80x256xbf16> to vector<1x80x256xbf16>
    tpu.vector_store %arg9[%c0_141, %c80, %c0_142], %138 {strides = array<i32>} : memref<2x240x256xbf16, #tpu.memory_space<vmem>>, vector<1x80x256xbf16>,
    %c0_143 = arith.constant 0 : index
    %c144_144 = arith.constant 144 : index
    %139 = vector.load %arg8[%c0_143, %c144_144] : memref<112x512xbf16, #tpu.memory_space<vmem>>, vector<80x256xbf16>
    %c0_145 = arith.constant 0 : index
    %c160 = arith.constant 160 : index
    %c0_146 = arith.constant 0 : index
    %140 = vector.load %arg9[%c0_145, %c160, %c0_146] : memref<2x240x256xbf16, #tpu.memory_space<vmem>>, vector<1x80x256xbf16>
    %141 = vector.shape_cast %140 : vector<1x80x256xbf16> to vector<80x256xbf16>
    %142 = vector.shape_cast %139 : vector<80x256xbf16> to vector<1x80x256xbf16>
    tpu.vector_store %arg9[%c0_145, %c160, %c0_146], %142 {strides = array<i32>} : memref<2x240x256xbf16, #tpu.memory_space<vmem>>, vector<1x80x256xbf16>,
    %c1_147 = arith.constant 1 : index
    %c0_148 = arith.constant 0 : index
    %c0_149 = arith.constant 0 : index
    %143 = vector.load %arg4[%c1_147, %c0_148, %c0_149] : memref<3x32x240xbf16, #tpu.memory_space<vmem>>, vector<1x32x240xbf16>
    %144 = vector.shape_cast %143 : vector<1x32x240xbf16> to vector<32x240xbf16>
    %c0_150 = arith.constant 0 : index
    %c0_151 = arith.constant 0 : index
    %c0_152 = arith.constant 0 : index
    %145 = vector.load %arg9[%c0_150, %c0_151, %c0_152] : memref<2x240x256xbf16, #tpu.memory_space<vmem>>, vector<1x240x256xbf16>
    %146 = vector.shape_cast %145 : vector<1x240x256xbf16> to vector<240x256xbf16>
    %cst_153 = arith.constant dense<0.000000e+00> : vector<32x256xf32>
    %147 = tpu.matmul %144, %146, %cst_153 {dimension_numbers = #tpu.dot_dimension_numbers<[1], [0], [0], [1], [0, 0, 1, 1], [], []>} : vector<32x240xbf16>, vector<240x256xbf16>, vector<32x256xf32> -> vector<32x256xf32>
    %c0_154 = arith.constant 0 : index
    %c111_155 = arith.constant 111 : index
    %148 = vector.load %arg8[%c0_154, %c111_155] : memref<112x512xbf16, #tpu.memory_space<vmem>>, vector<80x256xbf16>
    %c1_156 = arith.constant 1 : index
    %c0_157 = arith.constant 0 : index
    %c0_158 = arith.constant 0 : index
    %149 = vector.load %arg9[%c1_156, %c0_157, %c0_158] : memref<2x240x256xbf16, #tpu.memory_space<vmem>>, vector<1x80x256xbf16>
    %150 = vector.shape_cast %149 : vector<1x80x256xbf16> to vector<80x256xbf16>
    %151 = vector.shape_cast %148 : vector<80x256xbf16> to vector<1x80x256xbf16>
    tpu.vector_store %arg9[%c1_156, %c0_157, %c0_158], %151 {strides = array<i32>} : memref<2x240x256xbf16, #tpu.memory_space<vmem>>, vector<1x80x256xbf16>,
    %c0_159 = arith.constant 0 : index
    %c127_160 = arith.constant 127 : index
    %152 = vector.load %arg8[%c0_159, %c127_160] : memref<112x512xbf16, #tpu.memory_space<vmem>>, vector<80x256xbf16>
    %c1_161 = arith.constant 1 : index
    %c80_162 = arith.constant 80 : index
    %c0_163 = arith.constant 0 : index
    %153 = vector.load %arg9[%c1_161, %c80_162, %c0_163] : memref<2x240x256xbf16, #tpu.memory_space<vmem>>, vector<1x80x256xbf16>
    %154 = vector.shape_cast %153 : vector<1x80x256xbf16> to vector<80x256xbf16>
    %155 = vector.shape_cast %152 : vector<80x256xbf16> to vector<1x80x256xbf16>
    tpu.vector_store %arg9[%c1_161, %c80_162, %c0_163], %155 {strides = array<i32>} : memref<2x240x256xbf16, #tpu.memory_space<vmem>>, vector<1x80x256xbf16>,
    %c0_164 = arith.constant 0 : index
    %c143_165 = arith.constant 143 : index
    %156 = vector.load %arg8[%c0_164, %c143_165] : memref<112x512xbf16, #tpu.memory_space<vmem>>, vector<80x256xbf16>
    %c1_166 = arith.constant 1 : index
    %c160_167 = arith.constant 160 : index
    %c0_168 = arith.constant 0 : index
    %157 = vector.load %arg9[%c1_166, %c160_167, %c0_168] : memref<2x240x256xbf16, #tpu.memory_space<vmem>>, vector<1x80x256xbf16>
    %158 = vector.shape_cast %157 : vector<1x80x256xbf16> to vector<80x256xbf16>
    %159 = vector.shape_cast %156 : vector<80x256xbf16> to vector<1x80x256xbf16>
    tpu.vector_store %arg9[%c1_166, %c160_167, %c0_168], %159 {strides = array<i32>} : memref<2x240x256xbf16, #tpu.memory_space<vmem>>, vector<1x80x256xbf16>,
    %c0_169 = arith.constant 0 : index
    %c0_170 = arith.constant 0 : index
    %c0_171 = arith.constant 0 : index
    %160 = vector.load %arg4[%c0_169, %c0_170, %c0_171] : memref<3x32x240xbf16, #tpu.memory_space<vmem>>, vector<1x32x240xbf16>
    %161 = vector.shape_cast %160 : vector<1x32x240xbf16> to vector<32x240xbf16>
    %c1_172 = arith.constant 1 : index
    %c0_173 = arith.constant 0 : index
    %c0_174 = arith.constant 0 : index
    %162 = vector.load %arg9[%c1_172, %c0_173, %c0_174] : memref<2x240x256xbf16, #tpu.memory_space<vmem>>, vector<1x240x256xbf16>
    %163 = vector.shape_cast %162 : vector<1x240x256xbf16> to vector<240x256xbf16>
    %cst_175 = arith.constant dense<0.000000e+00> : vector<32x256xf32>
    %164 = tpu.matmul %161, %163, %cst_175 {dimension_numbers = #tpu.dot_dimension_numbers<[1], [0], [0], [1], [0, 0, 1, 1], [], []>} : vector<32x240xbf16>, vector<240x256xbf16>, vector<32x256xf32> -> vector<32x256xf32>
    %165 = vector.broadcast %7 : vector<1x256xf32> to vector<32x256xf32>
    %166 = arith.mulf %164, %165 : vector<32x256xf32>
    %167 = arith.addf %147, %166 : vector<32x256xf32>
    %c0_176 = arith.constant 0 : index
    %c113_177 = arith.constant 113 : index
    %168 = vector.load %arg8[%c0_176, %c113_177] : memref<112x512xbf16, #tpu.memory_space<vmem>>, vector<80x256xbf16>
    %c0_178 = arith.constant 0 : index
    %c0_179 = arith.constant 0 : index
    %c0_180 = arith.constant 0 : index
    %169 = vector.load %arg9[%c0_178, %c0_179, %c0_180] : memref<2x240x256xbf16, #tpu.memory_space<vmem>>, vector<1x80x256xbf16>
    %170 = vector.shape_cast %169 : vector<1x80x256xbf16> to vector<80x256xbf16>
    %171 = vector.shape_cast %168 : vector<80x256xbf16> to vector<1x80x256xbf16>
    tpu.vector_store %arg9[%c0_178, %c0_179, %c0_180], %171 {strides = array<i32>} : memref<2x240x256xbf16, #tpu.memory_space<vmem>>, vector<1x80x256xbf16>,
    %c0_181 = arith.constant 0 : index
    %c129_182 = arith.constant 129 : index
    %172 = vector.load %arg8[%c0_181, %c129_182] : memref<112x512xbf16, #tpu.memory_space<vmem>>, vector<80x256xbf16>
    %c0_183 = arith.constant 0 : index
    %c80_184 = arith.constant 80 : index
    %c0_185 = arith.constant 0 : index
    %173 = vector.load %arg9[%c0_183, %c80_184, %c0_185] : memref<2x240x256xbf16, #tpu.memory_space<vmem>>, vector<1x80x256xbf16>
    %174 = vector.shape_cast %173 : vector<1x80x256xbf16> to vector<80x256xbf16>
    %175 = vector.shape_cast %172 : vector<80x256xbf16> to vector<1x80x256xbf16>
    tpu.vector_store %arg9[%c0_183, %c80_184, %c0_185], %175 {strides = array<i32>} : memref<2x240x256xbf16, #tpu.memory_space<vmem>>, vector<1x80x256xbf16>,
    %c0_186 = arith.constant 0 : index
    %c145_187 = arith.constant 145 : index
    %176 = vector.load %arg8[%c0_186, %c145_187] : memref<112x512xbf16, #tpu.memory_space<vmem>>, vector<80x256xbf16>
    %c0_188 = arith.constant 0 : index
    %c160_189 = arith.constant 160 : index
    %c0_190 = arith.constant 0 : index
    %177 = vector.load %arg9[%c0_188, %c160_189, %c0_190] : memref<2x240x256xbf16, #tpu.memory_space<vmem>>, vector<1x80x256xbf16>
    %178 = vector.shape_cast %177 : vector<1x80x256xbf16> to vector<80x256xbf16>
    %179 = vector.shape_cast %176 : vector<80x256xbf16> to vector<1x80x256xbf16>
    tpu.vector_store %arg9[%c0_188, %c160_189, %c0_190], %179 {strides = array<i32>} : memref<2x240x256xbf16, #tpu.memory_space<vmem>>, vector<1x80x256xbf16>,
    %c2_191 = arith.constant 2 : index
    %c0_192 = arith.constant 0 : index
    %c0_193 = arith.constant 0 : index
    %180 = vector.load %arg4[%c2_191, %c0_192, %c0_193] : memref<3x32x240xbf16, #tpu.memory_space<vmem>>, vector<1x32x240xbf16>
    %181 = vector.shape_cast %180 : vector<1x32x240xbf16> to vector<32x240xbf16>
    %c0_194 = arith.constant 0 : index
    %c0_195 = arith.constant 0 : index
    %c0_196 = arith.constant 0 : index
    %182 = vector.load %arg9[%c0_194, %c0_195, %c0_196] : memref<2x240x256xbf16, #tpu.memory_space<vmem>>, vector<1x240x256xbf16>
    %183 = vector.shape_cast %182 : vector<1x240x256xbf16> to vector<240x256xbf16>
    %cst_197 = arith.constant dense<0.000000e+00> : vector<32x256xf32>
    %184 = tpu.matmul %181, %183, %cst_197 {dimension_numbers = #tpu.dot_dimension_numbers<[1], [0], [0], [1], [0, 0, 1, 1], [], []>} : vector<32x240xbf16>, vector<240x256xbf16>, vector<32x256xf32> -> vector<32x256xf32>
    %185 = vector.broadcast %8 : vector<1x256xf32> to vector<32x256xf32>
    %186 = arith.mulf %184, %185 : vector<32x256xf32>
    %187 = arith.addf %167, %186 : vector<32x256xf32>
    %cst_198 = arith.constant 0.000000e+00 : f32
    %188 = vector.broadcast %cst_198 : f32 to vector<32x256xf32>
    %189 = arith.maximumf %187, %188 : vector<32x256xf32>
    %190 = arith.truncf %189 : vector<32x256xf32> to vector<32x256xbf16>
    %c80_199 = arith.constant 80 : index
    %c128_200 = arith.constant 128 : index
    %191 = vector.load %arg8[%c80_199, %c128_200] : memref<112x512xbf16, #tpu.memory_space<vmem>>, vector<32x256xbf16>
    tpu.vector_store %arg8[%c80_199, %c128_200], %190 {strides = array<i32>} : memref<112x512xbf16, #tpu.memory_space<vmem>>, vector<32x256xbf16>,
    %c0_201 = arith.constant 0 : index
    %c128_202 = arith.constant 128 : index
    %192 = vector.load %arg8[%c0_201, %c128_202] : memref<112x512xbf16, #tpu.memory_space<vmem>>, vector<112x256xbf16>
    %c0_203 = arith.constant 0 : index
    %c0_204 = arith.constant 0 : index
    %193 = vector.load %arg5[%c0_203, %c0_204] : memref<4x112xbf16, #tpu.memory_space<vmem>>, vector<4x112xbf16>
    %cst_205 = arith.constant dense<0.000000e+00> : vector<4x256xf32>
    %194 = tpu.matmul %193, %192, %cst_205 {dimension_numbers = #tpu.dot_dimension_numbers<[1], [0], [0], [1], [0, 0, 1, 1], [], []>} : vector<4x112xbf16>, vector<112x256xbf16>, vector<4x256xf32> -> vector<4x256xf32>
    %c0_206 = arith.constant 0 : index
    %c0_207 = arith.constant 0 : index
    %c0_208 = arith.constant 0 : index
    %195 = vector.load %arg1[%c0_206, %c0_207, %c0_208] : memref<1x16x256xf32, #tpu.memory_space<vmem>>, vector<1x4x256xf32>
    %196 = vector.shape_cast %195 : vector<1x4x256xf32> to vector<4x256xf32>
    %197 = arith.addf %194, %196 : vector<4x256xf32>
    %c0_209 = arith.constant 0 : index
    %c0_210 = arith.constant 0 : index
    %c0_211 = arith.constant 0 : index
    %198 = vector.load %arg7[%c0_209, %c0_210, %c0_211] : memref<1x4x256xf32, #tpu.memory_space<vmem>>, vector<1x4x256xf32>
    %199 = vector.shape_cast %198 : vector<1x4x256xf32> to vector<4x256xf32>
    %200 = vector.shape_cast %197 : vector<4x256xf32> to vector<1x4x256xf32>
    tpu.vector_store %arg7[%c0_209, %c0_210, %c0_211], %200 {strides = array<i32>} : memref<1x4x256xf32, #tpu.memory_space<vmem>>, vector<1x4x256xf32>,
    return
  }
  func.func @transform_0(%arg0: i32) -> (i32, i32, i32) {
    %c0_i32 = arith.constant 0 : i32
    %c0_i32_0 = arith.constant 0 : i32
    %c0_i32_1 = arith.constant 0 : i32
    return %arg0, %c0_i32, %c0_i32_0 : i32, i32, i32
  }
  func.func @transform_1(%arg0: i32) -> (i32, i32, i32) {
    %c0_i32 = arith.constant 0 : i32
    %c0_i32_0 = arith.constant 0 : i32
    %c0_i32_1 = arith.constant 0 : i32
    %c0_i32_2 = arith.constant 0 : i32
    return %c0_i32, %c0_i32_0, %c0_i32_1 : i32, i32, i32
  }
  func.func @transform_2(%arg0: i32) -> (i32, i32, i32) {
    %c0_i32 = arith.constant 0 : i32
    %c0_i32_0 = arith.constant 0 : i32
    %c0_i32_1 = arith.constant 0 : i32
    %c0_i32_2 = arith.constant 0 : i32
    return %c0_i32, %c0_i32_0, %c0_i32_1 : i32, i32, i32
  }
  func.func @transform_3(%arg0: i32) -> (i32, i32, i32) {
    %c0_i32 = arith.constant 0 : i32
    %c0_i32_0 = arith.constant 0 : i32
    %c0_i32_1 = arith.constant 0 : i32
    %c0_i32_2 = arith.constant 0 : i32
    return %c0_i32, %c0_i32_0, %c0_i32_1 : i32, i32, i32
  }
  func.func @transform_4(%arg0: i32) -> (i32, i32) {
    %c0_i32 = arith.constant 0 : i32
    %c0_i32_0 = arith.constant 0 : i32
    %c0_i32_1 = arith.constant 0 : i32
    return %c0_i32, %c0_i32_0 : i32, i32
  }
  func.func @transform_5(%arg0: i32) -> (i32, i32) {
    %c0_i32 = arith.constant 0 : i32
    %c0_i32_0 = arith.constant 0 : i32
    %c0_i32_1 = arith.constant 0 : i32
    return %c0_i32, %c0_i32_0 : i32, i32
  }
  func.func @transform_6(%arg0: i32) -> (i32, i32, i32) {
    %c0_i32 = arith.constant 0 : i32
    %c0_i32_0 = arith.constant 0 : i32
    %c0_i32_1 = arith.constant 0 : i32
    return %arg0, %c0_i32, %c0_i32_0 : i32, i32, i32
  }
}

</mosaic_0001>

<llo_original>
// kernel: tpu_custom_call.1
$region0: #{tpu_custom_call.1}
  #allocation0 [shape = 'u32[]', space=smem, size = 0x4, offset = 0x4, fixed_abs, tag = 'smem constant byte address 0x4 - core index']
  #allocation1 [shape = 'u32[144,128]{1,0:T(1,128)}', space=vmem, size = 0x12000, scoped, tag = 'internal scratch']
  #allocation2 [shape = 'bf16[112,512]{1,0:T(8,128)(2,1)}', space=vmem, size = 0x1c000, scoped, tag = 'scratch operand']
  #allocation3 [shape = 'bf16[2,240,256]{2,1,0:T(8,128)(2,1)}', space=vmem, size = 0x3c000, scoped, tag = 'scratch operand']
  %s0 = inlined_call_operand.hbm [shape: f32[2,16,256], index: 0, kind: input, shape index: {}]
  %s1 = inlined_call_operand.hbm [shape: bf16[3,32,48], index: 1, kind: input, shape index: {}]
  %s2 = inlined_call_operand.hbm [shape: bf16[3,32,144], index: 2, kind: input, shape index: {}]
  %s3 = inlined_call_operand.hbm [shape: bf16[3,32,240], index: 3, kind: input, shape index: {}]
  %s4 = inlined_call_operand.vmem [shape: bf16[4,112], index: 4, kind: input, shape index: {}]
  %s5 = inlined_call_operand.vmem [shape: f32[2,256], index: 5, kind: input, shape index: {}]
  %s6 = inlined_call_operand.hbm [shape: f32[2,4,256], index: 6, kind: output, shape index: {}]
  %s7 = sld [smem:[#allocation0]]
  $region73: #{tpu_custom_call.1} parent=0
    _
  %s9 = ssub.s32 1, %s7
  %s10 = scalar_select 0, %s9, %s7
  $region1: #{tpu_custom_call.1} parent=0
    #allocation4 [shape = 'u8[32768]{0}', space=vmem, size = 0x8000, scoped, tag = 'input window, operand 0']
    #allocation5 [shape = 's32[2]{0}', space=sflag, size = 0x8, scoped, tag = 'scoped memory for tpu_custom_call.1']
    #allocation6 [shape = 's32[2]{0}', space=sflag, size = 0x8, scoped, tag = 'scoped memory for tpu_custom_call.1']
    #allocation7 [shape = 'u8[24576]{0}', space=vmem, size = 0x6000, scoped, tag = 'input window, operand 1, single buffered']
    #allocation8 [shape = 's32[1]{0}', space=sflag, size = 0x4, scoped, tag = 'scoped memory for tpu_custom_call.1']
    #allocation9 [shape = 'u8[49152]{0}', space=vmem, size = 0xc000, scoped, tag = 'input window, operand 2, single buffered']
    #allocation10 [shape = 'u8[49152]{0}', space=vmem, size = 0xc000, scoped, tag = 'input window, operand 3, single buffered']
    #allocation11 [shape = 's32[1]{0}', space=sflag, size = 0x4, scoped, tag = 'scoped memory for tpu_custom_call.1']
    #allocation12 [shape = 'u8[8192]{0}', space=vmem, size = 0x2000, scoped, tag = 'output window, operand 0']
    %11 = vsyncpa [#allocation5], 0
    %s12 = scalar_lea.sflag [#allocation5], 1
    %13 = vsyncpa %s12, 0
    %14 = vsyncpa [#allocation8], 0
    %15 = vsyncpa [#allocation11], 0
    %16 = vsyncpa [#allocation6], 0
    %s17 = scalar_lea.sflag [#allocation6], 1
    %18 = vsyncpa %s17, 0
    loop: start=0, step=1, limit=4
    $region2: #{tpu_custom_call.1} parent=1 // loop_pre_header
      _
    $region3: #{tpu_custom_call.1} parent=1 // loop_header
      %s20 = sphi 0, %s24
      %p21 = scmp.ge.s32.totalorder %s20, 4
      %s30 = sphi 0, %s32
      %s33 = sphi 0, %s30
      %s34 = sphi 0, %s33
      %s50 = sphi 0, %s34
      %s54 = sphi 0, %s54
      %s56 = sphi 0, %s54
      %s57 = sphi 0, %s56
      %s71 = sphi 0, %s57
      %s75 = sphi 0, %s75
      %s77 = sphi 0, %s75
      %s78 = sphi 0, %s77
      %s92 = sphi 0, %s78
      %s96 = sphi 0, %s96
      %s98 = sphi 0, %s96
      %s99 = sphi 0, %s98
      %s113 = sphi 0, %s99
      %s117 = sphi 0, %s117
      %s119 = sphi 0, %s117
      %s120 = sphi 0, %s119
      %s134 = sphi 0, %s120
      %s138 = sphi 0, %s138
      %s140 = sphi 0, %s138
      %s141 = sphi 0, %s140
      %s155 = sphi 0, %s141
      %s161 = sphi 0, %s163
      %s164 = sphi 0, %s161
      %s165 = sphi 0, %s164
      %s181 = sphi 0, %s165
    $region4: #{tpu_custom_call.1} parent=1 // loop_header_branch
      %23 = sbr.rel (%p21) target = $region8
    $region5: #{tpu_custom_call.1} parent=1 // loop_body
      %s25 = ssub.s32 %s20, 1
      %s26 = ssub.s32 %s20, 2
      %s27 = sadd.s32 %s20, 1
      %s28 = ssub.s32 %s20, %s27
      %p29 = scmp.eq.s32.totalorder %s28, 0
      %s31 = sadd.s32 %s30, 1
      %s32 = scalar_select %p29, %s30, %s31
      %p35 = pneg %p29
      %p36 = scmp.eq.s32.totalorder %s20, 1
      %p37 = por %p35, %p36
      %p38 = scmp.ne.s32.totalorder %s30, %s33
      %p39 = scmp.eq.s32.totalorder %s20, 0
      %p40 = por %p38, %p39
      %p41 = scmp.ne.s32.totalorder %s30, %s33
      %p42 = scmp.eq.s32.totalorder %s25, 1
      %p43 = por %p41, %p42
      %p44 = scmp.ne.s32.totalorder %s33, %s34
      %p45 = scmp.eq.s32.totalorder %s25, 0
      %p46 = por %p44, %p45
      %p47 = scmp.ne.s32.totalorder %s33, %s34
      %p48 = scmp.eq.s32.totalorder %s26, 1
      %p49 = por %p47, %p48
      %p51 = scmp.ne.s32.totalorder %s34, %s50
      %p52 = scmp.eq.s32.totalorder %s26, 0
      %p53 = por %p51, %p52
      %s55 = sadd.s32 %s54, 1
      %p58 = scmp.eq.s32.totalorder %s20, 1
      %p59 = scmp.ne.s32.totalorder %s54, %s56
      %p60 = scmp.eq.s32.totalorder %s20, 0
      %p61 = por %p59, %p60
      %p62 = scmp.ne.s32.totalorder %s54, %s56
      %p63 = scmp.eq.s32.totalorder %s25, 1
      %p64 = por %p62, %p63
      %p65 = scmp.ne.s32.totalorder %s56, %s57
      %p66 = scmp.eq.s32.totalorder %s25, 0
      %p67 = por %p65, %p66
      %p68 = scmp.ne.s32.totalorder %s56, %s57
      %p69 = scmp.eq.s32.totalorder %s26, 1
      %p70 = por %p68, %p69
      %p72 = scmp.ne.s32.totalorder %s57, %s71
      %p73 = scmp.eq.s32.totalorder %s26, 0
      %p74 = por %p72, %p73
      %s76 = sadd.s32 %s75, 1
      %p79 = scmp.eq.s32.totalorder %s20, 1
      %p80 = scmp.ne.s32.totalorder %s75, %s77
      %p81 = scmp.eq.s32.totalorder %s20, 0
      %p82 = por %p80, %p81
      %p83 = scmp.ne.s32.totalorder %s75, %s77
      %p84 = scmp.eq.s32.totalorder %s25, 1
      %p85 = por %p83, %p84
      %p86 = scmp.ne.s32.totalorder %s77, %s78
      %p87 = scmp.eq.s32.totalorder %s25, 0
      %p88 = por %p86, %p87
      %p89 = scmp.ne.s32.totalorder %s77, %s78
      %p90 = scmp.eq.s32.totalorder %s26, 1
      %p91 = por %p89, %p90
      %p93 = scmp.ne.s32.totalorder %s78, %s92
      %p94 = scmp.eq.s32.totalorder %s26, 0
      %p95 = por %p93, %p94
      %s97 = sadd.s32 %s96, 1
      %p100 = scmp.eq.s32.totalorder %s20, 1
      %p101 = scmp.ne.s32.totalorder %s96, %s98
      %p102 = scmp.eq.s32.totalorder %s20, 0
      %p103 = por %p101, %p102
      %p104 = scmp.ne.s32.totalorder %s96, %s98
      %p105 = scmp.eq.s32.totalorder %s25, 1
      %p106 = por %p104, %p105
      %p107 = scmp.ne.s32.totalorder %s98, %s99
      %p108 = scmp.eq.s32.totalorder %s25, 0
      %p109 = por %p107, %p108
      %p110 = scmp.ne.s32.totalorder %s98, %s99
      %p111 = scmp.eq.s32.totalorder %s26, 1
      %p112 = por %p110, %p111
      %p114 = scmp.ne.s32.totalorder %s99, %s113
      %p115 = scmp.eq.s32.totalorder %s26, 0
      %p116 = por %p114, %p115
      %s118 = sadd.s32 %s117, 1
      %p121 = scmp.eq.s32.totalorder %s20, 1
      %p122 = scmp.ne.s32.totalorder %s117, %s119
      %p123 = scmp.eq.s32.totalorder %s20, 0
      %p124 = por %p122, %p123
      %p125 = scmp.ne.s32.totalorder %s117, %s119
      %p126 = scmp.eq.s32.totalorder %s25, 1
      %p127 = por %p125, %p126
      %p128 = scmp.ne.s32.totalorder %s119, %s120
      %p129 = scmp.eq.s32.totalorder %s25, 0
      %p130 = por %p128, %p129
      %p131 = scmp.ne.s32.totalorder %s119, %s120
      %p132 = scmp.eq.s32.totalorder %s26, 1
      %p133 = por %p131, %p132
      %p135 = scmp.ne.s32.totalorder %s120, %s134
      %p136 = scmp.eq.s32.totalorder %s26, 0
      %p137 = por %p135, %p136
      %s139 = sadd.s32 %s138, 1
      %p142 = scmp.eq.s32.totalorder %s20, 1
      %p143 = scmp.ne.s32.totalorder %s138, %s140
      %p144 = scmp.eq.s32.totalorder %s20, 0
      %p145 = por %p143, %p144
      %p146 = scmp.ne.s32.totalorder %s138, %s140
      %p147 = scmp.eq.s32.totalorder %s25, 1
      %p148 = por %p146, %p147
      %p149 = scmp.ne.s32.totalorder %s140, %s141
      %p150 = scmp.eq.s32.totalorder %s25, 0
      %p151 = por %p149, %p150
      %p152 = scmp.ne.s32.totalorder %s140, %s141
      %p153 = scmp.eq.s32.totalorder %s26, 1
      %p154 = por %p152, %p153
      %p156 = scmp.ne.s32.totalorder %s141, %s155
      %p157 = scmp.eq.s32.totalorder %s26, 0
      %p158 = por %p156, %p157
      %s159 = ssub.s32 %s20, %s27
      %p160 = scmp.eq.s32.totalorder %s159, 0
      %s162 = sadd.s32 %s161, 1
      %s163 = scalar_select %p160, %s161, %s162
      %p166 = pneg %p160
      %p167 = scmp.eq.s32.totalorder %s20, 1
      %p168 = por %p166, %p167
      %p169 = scmp.ne.s32.totalorder %s161, %s164
      %p170 = scmp.eq.s32.totalorder %s20, 0
      %p171 = por %p169, %p170
      %p172 = scmp.ne.s32.totalorder %s161, %s164
      %p173 = scmp.eq.s32.totalorder %s25, 1
      %p174 = por %p172, %p173
      %p175 = scmp.ne.s32.totalorder %s164, %s165
      %p176 = scmp.eq.s32.totalorder %s25, 0
      %p177 = por %p175, %p176
      %p178 = scmp.ne.s32.totalorder %s164, %s165
      %p179 = scmp.eq.s32.totalorder %s26, 1
      %p180 = por %p178, %p179
      %p182 = scmp.ne.s32.totalorder %s165, %s181
      %p183 = scmp.eq.s32.totalorder %s26, 0
      %p184 = por %p182, %p183
      %p185 = scmp.le.s32.totalorder 1, %s20
      %p186 = scmp.lt.s32.totalorder %s20, 3
      %p187 = pnand %p185, %p186
      %p188 = pneg %p187
      // Predicated region
      $region9: #{tpu_custom_call.1} parent=5 // pred_check
        _
      $region10: #{tpu_custom_call.1} parent=5 // pred_check_branch
        %190 = sbr.rel (%p187) target = $region12
      $region11: #{tpu_custom_call.1} parent=5 // pred_region
        %s191 = ssub.s32 %s20, 1
        // Predicated region
        $region13: #{tpu_custom_call.1} parent=11 // pred_check
          %p192 = pneg %p67
        $region14: #{tpu_custom_call.1} parent=11 // pred_check_branch
          %194 = sbr.rel (%p192) target = $region16
        $region15: #{tpu_custom_call.1} parent=11 // pred_region
          %s196 = ssub.s32 768, 768
          %197 = vsyncadd [#allocation8], %s196
          %s198 = sshll.u32 [#allocation7], 4
          %s199 = int_to_ptr.vmem [resolvable:$true] %s198
          %204 = dma.hbm_to_vmem [thread:$0]  %s1, 768, %s199, [#allocation8], 64, 64, 4
        $region16: #{tpu_custom_call.1} parent=11 // pred_fallthru
          _
        // Predicated region
        $region17: #{tpu_custom_call.1} parent=11 // pred_check
          %p205 = pneg %p88
        $region18: #{tpu_custom_call.1} parent=11 // pred_check_branch
          %207 = sbr.rel (%p205) target = $region20
        $region19: #{tpu_custom_call.1} parent=11 // pred_region
          %s209 = ssub.s32 1536, 1536
          %210 = vsyncadd [#allocation8], %s209
          %s211 = sshll.u32 [#allocation9], 4
          %s212 = int_to_ptr.vmem [resolvable:$true] %s211
          %217 = dma.hbm_to_vmem [thread:$0]  %s2, 1536, %s212, [#allocation8], 128, 128, 8
        $region20: #{tpu_custom_call.1} parent=11 // pred_fallthru
          _
        // Predicated region
        $region21: #{tpu_custom_call.1} parent=11 // pred_check
          %p218 = pneg %p109
        $region22: #{tpu_custom_call.1} parent=11 // pred_check_branch
          %220 = sbr.rel (%p218) target = $region24
        $region23: #{tpu_custom_call.1} parent=11 // pred_region
          %s222 = ssub.s32 1536, 1536
          %223 = vsyncadd [#allocation11], %s222
          %s224 = sshll.u32 [#allocation10], 4
          %s225 = int_to_ptr.vmem [resolvable:$true] %s224
          %230 = dma.hbm_to_vmem [thread:$0]  %s3, 1536, %s225, [#allocation11], 128, 128, 8
        $region24: #{tpu_custom_call.1} parent=11 // pred_fallthru
          _
        // Predicated region
        $region25: #{tpu_custom_call.1} parent=11 // pred_check
          %p231 = pneg %p130
        $region26: #{tpu_custom_call.1} parent=11 // pred_check_branch
          %233 = sbr.rel (%p231) target = $region28
        $region27: #{tpu_custom_call.1} parent=11 // pred_region
          _
        $region28: #{tpu_custom_call.1} parent=11 // pred_fallthru
          _
        // Predicated region
        $region29: #{tpu_custom_call.1} parent=11 // pred_check
          %p234 = pneg %p151
        $region30: #{tpu_custom_call.1} parent=11 // pred_check_branch
          %236 = sbr.rel (%p234) target = $region32
        $region31: #{tpu_custom_call.1} parent=11 // pred_region
          _
        $region32: #{tpu_custom_call.1} parent=11 // pred_fallthru
          _
      $region12: #{tpu_custom_call.1} parent=5 // pred_fallthru
        _
      %p237 = scmp.lt.s32.totalorder %s20, 2
      // Predicated region
      $region33: #{tpu_custom_call.1} parent=5 // pred_check
        %p238 = pneg %p237
      $region34: #{tpu_custom_call.1} parent=5 // pred_check_branch
        %240 = sbr.rel (%p238) target = $region36
      $region35: #{tpu_custom_call.1} parent=5 // pred_region
        // Predicated region
        $region37: #{tpu_custom_call.1} parent=35 // pred_check
          %p241 = pneg %p40
        $region38: #{tpu_custom_call.1} parent=35 // pred_check_branch
          %243 = sbr.rel (%p241) target = $region40
        $region39: #{tpu_custom_call.1} parent=35 // pred_region
          %s244 = sand.u32 %s30, 1
          %s245 = scalar_lea.sflag [#allocation5], %s244
          %s246 = sand.u32 %s30, 1
          %s247 = smul.addr %s246, 32
          %s248 = scalar_lea.vmem [#allocation4], %s247
          %s250 = ssub.s32 512, 512
          %251 = vsyncadd %s245, %s250
          %s252 = smul.addr %s20, 4
          %s253 = smul.addr %s252, 128
          %s254 = scalar_lea.hbm %s0, %s253
          %s255 = sshll.u32 %s248, 4
          %s256 = int_to_ptr.vmem [resolvable:$true] %s255
          %261 = dma.hbm_to_vmem [thread:$0]  %s254, 512, %s256, %s245, 256, 256, 16
        $region40: #{tpu_custom_call.1} parent=35 // pred_fallthru
          _
      $region36: #{tpu_custom_call.1} parent=5 // pred_fallthru
        _
      %p262 = scmp.le.s32.totalorder 1, %s20
      %p263 = scmp.lt.s32.totalorder %s20, 3
      %p264 = pnand %p262, %p263
      %p265 = pneg %p264
      // Predicated region
      $region41: #{tpu_custom_call.1} parent=5 // pred_check
        _
      $region42: #{tpu_custom_call.1} parent=5 // pred_check_branch
        %267 = sbr.rel (%p264) target = $region44
      $region43: #{tpu_custom_call.1} parent=5 // pred_region
        %s268 = ssub.s32 %s20, 1
        %s269 = sand.u32 %s33, 1
        %s270 = scalar_lea.sflag [#allocation5], %s269
        %s271 = sand.u32 %s33, 1
        %s272 = smul.addr %s271, 32
        %s273 = scalar_lea.vmem [#allocation4], %s272
        // Predicated region
        $region45: #{tpu_custom_call.1} parent=43 // pred_check
          %p274 = pneg %p46
        $region46: #{tpu_custom_call.1} parent=43 // pred_check_branch
          %276 = sbr.rel (%p274) target = $region48
        $region47: #{tpu_custom_call.1} parent=43 // pred_region
          %277 = dma.done %s270, 512
        $region48: #{tpu_custom_call.1} parent=43 // pred_fallthru
          _
        // Predicated region
        $region49: #{tpu_custom_call.1} parent=43 // pred_check
          %p278 = pneg %p67
        $region50: #{tpu_custom_call.1} parent=43 // pred_check_branch
          %280 = sbr.rel (%p278) target = $region52
        $region51: #{tpu_custom_call.1} parent=43 // pred_region
          %281 = dma.done [#allocation8], 768
        $region52: #{tpu_custom_call.1} parent=43 // pred_fallthru
          _
        // Predicated region
        $region53: #{tpu_custom_call.1} parent=43 // pred_check
          %p282 = pneg %p88
        $region54: #{tpu_custom_call.1} parent=43 // pred_check_branch
          %284 = sbr.rel (%p282) target = $region56
        $region55: #{tpu_custom_call.1} parent=43 // pred_region
          %285 = dma.done [#allocation8], 1536
        $region56: #{tpu_custom_call.1} parent=43 // pred_fallthru
          _
        // Predicated region
        $region57: #{tpu_custom_call.1} parent=43 // pred_check
          %p286 = pneg %p109
        $region58: #{tpu_custom_call.1} parent=43 // pred_check_branch
          %288 = sbr.rel (%p286) target = $region60
        $region59: #{tpu_custom_call.1} parent=43 // pred_region
          %289 = dma.done [#allocation11], 1536
        $region60: #{tpu_custom_call.1} parent=43 // pred_fallthru
          _
        %s290 = sand.u32 %s33, 1
        %s291 = scalar_lea.sflag [#allocation5], %s290
        %s292 = sand.u32 %s33, 1
        %s293 = smul.addr %s292, 32
        %s294 = scalar_lea.vmem [#allocation4], %s293
        %p295 = pneg %p46
        %p296 = pneg %p43
        %p297 = pneg %p67
        %p298 = pneg %p64
        %p299 = pneg %p88
        %p300 = pneg %p85
        %p301 = pneg %p109
        %p302 = pneg %p106
        %p303 = pneg %p130
        %p304 = pneg %p127
        %p305 = pneg %p151
        %p306 = pneg %p148
        %p307 = pneg %p177
        %p308 = pneg %p174
        %s309 = sand.u32 %s164, 1
        %s310 = scalar_lea.sflag [#allocation6], %s309
        %s311 = sand.u32 %s164, 1
        %s312 = smul.addr %s311, 8
        %s313 = scalar_lea.vmem [#allocation12], %s312
        %315 = vst [vmem:[#allocation2] sm:$0xf] 0
        %316 = vst [vmem:[#allocation2 + $0x10] sm:$0xf] 0
        %317 = vst [vmem:[#allocation2 + $0x20] sm:$0xf] 0
        %318 = vst [vmem:[#allocation2 + $0x30] sm:$0xf] 0
        %319 = vst [vmem:[#allocation2 + $0x40] sm:$0xf] 0
        %320 = vst [vmem:[#allocation2 + $0x50] sm:$0xf] 0
        %321 = vst [vmem:[#allocation2 + $0x60] sm:$0xf] 0
        %322 = vst [vmem:[#allocation2 + $0x70] sm:$0xf] 0
        %323 = vst [vmem:[#allocation2 + $0x80] sm:$0xf] 0
        %324 = vst [vmem:[#allocation2 + $0x90] sm:$0xf] 0
        %325 = vst [vmem:[#allocation2 + $0xc] sm:$0xf] 0
        %326 = vst [vmem:[#allocation2 + $0x1c] sm:$0xf] 0
        %327 = vst [vmem:[#allocation2 + $0x2c] sm:$0xf] 0
        %328 = vst [vmem:[#allocation2 + $0x3c] sm:$0xf] 0
        %329 = vst [vmem:[#allocation2 + $0x4c] sm:$0xf] 0
        %330 = vst [vmem:[#allocation2 + $0x5c] sm:$0xf] 0
        %331 = vst [vmem:[#allocation2 + $0x6c] sm:$0xf] 0
        %332 = vst [vmem:[#allocation2 + $0x7c] sm:$0xf] 0
        %333 = vst [vmem:[#allocation2 + $0x8c] sm:$0xf] 0
        %334 = vst [vmem:[#allocation2 + $0x9c] sm:$0xf] 0
        %v335 = vld [vmem:[%s273] sm:$0xff]
        %v336 = vld [vmem:[%s273 + $0x8] sm:$0xff]
        %v337 = vld [vmem:[%s273 + $0x10] sm:$0xff]
        %v338 = vld [vmem:[%s273 + $0x18] sm:$0xff]
        %v339 = vpack.c.bf16 %v337, %v335
        %v340 = vpack.c.bf16 %v338, %v336
        %v343 = vunpack.c.l.b16 %v339
        %v344 = vunpack.c.l.b16 %v340
        %v345 = vunpack.c.h.b16 %v339
        %v346 = vunpack.c.h.b16 %v340
        %v347 = vpack.c.b16 %v344, %v343
        %v348 = vpack.c.b16 %v346, %v345
        %351 = vst [vmem:[#allocation2 + $0x4] sm:$0xff] %v347
        %352 = vst [vmem:[#allocation2 + $0x14] sm:$0xff] %v348
        %v353 = vld [vmem:[%s5] ss:$2 sm:$0x3]
        %s354 = scalar_lea.vmem %s5, 1
        %v355 = vld [vmem:[%s354] ss:$2 sm:$0x3]
        %v356 = vld [vmem:[#allocation2] sm:$0xff]
        %v357 = vld [vmem:[#allocation2 + $0x8] sm:$0xf]
        %v358 = vld [vmem:[#allocation2 + $0x10] sm:$0xff]
        %v359 = vld [vmem:[#allocation2 + $0x18] sm:$0xf]
        %364 = vrot.lane.b32.xlu0 %v356, 16
        %v365 = vpop.permute.xlu0 %364
        %366 = vrot.lane.b32.xlu0 %v357, 16
        %v367 = vpop.permute.xlu0 %366
        %368 = vrot.lane.b32.xlu0 %v358, 16
        %v369 = vpop.permute.xlu0 %368
        %370 = vrot.lane.b32.xlu0 %v359, 16
        %v371 = vpop.permute.xlu0 %370
        %v372 = vrot.slane %v365, 4
        %v373 = vrot.slane %v367, 4
        %v374 = vrot.slane %v369, 4
        %v375 = vrot.slane %v371, 4
        %vm376 = vcmask 1043456
        %v377 = vsel %vm376, %v372, %v373
        %vm378 = vcmask 130048
        %v379 = vsel %vm378, %v365, %v377
        %v380 = vsel %vm376, %v374, %v375
        %v381 = vsel %vm378, %v369, %v380
        %384 = vst [vmem:[#allocation3] sm:$0xff] %v379
        %385 = vst [vmem:[#allocation3 + $0x8] sm:$0xff] %v381
        %v386 = vld [vmem:[#allocation2 + $0x4] sm:$0xff]
        %v387 = vld [vmem:[#allocation2 + $0x14] sm:$0xff]
        %388 = vst [vmem:[#allocation3 + $0x10] sm:$0xff] %v386
        %389 = vst [vmem:[#allocation3 + $0x18] sm:$0xff] %v387
        %v390 = vld [vmem:[#allocation2 + $0x4] sm:$0xff]
        %v391 = vld [vmem:[#allocation2 + $0xc] sm:$0xf]
        %v392 = vld [vmem:[#allocation2 + $0x14] sm:$0xff]
        %v393 = vld [vmem:[#allocation2 + $0x1c] sm:$0xf]
        %398 = vrot.lane.b32.xlu0 %v390, 112
        %v399 = vpop.permute.xlu0 %398
        %400 = vrot.lane.b32.xlu0 %v391, 112
        %v401 = vpop.permute.xlu0 %400
        %402 = vrot.lane.b32.xlu0 %v392, 112
        %v403 = vpop.permute.xlu0 %402
        %404 = vrot.lane.b32.xlu0 %v393, 112
        %v405 = vpop.permute.xlu0 %404
        %v406 = vrot.slane %v399, 4
        %v407 = vrot.slane %v401, 4
        %v408 = vrot.slane %v403, 4
        %v409 = vrot.slane %v405, 4
        %v410 = vsel %vm376, %v406, %v407
        %vm411 = vcmask 916480
        %v412 = vsel %vm411, %v399, %v410
        %v413 = vsel %vm376, %v408, %v409
        %v414 = vsel %vm411, %v403, %v413
        %417 = vst [vmem:[#allocation3 + $0x20] sm:$0xff] %v412
        %418 = vst [vmem:[#allocation3 + $0x28] sm:$0xff] %v414
        %s419 = scalar_lea.vmem [#allocation7], 16
        %v420 = vld [vmem:[%s419] sm:$0xf]
        %v421 = vld [vmem:[%s419 + $0x4] sm:$0xf]
        %v422 = vld [vmem:[%s419 + $0x8] sm:$0xf]
        %v423 = vld [vmem:[%s419 + $0xc] sm:$0xf]
        %v424 = vld [vmem:[#allocation3] sm:$0xff]
        %v425 = vld [vmem:[#allocation3 + $0x8] sm:$0xff]
        %v426 = vld [vmem:[#allocation3 + $0x10] sm:$0xff]
        %v427 = vld [vmem:[#allocation3 + $0x18] sm:$0xff]
        %v428 = vld [vmem:[#allocation3 + $0x20] sm:$0xff]
        %v429 = vld [vmem:[#allocation3 + $0x28] sm:$0xff]
        %v430 = vld [vmem:[#allocation2] sm:$0xff]
        %v431 = vld [vmem:[#allocation2 + $0x8] sm:$0xf]
        %v432 = vld [vmem:[#allocation2 + $0x10] sm:$0xff]
        %v433 = vld [vmem:[#allocation2 + $0x18] sm:$0xf]
        %438 = vrot.lane.b32.xlu0 %v430, 17
        %v439 = vpop.permute.xlu0 %438
        %440 = vrot.lane.b32.xlu0 %v431, 17
        %v441 = vpop.permute.xlu0 %440
        %442 = vrot.lane.b32.xlu0 %v432, 17
        %v443 = vpop.permute.xlu0 %442
        %444 = vrot.lane.b32.xlu0 %v433, 17
        %v445 = vpop.permute.xlu0 %444
        %v446 = vrot.slane %v439, 4
        %v447 = vrot.slane %v441, 4
        %v448 = vrot.slane %v443, 4
        %v449 = vrot.slane %v445, 4
        %v450 = vsel %vm376, %v446, %v447
        %vm451 = vcmask 138240
        %v452 = vsel %vm451, %v439, %v450
        %v453 = vsel %vm376, %v448, %v449
        %v454 = vsel %vm451, %v443, %v453
        %s457 = scalar_lea.vmem [#allocation3], 240
        %458 = vst [vmem:[%s457] sm:$0xff] %v452
        %459 = vst [vmem:[%s457 + $0x8] sm:$0xff] %v454
        %v460 = vld [vmem:[#allocation2] sm:$0xff]
        %v461 = vld [vmem:[#allocation2 + $0x8] sm:$0xf]
        %v462 = vld [vmem:[#allocation2 + $0x10] sm:$0xff]
        %v463 = vld [vmem:[#allocation2 + $0x18] sm:$0xf]
        %468 = vrot.lane.b32.xlu0 %v460, 1
        %v469 = vpop.permute.xlu0 %468
        %470 = vrot.lane.b32.xlu0 %v461, 1
        %v471 = vpop.permute.xlu0 %470
        %472 = vrot.lane.b32.xlu0 %v462, 1
        %v473 = vpop.permute.xlu0 %472
        %474 = vrot.lane.b32.xlu0 %v463, 1
        %v475 = vpop.permute.xlu0 %474
        %v476 = vrot.slane %v469, 4
        %v477 = vrot.slane %v471, 4
        %v478 = vrot.slane %v473, 4
        %v479 = vrot.slane %v475, 4
        %v480 = vsel %vm376, %v476, %v477
        %vm481 = vcmask 7168
        %v482 = vsel %vm481, %v469, %v480
        %v483 = vsel %vm376, %v478, %v479
        %v484 = vsel %vm481, %v473, %v483
        %487 = vst [vmem:[%s457 + $0x10] sm:$0xff] %v482
        %488 = vst [vmem:[%s457 + $0x18] sm:$0xff] %v484
        %v489 = vld [vmem:[#allocation2 + $0x4] sm:$0xff]
        %v490 = vld [vmem:[#allocation2 + $0xc] sm:$0xf]
        %v491 = vld [vmem:[#allocation2 + $0x14] sm:$0xff]
        %v492 = vld [vmem:[#allocation2 + $0x1c] sm:$0xf]
        %497 = vrot.lane.b32.xlu0 %v489, 113
        %v498 = vpop.permute.xlu0 %497
        %499 = vrot.lane.b32.xlu0 %v490, 113
        %v500 = vpop.permute.xlu0 %499
        %501 = vrot.lane.b32.xlu0 %v491, 113
        %v502 = vpop.permute.xlu0 %501
        %503 = vrot.lane.b32.xlu0 %v492, 113
        %v504 = vpop.permute.xlu0 %503
        %v505 = vrot.slane %v498, 4
        %v506 = vrot.slane %v500, 4
        %v507 = vrot.slane %v502, 4
        %v508 = vrot.slane %v504, 4
        %v509 = vsel %vm376, %v505, %v506
        %vm510 = vcmask 924672
        %v511 = vsel %vm510, %v498, %v509
        %v512 = vsel %vm376, %v507, %v508
        %v513 = vsel %vm510, %v502, %v512
        %516 = vst [vmem:[%s457 + $0x20] sm:$0xff] %v511
        %517 = vst [vmem:[%s457 + $0x28] sm:$0xff] %v513
        %v518 = vld [vmem:[#allocation7] sm:$0xf]
        %v519 = vld [vmem:[#allocation7 + $0x4] sm:$0xf]
        %v520 = vld [vmem:[#allocation7 + $0x8] sm:$0xf]
        %v521 = vld [vmem:[#allocation7 + $0xc] sm:$0xf]
        %v522 = vld [vmem:[%s457] sm:$0xff]
        %v523 = vld [vmem:[%s457 + $0x8] sm:$0xff]
        %v524 = vld [vmem:[%s457 + $0x10] sm:$0xff]
        %v525 = vld [vmem:[%s457 + $0x18] sm:$0xff]
        %v526 = vld [vmem:[%s457 + $0x20] sm:$0xff]
        %v527 = vld [vmem:[%s457 + $0x28] sm:$0xff]
        %v532 = vunpack.c.l.b16 %v518
        %v533 = vunpack.c.l.b16 %v519
        %v534 = vunpack.c.l.b16 %v520
        %v535 = vunpack.c.l.b16 %v521
        %v536 = vpack.c.b16 %v533, %v532
        %v537 = vpack.c.b16 %v535, %v534
        %v544 = vunpack.c.l.b16 %v522
        %v545 = vunpack.c.h.b16 %v522
        %v546 = vunpack.c.l.b16 %v523
        %v547 = vunpack.c.h.b16 %v523
        %v548 = vunpack.c.l.b16 %v524
        %v549 = vunpack.c.h.b16 %v524
        %v550 = vunpack.c.l.b16 %v525
        %v551 = vunpack.c.h.b16 %v525
        %v552 = vunpack.c.l.b16 %v526
        %v553 = vunpack.c.h.b16 %v526
        %v554 = vunpack.c.l.b16 %v527
        %v555 = vunpack.c.h.b16 %v527
        %v556 = vpack.c.b16 %v546, %v544
        %v557 = vpack.c.b16 %v547, %v545
        %v558 = vpack.c.b16 %v550, %v548
        %v559 = vpack.c.b16 %v551, %v549
        %v560 = vpack.c.b16 %v554, %v552
        %v561 = vpack.c.b16 %v555, %v553
        %vm568 = vcmask 392192
        %v570 = vsel %vm568, %v536, 0
        %v573 = vsel %vm568, %v537, 0
        %575 = vmatprep.subr.bf16.mxu0 0
        %576 = vmatpush1.bf16.msra.mxu0 0
        %577 = vmatprep.subr.bf16.mxu0 0
        %578 = vmatpush1.bf16.msra.mxu0 0
        %579 = vmatprep.subr.bf16.mxu0 0
        %580 = vmatpush1.bf16.msra.mxu0 0
        %581 = vmatprep.subr.bf16.mxu0 0
        %582 = vmatpush1.bf16.msra.mxu0 0
        %583 = vmatprep.subr.bf16.mxu0 0
        %584 = vmatpush1.bf16.msra.mxu0 0
        %585 = vmatprep.subr.bf16.mxu0 %v561
        %586 = vmatpush1.bf16.msra.mxu0 %v560
        %587 = vmatprep.subr.bf16.mxu0 %v559
        %588 = vmatpush1.bf16.msra.mxu0 %v558
        %589 = vmatprep.subr.bf16.mxu0 %v557
        %590 = vmatpush1.bf16.msra.mxu0 %v556
        %591 = vmatprep.subr.bf16.mxu0 0
        %592 = vmatpush2.bf16.msra.mxu0 0
        %593 = vmatprep.subr.bf16.mxu0 0
        %594 = vmatpush2.bf16.msra.mxu0 0
        %595 = vmatprep.subr.bf16.mxu0 0
        %596 = vmatpush2.bf16.msra.mxu0 0
        %597 = vmatprep.subr.bf16.mxu0 0
        %598 = vmatpush2.bf16.msra.mxu0 0
        %599 = vmatprep.subr.bf16.mxu0 0
        %600 = vmatpush2.bf16.msra.mxu0 0
        %601 = vmatprep.subr.bf16.mxu0 0
        %602 = vmatpush2.bf16.msra.mxu0 0
        %603 = vmatprep.subr.bf16.mxu0 0
        %604 = vmatpush2.bf16.msra.mxu0 0
        %605 = vmatprep.subr.bf16.mxu0 0
        %606 = vmatpush2.bf16.msra.mxu0 0
        %607 = vmatprep.mubr.bf16.mxu0 0
        %608 = vmatmul.mubr.bf16.gmra.mxu0 %v570
        %v609 = vpop.f32.mrf.mxu0
        %v610 = vadd.f32 0.0, %v609
        %v611 = vpop.f32.mrf.mxu0
        %v612 = vadd.f32 0.0, %v611
        %v613 = vpop.f32.mrf.mxu0
        %v614 = vadd.f32 0.0, %v613
        %v615 = vpop.f32.mrf.mxu0
        %v616 = vadd.f32 0.0, %v615
        %617 = vmatprep.mubr.bf16.mxu0 0
        %618 = vmatmul.mubr.bf16.gmra.mxu0 %v573
        %v619 = vpop.f32.mrf.mxu0
        %v620 = vadd.f32 0.0, %v619
        %v621 = vpop.f32.mrf.mxu0
        %v622 = vadd.f32 0.0, %v621
        %v623 = vpop.f32.mrf.mxu0
        %v624 = vadd.f32 0.0, %v623
        %v625 = vpop.f32.mrf.mxu0
        %v626 = vadd.f32 0.0, %v625
        %627 = vdwg.mxu0
        %v629 = vlaneseq
        %v630 = vshrl.u32 %v629, 7
        %v631 = vsub.s32 0, %v630
        %v632 = vrot.slane %v353, %v631
        %v633 = vlaneseq
        %v634 = vshrl.u32 %v633, 7
        %v635 = vsub.s32 1, %v634
        %v636 = vrot.slane %v353, %v635
        %v639 = vmul.f32 %v610, %v632
        %v640 = vmul.f32 %v612, %v636
        %v641 = vmul.f32 %v614, %v632
        %v642 = vmul.f32 %v616, %v636
        %v643 = vmul.f32 %v620, %v632
        %v644 = vmul.f32 %v622, %v636
        %v645 = vmul.f32 %v624, %v632
        %v646 = vmul.f32 %v626, %v636
        %v651 = vunpack.c.l.b16 %v420
        %v652 = vunpack.c.l.b16 %v421
        %v653 = vunpack.c.l.b16 %v422
        %v654 = vunpack.c.l.b16 %v423
        %v655 = vpack.c.b16 %v652, %v651
        %v656 = vpack.c.b16 %v654, %v653
        %v663 = vunpack.c.l.b16 %v424
        %v664 = vunpack.c.h.b16 %v424
        %v665 = vunpack.c.l.b16 %v425
        %v666 = vunpack.c.h.b16 %v425
        %v667 = vunpack.c.l.b16 %v426
        %v668 = vunpack.c.h.b16 %v426
        %v669 = vunpack.c.l.b16 %v427
        %v670 = vunpack.c.h.b16 %v427
        %v671 = vunpack.c.l.b16 %v428
        %v672 = vunpack.c.h.b16 %v428
        %v673 = vunpack.c.l.b16 %v429
        %v674 = vunpack.c.h.b16 %v429
        %v675 = vpack.c.b16 %v665, %v663
        %v676 = vpack.c.b16 %v666, %v664
        %v677 = vpack.c.b16 %v669, %v667
        %v678 = vpack.c.b16 %v670, %v668
        %v679 = vpack.c.b16 %v673, %v671
        %v680 = vpack.c.b16 %v674, %v672
        %v688 = vsel %vm568, %v655, 0
        %v691 = vsel %vm568, %v656, 0
        %693 = vmatprep.subr.bf16.mxu0 0
        %694 = vmatpush1.bf16.msra.mxu0 0
        %695 = vmatprep.subr.bf16.mxu0 0
        %696 = vmatpush1.bf16.msra.mxu0 0
        %697 = vmatprep.subr.bf16.mxu0 0
        %698 = vmatpush1.bf16.msra.mxu0 0
        %699 = vmatprep.subr.bf16.mxu0 0
        %700 = vmatpush1.bf16.msra.mxu0 0
        %701 = vmatprep.subr.bf16.mxu0 0
        %702 = vmatpush1.bf16.msra.mxu0 0
        %703 = vmatprep.subr.bf16.mxu0 %v680
        %704 = vmatpush1.bf16.msra.mxu0 %v679
        %705 = vmatprep.subr.bf16.mxu0 %v678
        %706 = vmatpush1.bf16.msra.mxu0 %v677
        %707 = vmatprep.subr.bf16.mxu0 %v676
        %708 = vmatpush1.bf16.msra.mxu0 %v675
        %709 = vmatprep.subr.bf16.mxu0 0
        %710 = vmatpush2.bf16.msra.mxu0 0
        %711 = vmatprep.subr.bf16.mxu0 0
        %712 = vmatpush2.bf16.msra.mxu0 0
        %713 = vmatprep.subr.bf16.mxu0 0
        %714 = vmatpush2.bf16.msra.mxu0 0
        %715 = vmatprep.subr.bf16.mxu0 0
        %716 = vmatpush2.bf16.msra.mxu0 0
        %717 = vmatprep.subr.bf16.mxu0 0
        %718 = vmatpush2.bf16.msra.mxu0 0
        %719 = vmatprep.subr.bf16.mxu0 0
        %720 = vmatpush2.bf16.msra.mxu0 0
        %721 = vmatprep.subr.bf16.mxu0 0
        %722 = vmatpush2.bf16.msra.mxu0 0
        %723 = vmatprep.subr.bf16.mxu0 0
        %724 = vmatpush2.bf16.msra.mxu0 0
        %725 = vmatprep.mubr.bf16.mxu0 0
        %726 = vmatmul.mubr.bf16.gmra.mxu0 %v688
        %v727 = vpop.f32.mrf.mxu0
        %v728 = vadd.f32 %v639, %v727
        %v729 = vpop.f32.mrf.mxu0
        %v730 = vadd.f32 %v640, %v729
        %v731 = vpop.f32.mrf.mxu0
        %v732 = vadd.f32 %v641, %v731
        %v733 = vpop.f32.mrf.mxu0
        %v734 = vadd.f32 %v642, %v733
        %735 = vmatprep.mubr.bf16.mxu0 0
        %736 = vmatmul.mubr.bf16.gmra.mxu0 %v691
        %v737 = vpop.f32.mrf.mxu0
        %v738 = vadd.f32 %v643, %v737
        %v739 = vpop.f32.mrf.mxu0
        %v740 = vadd.f32 %v644, %v739
        %v741 = vpop.f32.mrf.mxu0
        %v742 = vadd.f32 %v645, %v741
        %v743 = vpop.f32.mrf.mxu0
        %v744 = vadd.f32 %v646, %v743
        %745 = vdwg.mxu0
        %v746 = vld [vmem:[#allocation2] sm:$0xff]
        %v747 = vld [vmem:[#allocation2 + $0x8] sm:$0xf]
        %v748 = vld [vmem:[#allocation2 + $0x10] sm:$0xff]
        %v749 = vld [vmem:[#allocation2 + $0x18] sm:$0xf]
        %754 = vrot.lane.b32.xlu0 %v746, 15
        %v755 = vpop.permute.xlu0 %754
        %756 = vrot.lane.b32.xlu0 %v747, 15
        %v757 = vpop.permute.xlu0 %756
        %758 = vrot.lane.b32.xlu0 %v748, 15
        %v759 = vpop.permute.xlu0 %758
        %760 = vrot.lane.b32.xlu0 %v749, 15
        %v761 = vpop.permute.xlu0 %760
        %v762 = vrot.slane %v755, 4
        %v763 = vrot.slane %v757, 4
        %v764 = vrot.slane %v759, 4
        %v765 = vrot.slane %v761, 4
        %v766 = vsel %vm376, %v762, %v763
        %vm767 = vcmask 121856
        %v768 = vsel %vm767, %v755, %v766
        %v769 = vsel %vm376, %v764, %v765
        %v770 = vsel %vm767, %v759, %v769
        %773 = vst [vmem:[#allocation3] sm:$0xff] %v768
        %774 = vst [vmem:[#allocation3 + $0x8] sm:$0xff] %v770
        %v775 = vld [vmem:[#allocation2 + $0x4] sm:$0xff]
        %v776 = vld [vmem:[#allocation2 + $0xc] sm:$0xf]
        %v777 = vld [vmem:[#allocation2 + $0x14] sm:$0xff]
        %v778 = vld [vmem:[#allocation2 + $0x1c] sm:$0xf]
        %783 = vrot.lane.b32.xlu0 %v775, 127
        %v784 = vpop.permute.xlu0 %783
        %785 = vrot.lane.b32.xlu0 %v776, 127
        %v786 = vpop.permute.xlu0 %785
        %787 = vrot.lane.b32.xlu0 %v777, 127
        %v788 = vpop.permute.xlu0 %787
        %789 = vrot.lane.b32.xlu0 %v778, 127
        %v790 = vpop.permute.xlu0 %789
        %v791 = vrot.slane %v784, 4
        %v792 = vrot.slane %v786, 4
        %v793 = vrot.slane %v788, 4
        %v794 = vrot.slane %v790, 4
        %v795 = vsel %vm376, %v791, %v792
        %vm796 = vcmask 1039360
        %v797 = vsel %vm796, %v784, %v795
        %v798 = vsel %vm376, %v793, %v794
        %v799 = vsel %vm796, %v788, %v798
        %802 = vst [vmem:[#allocation3 + $0x10] sm:$0xff] %v797
        %803 = vst [vmem:[#allocation3 + $0x18] sm:$0xff] %v799
        %v804 = vld [vmem:[#allocation2 + $0x4] sm:$0xff]
        %v805 = vld [vmem:[#allocation2 + $0xc] sm:$0xf]
        %v806 = vld [vmem:[#allocation2 + $0x14] sm:$0xff]
        %v807 = vld [vmem:[#allocation2 + $0x1c] sm:$0xf]
        %812 = vrot.lane.b32.xlu0 %v804, 111
        %v813 = vpop.permute.xlu0 %812
        %814 = vrot.lane.b32.xlu0 %v805, 111
        %v815 = vpop.permute.xlu0 %814
        %816 = vrot.lane.b32.xlu0 %v806, 111
        %v817 = vpop.permute.xlu0 %816
        %818 = vrot.lane.b32.xlu0 %v807, 111
        %v819 = vpop.permute.xlu0 %818
        %v820 = vrot.slane %v813, 4
        %v821 = vrot.slane %v815, 4
        %v822 = vrot.slane %v817, 4
        %v823 = vrot.slane %v819, 4
        %v824 = vsel %vm376, %v820, %v821
        %vm825 = vcmask 908288
        %v826 = vsel %vm825, %v813, %v824
        %v827 = vsel %vm376, %v822, %v823
        %v828 = vsel %vm825, %v817, %v827
        %831 = vst [vmem:[#allocation3 + $0x20] sm:$0xff] %v826
        %832 = vst [vmem:[#allocation3 + $0x28] sm:$0xff] %v828
        %s833 = scalar_lea.vmem [#allocation7], 32
        %v834 = vld [vmem:[%s833] sm:$0xf]
        %v835 = vld [vmem:[%s833 + $0x4] sm:$0xf]
        %v836 = vld [vmem:[%s833 + $0x8] sm:$0xf]
        %v837 = vld [vmem:[%s833 + $0xc] sm:$0xf]
        %v838 = vld [vmem:[#allocation3] sm:$0xff]
        %v839 = vld [vmem:[#allocation3 + $0x8] sm:$0xff]
        %v840 = vld [vmem:[#allocation3 + $0x10] sm:$0xff]
        %v841 = vld [vmem:[#allocation3 + $0x18] sm:$0xff]
        %v842 = vld [vmem:[#allocation3 + $0x20] sm:$0xff]
        %v843 = vld [vmem:[#allocation3 + $0x28] sm:$0xff]
        %v848 = vunpack.c.l.b16 %v834
        %v849 = vunpack.c.l.b16 %v835
        %v850 = vunpack.c.l.b16 %v836
        %v851 = vunpack.c.l.b16 %v837
        %v852 = vpack.c.b16 %v849, %v848
        %v853 = vpack.c.b16 %v851, %v850
        %v860 = vunpack.c.l.b16 %v838
        %v861 = vunpack.c.h.b16 %v838
        %v862 = vunpack.c.l.b16 %v839
        %v863 = vunpack.c.h.b16 %v839
        %v864 = vunpack.c.l.b16 %v840
        %v865 = vunpack.c.h.b16 %v840
        %v866 = vunpack.c.l.b16 %v841
        %v867 = vunpack.c.h.b16 %v841
        %v868 = vunpack.c.l.b16 %v842
        %v869 = vunpack.c.h.b16 %v842
        %v870 = vunpack.c.l.b16 %v843
        %v871 = vunpack.c.h.b16 %v843
        %v872 = vpack.c.b16 %v862, %v860
        %v873 = vpack.c.b16 %v863, %v861
        %v874 = vpack.c.b16 %v866, %v864
        %v875 = vpack.c.b16 %v867, %v865
        %v876 = vpack.c.b16 %v870, %v868
        %v877 = vpack.c.b16 %v871, %v869
        %v885 = vsel %vm568, %v852, 0
        %v888 = vsel %vm568, %v853, 0
        %890 = vmatprep.subr.bf16.mxu0 0
        %891 = vmatpush1.bf16.msra.mxu0 0
        %892 = vmatprep.subr.bf16.mxu0 0
        %893 = vmatpush1.bf16.msra.mxu0 0
        %894 = vmatprep.subr.bf16.mxu0 0
        %895 = vmatpush1.bf16.msra.mxu0 0
        %896 = vmatprep.subr.bf16.mxu0 0
        %897 = vmatpush1.bf16.msra.mxu0 0
        %898 = vmatprep.subr.bf16.mxu0 0
        %899 = vmatpush1.bf16.msra.mxu0 0
        %900 = vmatprep.subr.bf16.mxu0 %v877
        %901 = vmatpush1.bf16.msra.mxu0 %v876
        %902 = vmatprep.subr.bf16.mxu0 %v875
        %903 = vmatpush1.bf16.msra.mxu0 %v874
        %904 = vmatprep.subr.bf16.mxu0 %v873
        %905 = vmatpush1.bf16.msra.mxu0 %v872
        %906 = vmatprep.subr.bf16.mxu0 0
        %907 = vmatpush2.bf16.msra.mxu0 0
        %908 = vmatprep.subr.bf16.mxu0 0
        %909 = vmatpush2.bf16.msra.mxu0 0
        %910 = vmatprep.subr.bf16.mxu0 0
        %911 = vmatpush2.bf16.msra.mxu0 0
        %912 = vmatprep.subr.bf16.mxu0 0
        %913 = vmatpush2.bf16.msra.mxu0 0
        %914 = vmatprep.subr.bf16.mxu0 0
        %915 = vmatpush2.bf16.msra.mxu0 0
        %916 = vmatprep.subr.bf16.mxu0 0
        %917 = vmatpush2.bf16.msra.mxu0 0
        %918 = vmatprep.subr.bf16.mxu0 0
        %919 = vmatpush2.bf16.msra.mxu0 0
        %920 = vmatprep.subr.bf16.mxu0 0
        %921 = vmatpush2.bf16.msra.mxu0 0
        %922 = vmatprep.mubr.bf16.mxu0 0
        %923 = vmatmul.mubr.bf16.gmra.mxu0 %v885
        %v924 = vpop.f32.mrf.mxu0
        %v925 = vadd.f32 0.0, %v924
        %v926 = vpop.f32.mrf.mxu0
        %v927 = vadd.f32 0.0, %v926
        %v928 = vpop.f32.mrf.mxu0
        %v929 = vadd.f32 0.0, %v928
        %v930 = vpop.f32.mrf.mxu0
        %v931 = vadd.f32 0.0, %v930
        %932 = vmatprep.mubr.bf16.mxu0 0
        %933 = vmatmul.mubr.bf16.gmra.mxu0 %v888
        %v934 = vpop.f32.mrf.mxu0
        %v935 = vadd.f32 0.0, %v934
        %v936 = vpop.f32.mrf.mxu0
        %v937 = vadd.f32 0.0, %v936
        %v938 = vpop.f32.mrf.mxu0
        %v939 = vadd.f32 0.0, %v938
        %v940 = vpop.f32.mrf.mxu0
        %v941 = vadd.f32 0.0, %v940
        %942 = vdwg.mxu0
        %v944 = vlaneseq
        %v945 = vshrl.u32 %v944, 7
        %v946 = vsub.s32 0, %v945
        %v947 = vrot.slane %v355, %v946
        %v948 = vlaneseq
        %v949 = vshrl.u32 %v948, 7
        %v950 = vsub.s32 1, %v949
        %v951 = vrot.slane %v355, %v950
        %v954 = vmul.f32 %v925, %v947
        %v955 = vmul.f32 %v927, %v951
        %v956 = vmul.f32 %v929, %v947
        %v957 = vmul.f32 %v931, %v951
        %v958 = vmul.f32 %v935, %v947
        %v959 = vmul.f32 %v937, %v951
        %v960 = vmul.f32 %v939, %v947
        %v961 = vmul.f32 %v941, %v951
        %v962 = vadd.f32 %v728, %v954
        %v963 = vadd.f32 %v730, %v955
        %v964 = vadd.f32 %v732, %v956
        %v965 = vadd.f32 %v734, %v957
        %v966 = vadd.f32 %v738, %v958
        %v967 = vadd.f32 %v740, %v959
        %v968 = vadd.f32 %v742, %v960
        %v969 = vadd.f32 %v744, %v961
        %v970 = vmax.f32 %v962, 0.0
        %v971 = vmax.f32 %v963, 0.0
        %v972 = vmax.f32 %v964, 0.0
        %v973 = vmax.f32 %v965, 0.0
        %v974 = vmax.f32 %v966, 0.0
        %v975 = vmax.f32 %v967, 0.0
        %v976 = vmax.f32 %v968, 0.0
        %v977 = vmax.f32 %v969, 0.0
        %v978 = vpack.c.bf16 %v972, %v970
        %v979 = vpack.c.bf16 %v973, %v971
        %v980 = vpack.c.bf16 %v976, %v974
        %v981 = vpack.c.bf16 %v977, %v975
        %v986 = vunpack.c.l.b16 %v978
        %v987 = vunpack.c.l.b16 %v979
        %v988 = vunpack.c.h.b16 %v978
        %v989 = vunpack.c.h.b16 %v979
        %v990 = vunpack.c.l.b16 %v980
        %v991 = vunpack.c.l.b16 %v981
        %v992 = vunpack.c.h.b16 %v980
        %v993 = vunpack.c.h.b16 %v981
        %v994 = vpack.c.b16 %v987, %v986
        %v995 = vpack.c.b16 %v989, %v988
        %v996 = vpack.c.b16 %v991, %v990
        %v997 = vpack.c.b16 %v993, %v992
        %1002 = vst [vmem:[#allocation2 + $0x24] sm:$0xff] %v994
        %1003 = vst [vmem:[#allocation2 + $0x34] sm:$0xff] %v995
        %1004 = vst [vmem:[#allocation2 + $0x44] sm:$0xff] %v996
        %1005 = vst [vmem:[#allocation2 + $0x54] sm:$0xff] %v997
        %v1006 = vld [vmem:[#allocation2] sm:$0xff]
        %v1007 = vld [vmem:[#allocation2 + $0x8] sm:$0xf]
        %v1008 = vld [vmem:[#allocation2 + $0x10] sm:$0xff]
        %v1009 = vld [vmem:[#allocation2 + $0x18] sm:$0xf]
        %v1010 = vld [vmem:[#allocation2 + $0x20] sm:$0xff]
        %v1011 = vld [vmem:[#allocation2 + $0x28] sm:$0xf]
        %v1012 = vld [vmem:[#allocation2 + $0x30] sm:$0xff]
        %v1013 = vld [vmem:[#allocation2 + $0x38] sm:$0xf]
        %v1014 = vld [vmem:[#allocation2 + $0x40] sm:$0xff]
        %v1015 = vld [vmem:[#allocation2 + $0x48] sm:$0xf]
        %v1016 = vld [vmem:[#allocation2 + $0x50] sm:$0xff]
        %v1017 = vld [vmem:[#allocation2 + $0x58] sm:$0xf]
        %1030 = vrot.lane.b32.xlu0 %v1006, 16
        %v1031 = vpop.permute.xlu0 %1030
        %1032 = vrot.lane.b32.xlu0 %v1007, 16
        %v1033 = vpop.permute.xlu0 %1032
        %1034 = vrot.lane.b32.xlu0 %v1008, 16
        %v1035 = vpop.permute.xlu0 %1034
        %1036 = vrot.lane.b32.xlu0 %v1009, 16
        %v1037 = vpop.permute.xlu0 %1036
        %1038 = vrot.lane.b32.xlu0 %v1010, 16
        %v1039 = vpop.permute.xlu0 %1038
        %1040 = vrot.lane.b32.xlu0 %v1011, 16
        %v1041 = vpop.permute.xlu0 %1040
        %1042 = vrot.lane.b32.xlu0 %v1012, 16
        %v1043 = vpop.permute.xlu0 %1042
        %1044 = vrot.lane.b32.xlu0 %v1013, 16
        %v1045 = vpop.permute.xlu0 %1044
        %1046 = vrot.lane.b32.xlu0 %v1014, 16
        %v1047 = vpop.permute.xlu0 %1046
        %1048 = vrot.lane.b32.xlu0 %v1015, 16
        %v1049 = vpop.permute.xlu0 %1048
        %1050 = vrot.lane.b32.xlu0 %v1016, 16
        %v1051 = vpop.permute.xlu0 %1050
        %1052 = vrot.lane.b32.xlu0 %v1017, 16
        %v1053 = vpop.permute.xlu0 %1052
        %v1054 = vrot.slane %v1031, 4
        %v1055 = vrot.slane %v1033, 4
        %v1056 = vrot.slane %v1035, 4
        %v1057 = vrot.slane %v1037, 4
        %v1058 = vrot.slane %v1039, 4
        %v1059 = vrot.slane %v1041, 4
        %v1060 = vrot.slane %v1043, 4
        %v1061 = vrot.slane %v1045, 4
        %v1062 = vrot.slane %v1047, 4
        %v1063 = vrot.slane %v1049, 4
        %v1064 = vrot.slane %v1051, 4
        %v1065 = vrot.slane %v1053, 4
        %v1066 = vsel %vm376, %v1054, %v1055
        %v1067 = vsel %vm378, %v1031, %v1066
        %v1068 = vsel %vm376, %v1056, %v1057
        %v1069 = vsel %vm378, %v1035, %v1068
        %v1070 = vsel %vm376, %v1058, %v1059
        %v1071 = vsel %vm378, %v1039, %v1070
        %v1072 = vsel %vm376, %v1060, %v1061
        %v1073 = vsel %vm378, %v1043, %v1072
        %v1074 = vsel %vm376, %v1062, %v1063
        %v1075 = vsel %vm378, %v1047, %v1074
        %v1076 = vsel %vm376, %v1064, %v1065
        %v1077 = vsel %vm378, %v1051, %v1076
        %1084 = vst [vmem:[%s457] sm:$0xff] %v1067
        %1085 = vst [vmem:[%s457 + $0x8] sm:$0xff] %v1069
        %1086 = vst [vmem:[%s457 + $0x10] sm:$0xff] %v1071
        %1087 = vst [vmem:[%s457 + $0x18] sm:$0xff] %v1073
        %1088 = vst [vmem:[%s457 + $0x20] sm:$0xff] %v1075
        %1089 = vst [vmem:[%s457 + $0x28] sm:$0xff] %v1077
        %v1090 = vld [vmem:[#allocation2 + $0x4] sm:$0xff]
        %v1091 = vld [vmem:[#allocation2 + $0x14] sm:$0xff]
        %v1092 = vld [vmem:[#allocation2 + $0x24] sm:$0xff]
        %v1093 = vld [vmem:[#allocation2 + $0x34] sm:$0xff]
        %v1094 = vld [vmem:[#allocation2 + $0x44] sm:$0xff]
        %v1095 = vld [vmem:[#allocation2 + $0x54] sm:$0xff]
        %1096 = vst [vmem:[%s457 + $0x30] sm:$0xff] %v1090
        %1097 = vst [vmem:[%s457 + $0x38] sm:$0xff] %v1091
        %1098 = vst [vmem:[%s457 + $0x40] sm:$0xff] %v1092
        %1099 = vst [vmem:[%s457 + $0x48] sm:$0xff] %v1093
        %1100 = vst [vmem:[%s457 + $0x50] sm:$0xff] %v1094
        %1101 = vst [vmem:[%s457 + $0x58] sm:$0xff] %v1095
        %v1102 = vld [vmem:[#allocation2 + $0x4] sm:$0xff]
        %v1103 = vld [vmem:[#allocation2 + $0xc] sm:$0xf]
        %v1104 = vld [vmem:[#allocation2 + $0x14] sm:$0xff]
        %v1105 = vld [vmem:[#allocation2 + $0x1c] sm:$0xf]
        %v1106 = vld [vmem:[#allocation2 + $0x24] sm:$0xff]
        %v1107 = vld [vmem:[#allocation2 + $0x2c] sm:$0xf]
        %v1108 = vld [vmem:[#allocation2 + $0x34] sm:$0xff]
        %v1109 = vld [vmem:[#allocation2 + $0x3c] sm:$0xf]
        %v1110 = vld [vmem:[#allocation2 + $0x44] sm:$0xff]
        %v1111 = vld [vmem:[#allocation2 + $0x4c] sm:$0xf]
        %v1112 = vld [vmem:[#allocation2 + $0x54] sm:$0xff]
        %v1113 = vld [vmem:[#allocation2 + $0x5c] sm:$0xf]
        %1126 = vrot.lane.b32.xlu0 %v1102, 112
        %v1127 = vpop.permute.xlu0 %1126
        %1128 = vrot.lane.b32.xlu0 %v1103, 112
        %v1129 = vpop.permute.xlu0 %1128
        %1130 = vrot.lane.b32.xlu0 %v1104, 112
        %v1131 = vpop.permute.xlu0 %1130
        %1132 = vrot.lane.b32.xlu0 %v1105, 112
        %v1133 = vpop.permute.xlu0 %1132
        %1134 = vrot.lane.b32.xlu0 %v1106, 112
        %v1135 = vpop.permute.xlu0 %1134
        %1136 = vrot.lane.b32.xlu0 %v1107, 112
        %v1137 = vpop.permute.xlu0 %1136
        %1138 = vrot.lane.b32.xlu0 %v1108, 112
        %v1139 = vpop.permute.xlu0 %1138
        %1140 = vrot.lane.b32.xlu0 %v1109, 112
        %v1141 = vpop.permute.xlu0 %1140
        %1142 = vrot.lane.b32.xlu0 %v1110, 112
        %v1143 = vpop.permute.xlu0 %1142
        %1144 = vrot.lane.b32.xlu0 %v1111, 112
        %v1145 = vpop.permute.xlu0 %1144
        %1146 = vrot.lane.b32.xlu0 %v1112, 112
        %v1147 = vpop.permute.xlu0 %1146
        %1148 = vrot.lane.b32.xlu0 %v1113, 112
        %v1149 = vpop.permute.xlu0 %1148
        %v1150 = vrot.slane %v1127, 4
        %v1151 = vrot.slane %v1129, 4
        %v1152 = vrot.slane %v1131, 4
        %v1153 = vrot.slane %v1133, 4
        %v1154 = vrot.slane %v1135, 4
        %v1155 = vrot.slane %v1137, 4
        %v1156 = vrot.slane %v1139, 4
        %v1157 = vrot.slane %v1141, 4
        %v1158 = vrot.slane %v1143, 4
        %v1159 = vrot.slane %v1145, 4
        %v1160 = vrot.slane %v1147, 4
        %v1161 = vrot.slane %v1149, 4
        %v1162 = vsel %vm376, %v1150, %v1151
        %v1163 = vsel %vm411, %v1127, %v1162
        %v1164 = vsel %vm376, %v1152, %v1153
        %v1165 = vsel %vm411, %v1131, %v1164
        %v1166 = vsel %vm376, %v1154, %v1155
        %v1167 = vsel %vm411, %v1135, %v1166
        %v1168 = vsel %vm376, %v1156, %v1157
        %v1169 = vsel %vm411, %v1139, %v1168
        %v1170 = vsel %vm376, %v1158, %v1159
        %v1171 = vsel %vm411, %v1143, %v1170
        %v1172 = vsel %vm376, %v1160, %v1161
        %v1173 = vsel %vm411, %v1147, %v1172
        %1180 = vst [vmem:[%s457 + $0x60] sm:$0xff] %v1163
        %1181 = vst [vmem:[%s457 + $0x68] sm:$0xff] %v1165
        %1182 = vst [vmem:[%s457 + $0x70] sm:$0xff] %v1167
        %1183 = vst [vmem:[%s457 + $0x78] sm:$0xff] %v1169
        %1184 = vst [vmem:[%s457 + $0x80] sm:$0xff] %v1171
        %1185 = vst [vmem:[%s457 + $0x88] sm:$0xff] %v1173
        %s1186 = scalar_lea.vmem [#allocation9], 32
        %v1187 = vld [vmem:[%s1186] sm:$0xff]
        %v1188 = vld [vmem:[%s1186 + $0x8] sm:$0xff]
        %v1189 = vld [vmem:[%s1186 + $0x10] sm:$0xff]
        %v1190 = vld [vmem:[%s1186 + $0x18] sm:$0xff]
        %v1191 = vld [vmem:[%s457] sm:$0xff]
        %v1192 = vld [vmem:[%s457 + $0x8] sm:$0xff]
        %v1193 = vld [vmem:[%s457 + $0x10] sm:$0xff]
        %v1194 = vld [vmem:[%s457 + $0x18] sm:$0xff]
        %v1195 = vld [vmem:[%s457 + $0x20] sm:$0xff]
        %v1196 = vld [vmem:[%s457 + $0x28] sm:$0xff]
        %v1197 = vld [vmem:[%s457 + $0x30] sm:$0xff]
        %v1198 = vld [vmem:[%s457 + $0x38] sm:$0xff]
        %v1199 = vld [vmem:[%s457 + $0x40] sm:$0xff]
        %v1200 = vld [vmem:[%s457 + $0x48] sm:$0xff]
        %v1201 = vld [vmem:[%s457 + $0x50] sm:$0xff]
        %v1202 = vld [vmem:[%s457 + $0x58] sm:$0xff]
        %v1203 = vld [vmem:[%s457 + $0x60] sm:$0xff]
        %v1204 = vld [vmem:[%s457 + $0x68] sm:$0xff]
        %v1205 = vld [vmem:[%s457 + $0x70] sm:$0xff]
        %v1206 = vld [vmem:[%s457 + $0x78] sm:$0xff]
        %v1207 = vld [vmem:[%s457 + $0x80] sm:$0xff]
        %v1208 = vld [vmem:[%s457 + $0x88] sm:$0xff]
        %v1209 = vld [vmem:[#allocation2] sm:$0xff]
        %v1210 = vld [vmem:[#allocation2 + $0x8] sm:$0xf]
        %v1211 = vld [vmem:[#allocation2 + $0x10] sm:$0xff]
        %v1212 = vld [vmem:[#allocation2 + $0x18] sm:$0xf]
        %v1213 = vld [vmem:[#allocation2 + $0x20] sm:$0xff]
        %v1214 = vld [vmem:[#allocation2 + $0x28] sm:$0xf]
        %v1215 = vld [vmem:[#allocation2 + $0x30] sm:$0xff]
        %v1216 = vld [vmem:[#allocation2 + $0x38] sm:$0xf]
        %v1217 = vld [vmem:[#allocation2 + $0x40] sm:$0xff]
        %v1218 = vld [vmem:[#allocation2 + $0x48] sm:$0xf]
        %v1219 = vld [vmem:[#allocation2 + $0x50] sm:$0xff]
        %v1220 = vld [vmem:[#allocation2 + $0x58] sm:$0xf]
        %1233 = vrot.lane.b32.xlu0 %v1209, 17
        %v1234 = vpop.permute.xlu0 %1233
        %1235 = vrot.lane.b32.xlu0 %v1210, 17
        %v1236 = vpop.permute.xlu0 %1235
        %1237 = vrot.lane.b32.xlu0 %v1211, 17
        %v1238 = vpop.permute.xlu0 %1237
        %1239 = vrot.lane.b32.xlu0 %v1212, 17
        %v1240 = vpop.permute.xlu0 %1239
        %1241 = vrot.lane.b32.xlu0 %v1213, 17
        %v1242 = vpop.permute.xlu0 %1241
        %1243 = vrot.lane.b32.xlu0 %v1214, 17
        %v1244 = vpop.permute.xlu0 %1243
        %1245 = vrot.lane.b32.xlu0 %v1215, 17
        %v1246 = vpop.permute.xlu0 %1245
        %1247 = vrot.lane.b32.xlu0 %v1216, 17
        %v1248 = vpop.permute.xlu0 %1247
        %1249 = vrot.lane.b32.xlu0 %v1217, 17
        %v1250 = vpop.permute.xlu0 %1249
        %1251 = vrot.lane.b32.xlu0 %v1218, 17
        %v1252 = vpop.permute.xlu0 %1251
        %1253 = vrot.lane.b32.xlu0 %v1219, 17
        %v1254 = vpop.permute.xlu0 %1253
        %1255 = vrot.lane.b32.xlu0 %v1220, 17
        %v1256 = vpop.permute.xlu0 %1255
        %v1257 = vrot.slane %v1234, 4
        %v1258 = vrot.slane %v1236, 4
        %v1259 = vrot.slane %v1238, 4
        %v1260 = vrot.slane %v1240, 4
        %v1261 = vrot.slane %v1242, 4
        %v1262 = vrot.slane %v1244, 4
        %v1263 = vrot.slane %v1246, 4
        %v1264 = vrot.slane %v1248, 4
        %v1265 = vrot.slane %v1250, 4
        %v1266 = vrot.slane %v1252, 4
        %v1267 = vrot.slane %v1254, 4
        %v1268 = vrot.slane %v1256, 4
        %v1269 = vsel %vm376, %v1257, %v1258
        %v1270 = vsel %vm451, %v1234, %v1269
        %v1271 = vsel %vm376, %v1259, %v1260
        %v1272 = vsel %vm451, %v1238, %v1271
        %v1273 = vsel %vm376, %v1261, %v1262
        %v1274 = vsel %vm451, %v1242, %v1273
        %v1275 = vsel %vm376, %v1263, %v1264
        %v1276 = vsel %vm451, %v1246, %v1275
        %v1277 = vsel %vm376, %v1265, %v1266
        %v1278 = vsel %vm451, %v1250, %v1277
        %v1279 = vsel %vm376, %v1267, %v1268
        %v1280 = vsel %vm451, %v1254, %v1279
        %1287 = vst [vmem:[#allocation3] sm:$0xff] %v1270
        %1288 = vst [vmem:[#allocation3 + $0x8] sm:$0xff] %v1272
        %1289 = vst [vmem:[#allocation3 + $0x10] sm:$0xff] %v1274
        %1290 = vst [vmem:[#allocation3 + $0x18] sm:$0xff] %v1276
        %1291 = vst [vmem:[#allocation3 + $0x20] sm:$0xff] %v1278
        %1292 = vst [vmem:[#allocation3 + $0x28] sm:$0xff] %v1280
        %v1293 = vld [vmem:[#allocation2] sm:$0xff]
        %v1294 = vld [vmem:[#allocation2 + $0x8] sm:$0xf]
        %v1295 = vld [vmem:[#allocation2 + $0x10] sm:$0xff]
        %v1296 = vld [vmem:[#allocation2 + $0x18] sm:$0xf]
        %v1297 = vld [vmem:[#allocation2 + $0x20] sm:$0xff]
        %v1298 = vld [vmem:[#allocation2 + $0x28] sm:$0xf]
        %v1299 = vld [vmem:[#allocation2 + $0x30] sm:$0xff]
        %v1300 = vld [vmem:[#allocation2 + $0x38] sm:$0xf]
        %v1301 = vld [vmem:[#allocation2 + $0x40] sm:$0xff]
        %v1302 = vld [vmem:[#allocation2 + $0x48] sm:$0xf]
        %v1303 = vld [vmem:[#allocation2 + $0x50] sm:$0xff]
        %v1304 = vld [vmem:[#allocation2 + $0x58] sm:$0xf]
        %1317 = vrot.lane.b32.xlu0 %v1293, 1
        %v1318 = vpop.permute.xlu0 %1317
        %1319 = vrot.lane.b32.xlu0 %v1294, 1
        %v1320 = vpop.permute.xlu0 %1319
        %1321 = vrot.lane.b32.xlu0 %v1295, 1
        %v1322 = vpop.permute.xlu0 %1321
        %1323 = vrot.lane.b32.xlu0 %v1296, 1
        %v1324 = vpop.permute.xlu0 %1323
        %1325 = vrot.lane.b32.xlu0 %v1297, 1
        %v1326 = vpop.permute.xlu0 %1325
        %1327 = vrot.lane.b32.xlu0 %v1298, 1
        %v1328 = vpop.permute.xlu0 %1327
        %1329 = vrot.lane.b32.xlu0 %v1299, 1
        %v1330 = vpop.permute.xlu0 %1329
        %1331 = vrot.lane.b32.xlu0 %v1300, 1
        %v1332 = vpop.permute.xlu0 %1331
        %1333 = vrot.lane.b32.xlu0 %v1301, 1
        %v1334 = vpop.permute.xlu0 %1333
        %1335 = vrot.lane.b32.xlu0 %v1302, 1
        %v1336 = vpop.permute.xlu0 %1335
        %1337 = vrot.lane.b32.xlu0 %v1303, 1
        %v1338 = vpop.permute.xlu0 %1337
        %1339 = vrot.lane.b32.xlu0 %v1304, 1
        %v1340 = vpop.permute.xlu0 %1339
        %v1341 = vrot.slane %v1318, 4
        %v1342 = vrot.slane %v1320, 4
        %v1343 = vrot.slane %v1322, 4
        %v1344 = vrot.slane %v1324, 4
        %v1345 = vrot.slane %v1326, 4
        %v1346 = vrot.slane %v1328, 4
        %v1347 = vrot.slane %v1330, 4
        %v1348 = vrot.slane %v1332, 4
        %v1349 = vrot.slane %v1334, 4
        %v1350 = vrot.slane %v1336, 4
        %v1351 = vrot.slane %v1338, 4
        %v1352 = vrot.slane %v1340, 4
        %v1353 = vsel %vm376, %v1341, %v1342
        %v1354 = vsel %vm481, %v1318, %v1353
        %v1355 = vsel %vm376, %v1343, %v1344
        %v1356 = vsel %vm481, %v1322, %v1355
        %v1357 = vsel %vm376, %v1345, %v1346
        %v1358 = vsel %vm481, %v1326, %v1357
        %v1359 = vsel %vm376, %v1347, %v1348
        %v1360 = vsel %vm481, %v1330, %v1359
        %v1361 = vsel %vm376, %v1349, %v1350
        %v1362 = vsel %vm481, %v1334, %v1361
        %v1363 = vsel %vm376, %v1351, %v1352
        %v1364 = vsel %vm481, %v1338, %v1363
        %1371 = vst [vmem:[#allocation3 + $0x30] sm:$0xff] %v1354
        %1372 = vst [vmem:[#allocation3 + $0x38] sm:$0xff] %v1356
        %1373 = vst [vmem:[#allocation3 + $0x40] sm:$0xff] %v1358
        %1374 = vst [vmem:[#allocation3 + $0x48] sm:$0xff] %v1360
        %1375 = vst [vmem:[#allocation3 + $0x50] sm:$0xff] %v1362
        %1376 = vst [vmem:[#allocation3 + $0x58] sm:$0xff] %v1364
        %v1377 = vld [vmem:[#allocation2 + $0x4] sm:$0xff]
        %v1378 = vld [vmem:[#allocation2 + $0xc] sm:$0xf]
        %v1379 = vld [vmem:[#allocation2 + $0x14] sm:$0xff]
        %v1380 = vld [vmem:[#allocation2 + $0x1c] sm:$0xf]
        %v1381 = vld [vmem:[#allocation2 + $0x24] sm:$0xff]
        %v1382 = vld [vmem:[#allocation2 + $0x2c] sm:$0xf]
        %v1383 = vld [vmem:[#allocation2 + $0x34] sm:$0xff]
        %v1384 = vld [vmem:[#allocation2 + $0x3c] sm:$0xf]
        %v1385 = vld [vmem:[#allocation2 + $0x44] sm:$0xff]
        %v1386 = vld [vmem:[#allocation2 + $0x4c] sm:$0xf]
        %v1387 = vld [vmem:[#allocation2 + $0x54] sm:$0xff]
        %v1388 = vld [vmem:[#allocation2 + $0x5c] sm:$0xf]
        %1401 = vrot.lane.b32.xlu0 %v1377, 113
        %v1402 = vpop.permute.xlu0 %1401
        %1403 = vrot.lane.b32.xlu0 %v1378, 113
        %v1404 = vpop.permute.xlu0 %1403
        %1405 = vrot.lane.b32.xlu0 %v1379, 113
        %v1406 = vpop.permute.xlu0 %1405
        %1407 = vrot.lane.b32.xlu0 %v1380, 113
        %v1408 = vpop.permute.xlu0 %1407
        %1409 = vrot.lane.b32.xlu0 %v1381, 113
        %v1410 = vpop.permute.xlu0 %1409
        %1411 = vrot.lane.b32.xlu0 %v1382, 113
        %v1412 = vpop.permute.xlu0 %1411
        %1413 = vrot.lane.b32.xlu0 %v1383, 113
        %v1414 = vpop.permute.xlu0 %1413
        %1415 = vrot.lane.b32.xlu0 %v1384, 113
        %v1416 = vpop.permute.xlu0 %1415
        %1417 = vrot.lane.b32.xlu0 %v1385, 113
        %v1418 = vpop.permute.xlu0 %1417
        %1419 = vrot.lane.b32.xlu0 %v1386, 113
        %v1420 = vpop.permute.xlu0 %1419
        %1421 = vrot.lane.b32.xlu0 %v1387, 113
        %v1422 = vpop.permute.xlu0 %1421
        %1423 = vrot.lane.b32.xlu0 %v1388, 113
        %v1424 = vpop.permute.xlu0 %1423
        %v1425 = vrot.slane %v1402, 4
        %v1426 = vrot.slane %v1404, 4
        %v1427 = vrot.slane %v1406, 4
        %v1428 = vrot.slane %v1408, 4
        %v1429 = vrot.slane %v1410, 4
        %v1430 = vrot.slane %v1412, 4
        %v1431 = vrot.slane %v1414, 4
        %v1432 = vrot.slane %v1416, 4
        %v1433 = vrot.slane %v1418, 4
        %v1434 = vrot.slane %v1420, 4
        %v1435 = vrot.slane %v1422, 4
        %v1436 = vrot.slane %v1424, 4
        %v1437 = vsel %vm376, %v1425, %v1426
        %v1438 = vsel %vm510, %v1402, %v1437
        %v1439 = vsel %vm376, %v1427, %v1428
        %v1440 = vsel %vm510, %v1406, %v1439
        %v1441 = vsel %vm376, %v1429, %v1430
        %v1442 = vsel %vm510, %v1410, %v1441
        %v1443 = vsel %vm376, %v1431, %v1432
        %v1444 = vsel %vm510, %v1414, %v1443
        %v1445 = vsel %vm376, %v1433, %v1434
        %v1446 = vsel %vm510, %v1418, %v1445
        %v1447 = vsel %vm376, %v1435, %v1436
        %v1448 = vsel %vm510, %v1422, %v1447
        %1455 = vst [vmem:[#allocation3 + $0x60] sm:$0xff] %v1438
        %1456 = vst [vmem:[#allocation3 + $0x68] sm:$0xff] %v1440
        %1457 = vst [vmem:[#allocation3 + $0x70] sm:$0xff] %v1442
        %1458 = vst [vmem:[#allocation3 + $0x78] sm:$0xff] %v1444
        %1459 = vst [vmem:[#allocation3 + $0x80] sm:$0xff] %v1446
        %1460 = vst [vmem:[#allocation3 + $0x88] sm:$0xff] %v1448
        %v1461 = vld [vmem:[#allocation9] sm:$0xff]
        %v1462 = vld [vmem:[#allocation9 + $0x8] sm:$0xff]
        %v1463 = vld [vmem:[#allocation9 + $0x10] sm:$0xff]
        %v1464 = vld [vmem:[#allocation9 + $0x18] sm:$0xff]
        %v1465 = vld [vmem:[#allocation3] sm:$0xff]
        %v1466 = vld [vmem:[#allocation3 + $0x8] sm:$0xff]
        %v1467 = vld [vmem:[#allocation3 + $0x10] sm:$0xff]
        %v1468 = vld [vmem:[#allocation3 + $0x18] sm:$0xff]
        %v1469 = vld [vmem:[#allocation3 + $0x20] sm:$0xff]
        %v1470 = vld [vmem:[#allocation3 + $0x28] sm:$0xff]
        %v1471 = vld [vmem:[#allocation3 + $0x30] sm:$0xff]
        %v1472 = vld [vmem:[#allocation3 + $0x38] sm:$0xff]
        %v1473 = vld [vmem:[#allocation3 + $0x40] sm:$0xff]
        %v1474 = vld [vmem:[#allocation3 + $0x48] sm:$0xff]
        %v1475 = vld [vmem:[#allocation3 + $0x50] sm:$0xff]
        %v1476 = vld [vmem:[#allocation3 + $0x58] sm:$0xff]
        %v1477 = vld [vmem:[#allocation3 + $0x60] sm:$0xff]
        %v1478 = vld [vmem:[#allocation3 + $0x68] sm:$0xff]
        %v1479 = vld [vmem:[#allocation3 + $0x70] sm:$0xff]
        %v1480 = vld [vmem:[#allocation3 + $0x78] sm:$0xff]
        %v1481 = vld [vmem:[#allocation3 + $0x80] sm:$0xff]
        %v1482 = vld [vmem:[#allocation3 + $0x88] sm:$0xff]
        %v1487 = vunpack.c.l.b16 %v1461
        %v1488 = vunpack.c.h.b16 %v1461
        %v1489 = vunpack.c.l.b16 %v1462
        %v1490 = vunpack.c.h.b16 %v1462
        %v1491 = vunpack.c.l.b16 %v1463
        %v1492 = vunpack.c.h.b16 %v1463
        %v1493 = vunpack.c.l.b16 %v1464
        %v1494 = vunpack.c.h.b16 %v1464
        %v1495 = vpack.c.b16 %v1489, %v1487
        %v1496 = vpack.c.b16 %v1490, %v1488
        %v1497 = vpack.c.b16 %v1493, %v1491
        %v1498 = vpack.c.b16 %v1494, %v1492
        %v1519 = vunpack.c.l.b16 %v1465
        %v1520 = vunpack.c.h.b16 %v1465
        %v1521 = vunpack.c.l.b16 %v1466
        %v1522 = vunpack.c.h.b16 %v1466
        %v1523 = vunpack.c.l.b16 %v1467
        %v1524 = vunpack.c.h.b16 %v1467
        %v1525 = vunpack.c.l.b16 %v1468
        %v1526 = vunpack.c.h.b16 %v1468
        %v1527 = vunpack.c.l.b16 %v1469
        %v1528 = vunpack.c.h.b16 %v1469
        %v1529 = vunpack.c.l.b16 %v1470
        %v1530 = vunpack.c.h.b16 %v1470
        %v1531 = vunpack.c.l.b16 %v1471
        %v1532 = vunpack.c.h.b16 %v1471
        %v1533 = vunpack.c.l.b16 %v1472
        %v1534 = vunpack.c.h.b16 %v1472
        %v1535 = vunpack.c.l.b16 %v1473
        %v1536 = vunpack.c.h.b16 %v1473
        %v1537 = vunpack.c.l.b16 %v1474
        %v1538 = vunpack.c.h.b16 %v1474
        %v1539 = vunpack.c.l.b16 %v1475
        %v1540 = vunpack.c.h.b16 %v1475
        %v1541 = vunpack.c.l.b16 %v1476
        %v1542 = vunpack.c.h.b16 %v1476
        %v1543 = vunpack.c.l.b16 %v1477
        %v1544 = vunpack.c.h.b16 %v1477
        %v1545 = vunpack.c.l.b16 %v1478
        %v1546 = vunpack.c.h.b16 %v1478
        %v1547 = vunpack.c.l.b16 %v1479
        %v1548 = vunpack.c.h.b16 %v1479
        %v1549 = vunpack.c.l.b16 %v1480
        %v1550 = vunpack.c.h.b16 %v1480
        %v1551 = vunpack.c.l.b16 %v1481
        %v1552 = vunpack.c.h.b16 %v1481
        %v1553 = vunpack.c.l.b16 %v1482
        %v1554 = vunpack.c.h.b16 %v1482
        %v1555 = vpack.c.b16 %v1521, %v1519
        %v1556 = vpack.c.b16 %v1522, %v1520
        %v1557 = vpack.c.b16 %v1525, %v1523
        %v1558 = vpack.c.b16 %v1526, %v1524
        %v1559 = vpack.c.b16 %v1529, %v1527
        %v1560 = vpack.c.b16 %v1530, %v1528
        %v1561 = vpack.c.b16 %v1533, %v1531
        %v1562 = vpack.c.b16 %v1534, %v1532
        %v1563 = vpack.c.b16 %v1537, %v1535
        %v1564 = vpack.c.b16 %v1538, %v1536
        %v1565 = vpack.c.b16 %v1541, %v1539
        %v1566 = vpack.c.b16 %v1542, %v1540
        %v1567 = vpack.c.b16 %v1545, %v1543
        %v1568 = vpack.c.b16 %v1546, %v1544
        %v1569 = vpack.c.b16 %v1549, %v1547
        %v1570 = vpack.c.b16 %v1550, %v1548
        %v1571 = vpack.c.b16 %v1553, %v1551
        %v1572 = vpack.c.b16 %v1554, %v1552
        %vm1591 = vcmask 130048
        %v1593 = vsel %vm1591, %v1496, 0
        %v1596 = vsel %vm1591, %v1498, 0
        %1598 = vmatprep.subr.bf16.mxu0 %v1570
        %1599 = vmatpush1.bf16.msra.mxu0 %v1569
        %1600 = vmatprep.subr.bf16.mxu0 %v1568
        %1601 = vmatpush1.bf16.msra.mxu0 %v1567
        %1602 = vmatprep.subr.bf16.mxu0 %v1566
        %1603 = vmatpush1.bf16.msra.mxu0 %v1565
        %1604 = vmatprep.subr.bf16.mxu0 %v1564
        %1605 = vmatpush1.bf16.msra.mxu0 %v1563
        %1606 = vmatprep.subr.bf16.mxu0 %v1562
        %1607 = vmatpush1.bf16.msra.mxu0 %v1561
        %1608 = vmatprep.subr.bf16.mxu0 %v1560
        %1609 = vmatpush1.bf16.msra.mxu0 %v1559
        %1610 = vmatprep.subr.bf16.mxu0 %v1558
        %1611 = vmatpush1.bf16.msra.mxu0 %v1557
        %1612 = vmatprep.subr.bf16.mxu0 %v1556
        %1613 = vmatpush1.bf16.msra.mxu0 %v1555
        %1614 = vmatprep.subr.bf16.mxu0 0
        %1615 = vmatpush2.bf16.msra.mxu0 0
        %1616 = vmatprep.subr.bf16.mxu0 0
        %1617 = vmatpush2.bf16.msra.mxu0 0
        %1618 = vmatprep.subr.bf16.mxu0 0
        %1619 = vmatpush2.bf16.msra.mxu0 0
        %1620 = vmatprep.subr.bf16.mxu0 0
        %1621 = vmatpush2.bf16.msra.mxu0 0
        %1622 = vmatprep.subr.bf16.mxu0 0
        %1623 = vmatpush2.bf16.msra.mxu0 0
        %1624 = vmatprep.subr.bf16.mxu0 0
        %1625 = vmatpush2.bf16.msra.mxu0 0
        %1626 = vmatprep.subr.bf16.mxu0 0
        %1627 = vmatpush2.bf16.msra.mxu0 0
        %1628 = vmatprep.subr.bf16.mxu0 %v1572
        %1629 = vmatpush2.bf16.msra.mxu0 %v1571
        %1630 = vmatprep.mubr.bf16.mxu0 %v1593
        %1631 = vmatmul.mubr.bf16.gmra.mxu0 %v1495
        %v1632 = vpop.f32.mrf.mxu0
        %v1633 = vadd.f32 0.0, %v1632
        %v1634 = vpop.f32.mrf.mxu0
        %v1635 = vadd.f32 0.0, %v1634
        %v1636 = vpop.f32.mrf.mxu0
        %v1637 = vadd.f32 0.0, %v1636
        %v1638 = vpop.f32.mrf.mxu0
        %v1639 = vadd.f32 0.0, %v1638
        %1640 = vmatprep.mubr.bf16.mxu0 %v1596
        %1641 = vmatmul.mubr.bf16.gmra.mxu0 %v1497
        %v1642 = vpop.f32.mrf.mxu0
        %v1643 = vadd.f32 0.0, %v1642
        %v1644 = vpop.f32.mrf.mxu0
        %v1645 = vadd.f32 0.0, %v1644
        %v1646 = vpop.f32.mrf.mxu0
        %v1647 = vadd.f32 0.0, %v1646
        %v1648 = vpop.f32.mrf.mxu0
        %v1649 = vadd.f32 0.0, %v1648
        %1650 = vdwg.mxu0
        %v1651 = vmul.f32 %v1633, %v632
        %v1652 = vmul.f32 %v1635, %v636
        %v1653 = vmul.f32 %v1637, %v632
        %v1654 = vmul.f32 %v1639, %v636
        %v1655 = vmul.f32 %v1643, %v632
        %v1656 = vmul.f32 %v1645, %v636
        %v1657 = vmul.f32 %v1647, %v632
        %v1658 = vmul.f32 %v1649, %v636
        %v1663 = vunpack.c.l.b16 %v1187
        %v1664 = vunpack.c.h.b16 %v1187
        %v1665 = vunpack.c.l.b16 %v1188
        %v1666 = vunpack.c.h.b16 %v1188
        %v1667 = vunpack.c.l.b16 %v1189
        %v1668 = vunpack.c.h.b16 %v1189
        %v1669 = vunpack.c.l.b16 %v1190
        %v1670 = vunpack.c.h.b16 %v1190
        %v1671 = vpack.c.b16 %v1665, %v1663
        %v1672 = vpack.c.b16 %v1666, %v1664
        %v1673 = vpack.c.b16 %v1669, %v1667
        %v1674 = vpack.c.b16 %v1670, %v1668
        %v1695 = vunpack.c.l.b16 %v1191
        %v1696 = vunpack.c.h.b16 %v1191
        %v1697 = vunpack.c.l.b16 %v1192
        %v1698 = vunpack.c.h.b16 %v1192
        %v1699 = vunpack.c.l.b16 %v1193
        %v1700 = vunpack.c.h.b16 %v1193
        %v1701 = vunpack.c.l.b16 %v1194
        %v1702 = vunpack.c.h.b16 %v1194
        %v1703 = vunpack.c.l.b16 %v1195
        %v1704 = vunpack.c.h.b16 %v1195
        %v1705 = vunpack.c.l.b16 %v1196
        %v1706 = vunpack.c.h.b16 %v1196
        %v1707 = vunpack.c.l.b16 %v1197
        %v1708 = vunpack.c.h.b16 %v1197
        %v1709 = vunpack.c.l.b16 %v1198
        %v1710 = vunpack.c.h.b16 %v1198
        %v1711 = vunpack.c.l.b16 %v1199
        %v1712 = vunpack.c.h.b16 %v1199
        %v1713 = vunpack.c.l.b16 %v1200
        %v1714 = vunpack.c.h.b16 %v1200
        %v1715 = vunpack.c.l.b16 %v1201
        %v1716 = vunpack.c.h.b16 %v1201
        %v1717 = vunpack.c.l.b16 %v1202
        %v1718 = vunpack.c.h.b16 %v1202
        %v1719 = vunpack.c.l.b16 %v1203
        %v1720 = vunpack.c.h.b16 %v1203
        %v1721 = vunpack.c.l.b16 %v1204
        %v1722 = vunpack.c.h.b16 %v1204
        %v1723 = vunpack.c.l.b16 %v1205
        %v1724 = vunpack.c.h.b16 %v1205
        %v1725 = vunpack.c.l.b16 %v1206
        %v1726 = vunpack.c.h.b16 %v1206
        %v1727 = vunpack.c.l.b16 %v1207
        %v1728 = vunpack.c.h.b16 %v1207
        %v1729 = vunpack.c.l.b16 %v1208
        %v1730 = vunpack.c.h.b16 %v1208
        %v1731 = vpack.c.b16 %v1697, %v1695
        %v1732 = vpack.c.b16 %v1698, %v1696
        %v1733 = vpack.c.b16 %v1701, %v1699
        %v1734 = vpack.c.b16 %v1702, %v1700
        %v1735 = vpack.c.b16 %v1705, %v1703
        %v1736 = vpack.c.b16 %v1706, %v1704
        %v1737 = vpack.c.b16 %v1709, %v1707
        %v1738 = vpack.c.b16 %v1710, %v1708
        %v1739 = vpack.c.b16 %v1713, %v1711
        %v1740 = vpack.c.b16 %v1714, %v1712
        %v1741 = vpack.c.b16 %v1717, %v1715
        %v1742 = vpack.c.b16 %v1718, %v1716
        %v1743 = vpack.c.b16 %v1721, %v1719
        %v1744 = vpack.c.b16 %v1722, %v1720
        %v1745 = vpack.c.b16 %v1725, %v1723
        %v1746 = vpack.c.b16 %v1726, %v1724
        %v1747 = vpack.c.b16 %v1729, %v1727
        %v1748 = vpack.c.b16 %v1730, %v1728
        %v1768 = vsel %vm1591, %v1672, 0
        %v1771 = vsel %vm1591, %v1674, 0
        %1773 = vmatprep.subr.bf16.mxu0 %v1746
        %1774 = vmatpush1.bf16.msra.mxu0 %v1745
        %1775 = vmatprep.subr.bf16.mxu0 %v1744
        %1776 = vmatpush1.bf16.msra.mxu0 %v1743
        %1777 = vmatprep.subr.bf16.mxu0 %v1742
        %1778 = vmatpush1.bf16.msra.mxu0 %v1741
        %1779 = vmatprep.subr.bf16.mxu0 %v1740
        %1780 = vmatpush1.bf16.msra.mxu0 %v1739
        %1781 = vmatprep.subr.bf16.mxu0 %v1738
        %1782 = vmatpush1.bf16.msra.mxu0 %v1737
        %1783 = vmatprep.subr.bf16.mxu0 %v1736
        %1784 = vmatpush1.bf16.msra.mxu0 %v1735
        %1785 = vmatprep.subr.bf16.mxu0 %v1734
        %1786 = vmatpush1.bf16.msra.mxu0 %v1733
        %1787 = vmatprep.subr.bf16.mxu0 %v1732
        %1788 = vmatpush1.bf16.msra.mxu0 %v1731
        %1789 = vmatprep.subr.bf16.mxu0 0
        %1790 = vmatpush2.bf16.msra.mxu0 0
        %1791 = vmatprep.subr.bf16.mxu0 0
        %1792 = vmatpush2.bf16.msra.mxu0 0
        %1793 = vmatprep.subr.bf16.mxu0 0
        %1794 = vmatpush2.bf16.msra.mxu0 0
        %1795 = vmatprep.subr.bf16.mxu0 0
        %1796 = vmatpush2.bf16.msra.mxu0 0
        %1797 = vmatprep.subr.bf16.mxu0 0
        %1798 = vmatpush2.bf16.msra.mxu0 0
        %1799 = vmatprep.subr.bf16.mxu0 0
        %1800 = vmatpush2.bf16.msra.mxu0 0
        %1801 = vmatprep.subr.bf16.mxu0 0
        %1802 = vmatpush2.bf16.msra.mxu0 0
        %1803 = vmatprep.subr.bf16.mxu0 %v1748
        %1804 = vmatpush2.bf16.msra.mxu0 %v1747
        %1805 = vmatprep.mubr.bf16.mxu0 %v1768
        %1806 = vmatmul.mubr.bf16.gmra.mxu0 %v1671
        %v1807 = vpop.f32.mrf.mxu0
        %v1808 = vadd.f32 %v1651, %v1807
        %v1809 = vpop.f32.mrf.mxu0
        %v1810 = vadd.f32 %v1652, %v1809
        %v1811 = vpop.f32.mrf.mxu0
        %v1812 = vadd.f32 %v1653, %v1811
        %v1813 = vpop.f32.mrf.mxu0
        %v1814 = vadd.f32 %v1654, %v1813
        %1815 = vmatprep.mubr.bf16.mxu0 %v1771
        %1816 = vmatmul.mubr.bf16.gmra.mxu0 %v1673
        %v1817 = vpop.f32.mrf.mxu0
        %v1818 = vadd.f32 %v1655, %v1817
        %v1819 = vpop.f32.mrf.mxu0
        %v1820 = vadd.f32 %v1656, %v1819
        %v1821 = vpop.f32.mrf.mxu0
        %v1822 = vadd.f32 %v1657, %v1821
        %v1823 = vpop.f32.mrf.mxu0
        %v1824 = vadd.f32 %v1658, %v1823
        %1825 = vdwg.mxu0
        %v1826 = vld [vmem:[#allocation2] sm:$0xff]
        %v1827 = vld [vmem:[#allocation2 + $0x8] sm:$0xf]
        %v1828 = vld [vmem:[#allocation2 + $0x10] sm:$0xff]
        %v1829 = vld [vmem:[#allocation2 + $0x18] sm:$0xf]
        %v1830 = vld [vmem:[#allocation2 + $0x20] sm:$0xff]
        %v1831 = vld [vmem:[#allocation2 + $0x28] sm:$0xf]
        %v1832 = vld [vmem:[#allocation2 + $0x30] sm:$0xff]
        %v1833 = vld [vmem:[#allocation2 + $0x38] sm:$0xf]
        %v1834 = vld [vmem:[#allocation2 + $0x40] sm:$0xff]
        %v1835 = vld [vmem:[#allocation2 + $0x48] sm:$0xf]
        %v1836 = vld [vmem:[#allocation2 + $0x50] sm:$0xff]
        %v1837 = vld [vmem:[#allocation2 + $0x58] sm:$0xf]
        %1850 = vrot.lane.b32.xlu0 %v1826, 15
        %v1851 = vpop.permute.xlu0 %1850
        %1852 = vrot.lane.b32.xlu0 %v1827, 15
        %v1853 = vpop.permute.xlu0 %1852
        %1854 = vrot.lane.b32.xlu0 %v1828, 15
        %v1855 = vpop.permute.xlu0 %1854
        %1856 = vrot.lane.b32.xlu0 %v1829, 15
        %v1857 = vpop.permute.xlu0 %1856
        %1858 = vrot.lane.b32.xlu0 %v1830, 15
        %v1859 = vpop.permute.xlu0 %1858
        %1860 = vrot.lane.b32.xlu0 %v1831, 15
        %v1861 = vpop.permute.xlu0 %1860
        %1862 = vrot.lane.b32.xlu0 %v1832, 15
        %v1863 = vpop.permute.xlu0 %1862
        %1864 = vrot.lane.b32.xlu0 %v1833, 15
        %v1865 = vpop.permute.xlu0 %1864
        %1866 = vrot.lane.b32.xlu0 %v1834, 15
        %v1867 = vpop.permute.xlu0 %1866
        %1868 = vrot.lane.b32.xlu0 %v1835, 15
        %v1869 = vpop.permute.xlu0 %1868
        %1870 = vrot.lane.b32.xlu0 %v1836, 15
        %v1871 = vpop.permute.xlu0 %1870
        %1872 = vrot.lane.b32.xlu0 %v1837, 15
        %v1873 = vpop.permute.xlu0 %1872
        %v1874 = vrot.slane %v1851, 4
        %v1875 = vrot.slane %v1853, 4
        %v1876 = vrot.slane %v1855, 4
        %v1877 = vrot.slane %v1857, 4
        %v1878 = vrot.slane %v1859, 4
        %v1879 = vrot.slane %v1861, 4
        %v1880 = vrot.slane %v1863, 4
        %v1881 = vrot.slane %v1865, 4
        %v1882 = vrot.slane %v1867, 4
        %v1883 = vrot.slane %v1869, 4
        %v1884 = vrot.slane %v1871, 4
        %v1885 = vrot.slane %v1873, 4
        %v1886 = vsel %vm376, %v1874, %v1875
        %v1887 = vsel %vm767, %v1851, %v1886
        %v1888 = vsel %vm376, %v1876, %v1877
        %v1889 = vsel %vm767, %v1855, %v1888
        %v1890 = vsel %vm376, %v1878, %v1879
        %v1891 = vsel %vm767, %v1859, %v1890
        %v1892 = vsel %vm376, %v1880, %v1881
        %v1893 = vsel %vm767, %v1863, %v1892
        %v1894 = vsel %vm376, %v1882, %v1883
        %v1895 = vsel %vm767, %v1867, %v1894
        %v1896 = vsel %vm376, %v1884, %v1885
        %v1897 = vsel %vm767, %v1871, %v1896
        %1904 = vst [vmem:[%s457] sm:$0xff] %v1887
        %1905 = vst [vmem:[%s457 + $0x8] sm:$0xff] %v1889
        %1906 = vst [vmem:[%s457 + $0x10] sm:$0xff] %v1891
        %1907 = vst [vmem:[%s457 + $0x18] sm:$0xff] %v1893
        %1908 = vst [vmem:[%s457 + $0x20] sm:$0xff] %v1895
        %1909 = vst [vmem:[%s457 + $0x28] sm:$0xff] %v1897
        %v1910 = vld [vmem:[#allocation2 + $0x4] sm:$0xff]
        %v1911 = vld [vmem:[#allocation2 + $0xc] sm:$0xf]
        %v1912 = vld [vmem:[#allocation2 + $0x14] sm:$0xff]
        %v1913 = vld [vmem:[#allocation2 + $0x1c] sm:$0xf]
        %v1914 = vld [vmem:[#allocation2 + $0x24] sm:$0xff]
        %v1915 = vld [vmem:[#allocation2 + $0x2c] sm:$0xf]
        %v1916 = vld [vmem:[#allocation2 + $0x34] sm:$0xff]
        %v1917 = vld [vmem:[#allocation2 + $0x3c] sm:$0xf]
        %v1918 = vld [vmem:[#allocation2 + $0x44] sm:$0xff]
        %v1919 = vld [vmem:[#allocation2 + $0x4c] sm:$0xf]
        %v1920 = vld [vmem:[#allocation2 + $0x54] sm:$0xff]
        %v1921 = vld [vmem:[#allocation2 + $0x5c] sm:$0xf]
        %1934 = vrot.lane.b32.xlu0 %v1910, 127
        %v1935 = vpop.permute.xlu0 %1934
        %1936 = vrot.lane.b32.xlu0 %v1911, 127
        %v1937 = vpop.permute.xlu0 %1936
        %1938 = vrot.lane.b32.xlu0 %v1912, 127
        %v1939 = vpop.permute.xlu0 %1938
        %1940 = vrot.lane.b32.xlu0 %v1913, 127
        %v1941 = vpop.permute.xlu0 %1940
        %1942 = vrot.lane.b32.xlu0 %v1914, 127
        %v1943 = vpop.permute.xlu0 %1942
        %1944 = vrot.lane.b32.xlu0 %v1915, 127
        %v1945 = vpop.permute.xlu0 %1944
        %1946 = vrot.lane.b32.xlu0 %v1916, 127
        %v1947 = vpop.permute.xlu0 %1946
        %1948 = vrot.lane.b32.xlu0 %v1917, 127
        %v1949 = vpop.permute.xlu0 %1948
        %1950 = vrot.lane.b32.xlu0 %v1918, 127
        %v1951 = vpop.permute.xlu0 %1950
        %1952 = vrot.lane.b32.xlu0 %v1919, 127
        %v1953 = vpop.permute.xlu0 %1952
        %1954 = vrot.lane.b32.xlu0 %v1920, 127
        %v1955 = vpop.permute.xlu0 %1954
        %1956 = vrot.lane.b32.xlu0 %v1921, 127
        %v1957 = vpop.permute.xlu0 %1956
        %v1958 = vrot.slane %v1935, 4
        %v1959 = vrot.slane %v1937, 4
        %v1960 = vrot.slane %v1939, 4
        %v1961 = vrot.slane %v1941, 4
        %v1962 = vrot.slane %v1943, 4
        %v1963 = vrot.slane %v1945, 4
        %v1964 = vrot.slane %v1947, 4
        %v1965 = vrot.slane %v1949, 4
        %v1966 = vrot.slane %v1951, 4
        %v1967 = vrot.slane %v1953, 4
        %v1968 = vrot.slane %v1955, 4
        %v1969 = vrot.slane %v1957, 4
        %v1970 = vsel %vm376, %v1958, %v1959
        %v1971 = vsel %vm796, %v1935, %v1970
        %v1972 = vsel %vm376, %v1960, %v1961
        %v1973 = vsel %vm796, %v1939, %v1972
        %v1974 = vsel %vm376, %v1962, %v1963
        %v1975 = vsel %vm796, %v1943, %v1974
        %v1976 = vsel %vm376, %v1964, %v1965
        %v1977 = vsel %vm796, %v1947, %v1976
        %v1978 = vsel %vm376, %v1966, %v1967
        %v1979 = vsel %vm796, %v1951, %v1978
        %v1980 = vsel %vm376, %v1968, %v1969
        %v1981 = vsel %vm796, %v1955, %v1980
        %1988 = vst [vmem:[%s457 + $0x30] sm:$0xff] %v1971
        %1989 = vst [vmem:[%s457 + $0x38] sm:$0xff] %v1973
        %1990 = vst [vmem:[%s457 + $0x40] sm:$0xff] %v1975
        %1991 = vst [vmem:[%s457 + $0x48] sm:$0xff] %v1977
        %1992 = vst [vmem:[%s457 + $0x50] sm:$0xff] %v1979
        %1993 = vst [vmem:[%s457 + $0x58] sm:$0xff] %v1981
        %v1994 = vld [vmem:[#allocation2 + $0x4] sm:$0xff]
        %v1995 = vld [vmem:[#allocation2 + $0xc] sm:$0xf]
        %v1996 = vld [vmem:[#allocation2 + $0x14] sm:$0xff]
        %v1997 = vld [vmem:[#allocation2 + $0x1c] sm:$0xf]
        %v1998 = vld [vmem:[#allocation2 + $0x24] sm:$0xff]
        %v1999 = vld [vmem:[#allocation2 + $0x2c] sm:$0xf]
        %v2000 = vld [vmem:[#allocation2 + $0x34] sm:$0xff]
        %v2001 = vld [vmem:[#allocation2 + $0x3c] sm:$0xf]
        %v2002 = vld [vmem:[#allocation2 + $0x44] sm:$0xff]
        %v2003 = vld [vmem:[#allocation2 + $0x4c] sm:$0xf]
        %v2004 = vld [vmem:[#allocation2 + $0x54] sm:$0xff]
        %v2005 = vld [vmem:[#allocation2 + $0x5c] sm:$0xf]
        %2018 = vrot.lane.b32.xlu0 %v1994, 111
        %v2019 = vpop.permute.xlu0 %2018
        %2020 = vrot.lane.b32.xlu0 %v1995, 111
        %v2021 = vpop.permute.xlu0 %2020
        %2022 = vrot.lane.b32.xlu0 %v1996, 111
        %v2023 = vpop.permute.xlu0 %2022
        %2024 = vrot.lane.b32.xlu0 %v1997, 111
        %v2025 = vpop.permute.xlu0 %2024
        %2026 = vrot.lane.b32.xlu0 %v1998, 111
        %v2027 = vpop.permute.xlu0 %2026
        %2028 = vrot.lane.b32.xlu0 %v1999, 111
        %v2029 = vpop.permute.xlu0 %2028
        %2030 = vrot.lane.b32.xlu0 %v2000, 111
        %v2031 = vpop.permute.xlu0 %2030
        %2032 = vrot.lane.b32.xlu0 %v2001, 111
        %v2033 = vpop.permute.xlu0 %2032
        %2034 = vrot.lane.b32.xlu0 %v2002, 111
        %v2035 = vpop.permute.xlu0 %2034
        %2036 = vrot.lane.b32.xlu0 %v2003, 111
        %v2037 = vpop.permute.xlu0 %2036
        %2038 = vrot.lane.b32.xlu0 %v2004, 111
        %v2039 = vpop.permute.xlu0 %2038
        %2040 = vrot.lane.b32.xlu0 %v2005, 111
        %v2041 = vpop.permute.xlu0 %2040
        %v2042 = vrot.slane %v2019, 4
        %v2043 = vrot.slane %v2021, 4
        %v2044 = vrot.slane %v2023, 4
        %v2045 = vrot.slane %v2025, 4
        %v2046 = vrot.slane %v2027, 4
        %v2047 = vrot.slane %v2029, 4
        %v2048 = vrot.slane %v2031, 4
        %v2049 = vrot.slane %v2033, 4
        %v2050 = vrot.slane %v2035, 4
        %v2051 = vrot.slane %v2037, 4
        %v2052 = vrot.slane %v2039, 4
        %v2053 = vrot.slane %v2041, 4
        %v2054 = vsel %vm376, %v2042, %v2043
        %v2055 = vsel %vm825, %v2019, %v2054
        %v2056 = vsel %vm376, %v2044, %v2045
        %v2057 = vsel %vm825, %v2023, %v2056
        %v2058 = vsel %vm376, %v2046, %v2047
        %v2059 = vsel %vm825, %v2027, %v2058
        %v2060 = vsel %vm376, %v2048, %v2049
        %v2061 = vsel %vm825, %v2031, %v2060
        %v2062 = vsel %vm376, %v2050, %v2051
        %v2063 = vsel %vm825, %v2035, %v2062
        %v2064 = vsel %vm376, %v2052, %v2053
        %v2065 = vsel %vm825, %v2039, %v2064
        %2072 = vst [vmem:[%s457 + $0x60] sm:$0xff] %v2055
        %2073 = vst [vmem:[%s457 + $0x68] sm:$0xff] %v2057
        %2074 = vst [vmem:[%s457 + $0x70] sm:$0xff] %v2059
        %2075 = vst [vmem:[%s457 + $0x78] sm:$0xff] %v2061
        %2076 = vst [vmem:[%s457 + $0x80] sm:$0xff] %v2063
        %2077 = vst [vmem:[%s457 + $0x88] sm:$0xff] %v2065
        %s2078 = scalar_lea.vmem [#allocation9], 64
        %v2079 = vld [vmem:[%s2078] sm:$0xff]
        %v2080 = vld [vmem:[%s2078 + $0x8] sm:$0xff]
        %v2081 = vld [vmem:[%s2078 + $0x10] sm:$0xff]
        %v2082 = vld [vmem:[%s2078 + $0x18] sm:$0xff]
        %v2083 = vld [vmem:[%s457] sm:$0xff]
        %v2084 = vld [vmem:[%s457 + $0x8] sm:$0xff]
        %v2085 = vld [vmem:[%s457 + $0x10] sm:$0xff]
        %v2086 = vld [vmem:[%s457 + $0x18] sm:$0xff]
        %v2087 = vld [vmem:[%s457 + $0x20] sm:$0xff]
        %v2088 = vld [vmem:[%s457 + $0x28] sm:$0xff]
        %v2089 = vld [vmem:[%s457 + $0x30] sm:$0xff]
        %v2090 = vld [vmem:[%s457 + $0x38] sm:$0xff]
        %v2091 = vld [vmem:[%s457 + $0x40] sm:$0xff]
        %v2092 = vld [vmem:[%s457 + $0x48] sm:$0xff]
        %v2093 = vld [vmem:[%s457 + $0x50] sm:$0xff]
        %v2094 = vld [vmem:[%s457 + $0x58] sm:$0xff]
        %v2095 = vld [vmem:[%s457 + $0x60] sm:$0xff]
        %v2096 = vld [vmem:[%s457 + $0x68] sm:$0xff]
        %v2097 = vld [vmem:[%s457 + $0x70] sm:$0xff]
        %v2098 = vld [vmem:[%s457 + $0x78] sm:$0xff]
        %v2099 = vld [vmem:[%s457 + $0x80] sm:$0xff]
        %v2100 = vld [vmem:[%s457 + $0x88] sm:$0xff]
        %v2105 = vunpack.c.l.b16 %v2079
        %v2106 = vunpack.c.h.b16 %v2079
        %v2107 = vunpack.c.l.b16 %v2080
        %v2108 = vunpack.c.h.b16 %v2080
        %v2109 = vunpack.c.l.b16 %v2081
        %v2110 = vunpack.c.h.b16 %v2081
        %v2111 = vunpack.c.l.b16 %v2082
        %v2112 = vunpack.c.h.b16 %v2082
        %v2113 = vpack.c.b16 %v2107, %v2105
        %v2114 = vpack.c.b16 %v2108, %v2106
        %v2115 = vpack.c.b16 %v2111, %v2109
        %v2116 = vpack.c.b16 %v2112, %v2110
        %v2137 = vunpack.c.l.b16 %v2083
        %v2138 = vunpack.c.h.b16 %v2083
        %v2139 = vunpack.c.l.b16 %v2084
        %v2140 = vunpack.c.h.b16 %v2084
        %v2141 = vunpack.c.l.b16 %v2085
        %v2142 = vunpack.c.h.b16 %v2085
        %v2143 = vunpack.c.l.b16 %v2086
        %v2144 = vunpack.c.h.b16 %v2086
        %v2145 = vunpack.c.l.b16 %v2087
        %v2146 = vunpack.c.h.b16 %v2087
        %v2147 = vunpack.c.l.b16 %v2088
        %v2148 = vunpack.c.h.b16 %v2088
        %v2149 = vunpack.c.l.b16 %v2089
        %v2150 = vunpack.c.h.b16 %v2089
        %v2151 = vunpack.c.l.b16 %v2090
        %v2152 = vunpack.c.h.b16 %v2090
        %v2153 = vunpack.c.l.b16 %v2091
        %v2154 = vunpack.c.h.b16 %v2091
        %v2155 = vunpack.c.l.b16 %v2092
        %v2156 = vunpack.c.h.b16 %v2092
        %v2157 = vunpack.c.l.b16 %v2093
        %v2158 = vunpack.c.h.b16 %v2093
        %v2159 = vunpack.c.l.b16 %v2094
        %v2160 = vunpack.c.h.b16 %v2094
        %v2161 = vunpack.c.l.b16 %v2095
        %v2162 = vunpack.c.h.b16 %v2095
        %v2163 = vunpack.c.l.b16 %v2096
        %v2164 = vunpack.c.h.b16 %v2096
        %v2165 = vunpack.c.l.b16 %v2097
        %v2166 = vunpack.c.h.b16 %v2097
        %v2167 = vunpack.c.l.b16 %v2098
        %v2168 = vunpack.c.h.b16 %v2098
        %v2169 = vunpack.c.l.b16 %v2099
        %v2170 = vunpack.c.h.b16 %v2099
        %v2171 = vunpack.c.l.b16 %v2100
        %v2172 = vunpack.c.h.b16 %v2100
        %v2173 = vpack.c.b16 %v2139, %v2137
        %v2174 = vpack.c.b16 %v2140, %v2138
        %v2175 = vpack.c.b16 %v2143, %v2141
        %v2176 = vpack.c.b16 %v2144, %v2142
        %v2177 = vpack.c.b16 %v2147, %v2145
        %v2178 = vpack.c.b16 %v2148, %v2146
        %v2179 = vpack.c.b16 %v2151, %v2149
        %v2180 = vpack.c.b16 %v2152, %v2150
        %v2181 = vpack.c.b16 %v2155, %v2153
        %v2182 = vpack.c.b16 %v2156, %v2154
        %v2183 = vpack.c.b16 %v2159, %v2157
        %v2184 = vpack.c.b16 %v2160, %v2158
        %v2185 = vpack.c.b16 %v2163, %v2161
        %v2186 = vpack.c.b16 %v2164, %v2162
        %v2187 = vpack.c.b16 %v2167, %v2165
        %v2188 = vpack.c.b16 %v2168, %v2166
        %v2189 = vpack.c.b16 %v2171, %v2169
        %v2190 = vpack.c.b16 %v2172, %v2170
        %v2210 = vsel %vm1591, %v2114, 0
        %v2213 = vsel %vm1591, %v2116, 0
        %2215 = vmatprep.subr.bf16.mxu0 %v2188
        %2216 = vmatpush1.bf16.msra.mxu0 %v2187
        %2217 = vmatprep.subr.bf16.mxu0 %v2186
        %2218 = vmatpush1.bf16.msra.mxu0 %v2185
        %2219 = vmatprep.subr.bf16.mxu0 %v2184
        %2220 = vmatpush1.bf16.msra.mxu0 %v2183
        %2221 = vmatprep.subr.bf16.mxu0 %v2182
        %2222 = vmatpush1.bf16.msra.mxu0 %v2181
        %2223 = vmatprep.subr.bf16.mxu0 %v2180
        %2224 = vmatpush1.bf16.msra.mxu0 %v2179
        %2225 = vmatprep.subr.bf16.mxu0 %v2178
        %2226 = vmatpush1.bf16.msra.mxu0 %v2177
        %2227 = vmatprep.subr.bf16.mxu0 %v2176
        %2228 = vmatpush1.bf16.msra.mxu0 %v2175
        %2229 = vmatprep.subr.bf16.mxu0 %v2174
        %2230 = vmatpush1.bf16.msra.mxu0 %v2173
        %2231 = vmatprep.subr.bf16.mxu0 0
        %2232 = vmatpush2.bf16.msra.mxu0 0
        %2233 = vmatprep.subr.bf16.mxu0 0
        %2234 = vmatpush2.bf16.msra.mxu0 0
        %2235 = vmatprep.subr.bf16.mxu0 0
        %2236 = vmatpush2.bf16.msra.mxu0 0
        %2237 = vmatprep.subr.bf16.mxu0 0
        %2238 = vmatpush2.bf16.msra.mxu0 0
        %2239 = vmatprep.subr.bf16.mxu0 0
        %2240 = vmatpush2.bf16.msra.mxu0 0
        %2241 = vmatprep.subr.bf16.mxu0 0
        %2242 = vmatpush2.bf16.msra.mxu0 0
        %2243 = vmatprep.subr.bf16.mxu0 0
        %2244 = vmatpush2.bf16.msra.mxu0 0
        %2245 = vmatprep.subr.bf16.mxu0 %v2190
        %2246 = vmatpush2.bf16.msra.mxu0 %v2189
        %2247 = vmatprep.mubr.bf16.mxu0 %v2210
        %2248 = vmatmul.mubr.bf16.gmra.mxu0 %v2113
        %v2249 = vpop.f32.mrf.mxu0
        %v2250 = vadd.f32 0.0, %v2249
        %v2251 = vpop.f32.mrf.mxu0
        %v2252 = vadd.f32 0.0, %v2251
        %v2253 = vpop.f32.mrf.mxu0
        %v2254 = vadd.f32 0.0, %v2253
        %v2255 = vpop.f32.mrf.mxu0
        %v2256 = vadd.f32 0.0, %v2255
        %2257 = vmatprep.mubr.bf16.mxu0 %v2213
        %2258 = vmatmul.mubr.bf16.gmra.mxu0 %v2115
        %v2259 = vpop.f32.mrf.mxu0
        %v2260 = vadd.f32 0.0, %v2259
        %v2261 = vpop.f32.mrf.mxu0
        %v2262 = vadd.f32 0.0, %v2261
        %v2263 = vpop.f32.mrf.mxu0
        %v2264 = vadd.f32 0.0, %v2263
        %v2265 = vpop.f32.mrf.mxu0
        %v2266 = vadd.f32 0.0, %v2265
        %2267 = vdwg.mxu0
        %v2268 = vmul.f32 %v2250, %v947
        %v2269 = vmul.f32 %v2252, %v951
        %v2270 = vmul.f32 %v2254, %v947
        %v2271 = vmul.f32 %v2256, %v951
        %v2272 = vmul.f32 %v2260, %v947
        %v2273 = vmul.f32 %v2262, %v951
        %v2274 = vmul.f32 %v2264, %v947
        %v2275 = vmul.f32 %v2266, %v951
        %v2276 = vadd.f32 %v1808, %v2268
        %v2277 = vadd.f32 %v1810, %v2269
        %v2278 = vadd.f32 %v1812, %v2270
        %v2279 = vadd.f32 %v1814, %v2271
        %v2280 = vadd.f32 %v1818, %v2272
        %v2281 = vadd.f32 %v1820, %v2273
        %v2282 = vadd.f32 %v1822, %v2274
        %v2283 = vadd.f32 %v1824, %v2275
        %v2284 = vmax.f32 %v2276, 0.0
        %v2285 = vmax.f32 %v2277, 0.0
        %v2286 = vmax.f32 %v2278, 0.0
        %v2287 = vmax.f32 %v2279, 0.0
        %v2288 = vmax.f32 %v2280, 0.0
        %v2289 = vmax.f32 %v2281, 0.0
        %v2290 = vmax.f32 %v2282, 0.0
        %v2291 = vmax.f32 %v2283, 0.0
        %v2292 = vpack.c.bf16 %v2286, %v2284
        %v2293 = vpack.c.bf16 %v2287, %v2285
        %v2294 = vpack.c.bf16 %v2290, %v2288
        %v2295 = vpack.c.bf16 %v2291, %v2289
        %v2300 = vunpack.c.l.b16 %v2292
        %v2301 = vunpack.c.l.b16 %v2293
        %v2302 = vunpack.c.h.b16 %v2292
        %v2303 = vunpack.c.h.b16 %v2293
        %v2304 = vunpack.c.l.b16 %v2294
        %v2305 = vunpack.c.l.b16 %v2295
        %v2306 = vunpack.c.h.b16 %v2294
        %v2307 = vunpack.c.h.b16 %v2295
        %v2308 = vpack.c.b16 %v2301, %v2300
        %v2309 = vpack.c.b16 %v2303, %v2302
        %v2310 = vpack.c.b16 %v2305, %v2304
        %v2311 = vpack.c.b16 %v2307, %v2306
        %2316 = vst [vmem:[#allocation2 + $0x64] sm:$0xff] %v2308
        %2317 = vst [vmem:[#allocation2 + $0x74] sm:$0xff] %v2309
        %2318 = vst [vmem:[#allocation2 + $0x84] sm:$0xff] %v2310
        %2319 = vst [vmem:[#allocation2 + $0x94] sm:$0xff] %v2311
        %v2320 = vld [vmem:[#allocation2] sm:$0xff]
        %v2321 = vld [vmem:[#allocation2 + $0x8] sm:$0xf]
        %v2322 = vld [vmem:[#allocation2 + $0x10] sm:$0xff]
        %v2323 = vld [vmem:[#allocation2 + $0x18] sm:$0xf]
        %v2324 = vld [vmem:[#allocation2 + $0x20] sm:$0xff]
        %v2325 = vld [vmem:[#allocation2 + $0x28] sm:$0xf]
        %v2326 = vld [vmem:[#allocation2 + $0x30] sm:$0xff]
        %v2327 = vld [vmem:[#allocation2 + $0x38] sm:$0xf]
        %v2328 = vld [vmem:[#allocation2 + $0x40] sm:$0xff]
        %v2329 = vld [vmem:[#allocation2 + $0x48] sm:$0xf]
        %v2330 = vld [vmem:[#allocation2 + $0x50] sm:$0xff]
        %v2331 = vld [vmem:[#allocation2 + $0x58] sm:$0xf]
        %v2332 = vld [vmem:[#allocation2 + $0x60] sm:$0xff]
        %v2333 = vld [vmem:[#allocation2 + $0x68] sm:$0xf]
        %v2334 = vld [vmem:[#allocation2 + $0x70] sm:$0xff]
        %v2335 = vld [vmem:[#allocation2 + $0x78] sm:$0xf]
        %v2336 = vld [vmem:[#allocation2 + $0x80] sm:$0xff]
        %v2337 = vld [vmem:[#allocation2 + $0x88] sm:$0xf]
        %v2338 = vld [vmem:[#allocation2 + $0x90] sm:$0xff]
        %v2339 = vld [vmem:[#allocation2 + $0x98] sm:$0xf]
        %2360 = vrot.lane.b32.xlu0 %v2320, 16
        %v2361 = vpop.permute.xlu0 %2360
        %2362 = vrot.lane.b32.xlu0 %v2321, 16
        %v2363 = vpop.permute.xlu0 %2362
        %2364 = vrot.lane.b32.xlu0 %v2322, 16
        %v2365 = vpop.permute.xlu0 %2364
        %2366 = vrot.lane.b32.xlu0 %v2323, 16
        %v2367 = vpop.permute.xlu0 %2366
        %2368 = vrot.lane.b32.xlu0 %v2324, 16
        %v2369 = vpop.permute.xlu0 %2368
        %2370 = vrot.lane.b32.xlu0 %v2325, 16
        %v2371 = vpop.permute.xlu0 %2370
        %2372 = vrot.lane.b32.xlu0 %v2326, 16
        %v2373 = vpop.permute.xlu0 %2372
        %2374 = vrot.lane.b32.xlu0 %v2327, 16
        %v2375 = vpop.permute.xlu0 %2374
        %2376 = vrot.lane.b32.xlu0 %v2328, 16
        %v2377 = vpop.permute.xlu0 %2376
        %2378 = vrot.lane.b32.xlu0 %v2329, 16
        %v2379 = vpop.permute.xlu0 %2378
        %2380 = vrot.lane.b32.xlu0 %v2330, 16
        %v2381 = vpop.permute.xlu0 %2380
        %2382 = vrot.lane.b32.xlu0 %v2331, 16
        %v2383 = vpop.permute.xlu0 %2382
        %2384 = vrot.lane.b32.xlu0 %v2332, 16
        %v2385 = vpop.permute.xlu0 %2384
        %2386 = vrot.lane.b32.xlu0 %v2333, 16
        %v2387 = vpop.permute.xlu0 %2386
        %2388 = vrot.lane.b32.xlu0 %v2334, 16
        %v2389 = vpop.permute.xlu0 %2388
        %2390 = vrot.lane.b32.xlu0 %v2335, 16
        %v2391 = vpop.permute.xlu0 %2390
        %2392 = vrot.lane.b32.xlu0 %v2336, 16
        %v2393 = vpop.permute.xlu0 %2392
        %2394 = vrot.lane.b32.xlu0 %v2337, 16
        %v2395 = vpop.permute.xlu0 %2394
        %2396 = vrot.lane.b32.xlu0 %v2338, 16
        %v2397 = vpop.permute.xlu0 %2396
        %2398 = vrot.lane.b32.xlu0 %v2339, 16
        %v2399 = vpop.permute.xlu0 %2398
        %v2400 = vrot.slane %v2361, 4
        %v2401 = vrot.slane %v2363, 4
        %v2402 = vrot.slane %v2365, 4
        %v2403 = vrot.slane %v2367, 4
        %v2404 = vrot.slane %v2369, 4
        %v2405 = vrot.slane %v2371, 4
        %v2406 = vrot.slane %v2373, 4
        %v2407 = vrot.slane %v2375, 4
        %v2408 = vrot.slane %v2377, 4
        %v2409 = vrot.slane %v2379, 4
        %v2410 = vrot.slane %v2381, 4
        %v2411 = vrot.slane %v2383, 4
        %v2412 = vrot.slane %v2385, 4
        %v2413 = vrot.slane %v2387, 4
        %v2414 = vrot.slane %v2389, 4
        %v2415 = vrot.slane %v2391, 4
        %v2416 = vrot.slane %v2393, 4
        %v2417 = vrot.slane %v2395, 4
        %v2418 = vrot.slane %v2397, 4
        %v2419 = vrot.slane %v2399, 4
        %v2420 = vsel %vm376, %v2400, %v2401
        %v2421 = vsel %vm378, %v2361, %v2420
        %v2422 = vsel %vm376, %v2402, %v2403
        %v2423 = vsel %vm378, %v2365, %v2422
        %v2424 = vsel %vm376, %v2404, %v2405
        %v2425 = vsel %vm378, %v2369, %v2424
        %v2426 = vsel %vm376, %v2406, %v2407
        %v2427 = vsel %vm378, %v2373, %v2426
        %v2428 = vsel %vm376, %v2408, %v2409
        %v2429 = vsel %vm378, %v2377, %v2428
        %v2430 = vsel %vm376, %v2410, %v2411
        %v2431 = vsel %vm378, %v2381, %v2430
        %v2432 = vsel %vm376, %v2412, %v2413
        %v2433 = vsel %vm378, %v2385, %v2432
        %v2434 = vsel %vm376, %v2414, %v2415
        %v2435 = vsel %vm378, %v2389, %v2434
        %v2436 = vsel %vm376, %v2416, %v2417
        %v2437 = vsel %vm378, %v2393, %v2436
        %v2438 = vsel %vm376, %v2418, %v2419
        %v2439 = vsel %vm378, %v2397, %v2438
        %2450 = vst [vmem:[#allocation3] sm:$0xff] %v2421
        %2451 = vst [vmem:[#allocation3 + $0x8] sm:$0xff] %v2423
        %2452 = vst [vmem:[#allocation3 + $0x10] sm:$0xff] %v2425
        %2453 = vst [vmem:[#allocation3 + $0x18] sm:$0xff] %v2427
        %2454 = vst [vmem:[#allocation3 + $0x20] sm:$0xff] %v2429
        %2455 = vst [vmem:[#allocation3 + $0x28] sm:$0xff] %v2431
        %2456 = vst [vmem:[#allocation3 + $0x30] sm:$0xff] %v2433
        %2457 = vst [vmem:[#allocation3 + $0x38] sm:$0xff] %v2435
        %2458 = vst [vmem:[#allocation3 + $0x40] sm:$0xff] %v2437
        %2459 = vst [vmem:[#allocation3 + $0x48] sm:$0xff] %v2439
        %v2460 = vld [vmem:[#allocation2 + $0x4] sm:$0xff]
        %v2461 = vld [vmem:[#allocation2 + $0x14] sm:$0xff]
        %v2462 = vld [vmem:[#allocation2 + $0x24] sm:$0xff]
        %v2463 = vld [vmem:[#allocation2 + $0x34] sm:$0xff]
        %v2464 = vld [vmem:[#allocation2 + $0x44] sm:$0xff]
        %v2465 = vld [vmem:[#allocation2 + $0x54] sm:$0xff]
        %v2466 = vld [vmem:[#allocation2 + $0x64] sm:$0xff]
        %v2467 = vld [vmem:[#allocation2 + $0x74] sm:$0xff]
        %v2468 = vld [vmem:[#allocation2 + $0x84] sm:$0xff]
        %v2469 = vld [vmem:[#allocation2 + $0x94] sm:$0xff]
        %2470 = vst [vmem:[#allocation3 + $0x50] sm:$0xff] %v2460
        %2471 = vst [vmem:[#allocation3 + $0x58] sm:$0xff] %v2461
        %2472 = vst [vmem:[#allocation3 + $0x60] sm:$0xff] %v2462
        %2473 = vst [vmem:[#allocation3 + $0x68] sm:$0xff] %v2463
        %2474 = vst [vmem:[#allocation3 + $0x70] sm:$0xff] %v2464
        %2475 = vst [vmem:[#allocation3 + $0x78] sm:$0xff] %v2465
        %2476 = vst [vmem:[#allocation3 + $0x80] sm:$0xff] %v2466
        %2477 = vst [vmem:[#allocation3 + $0x88] sm:$0xff] %v2467
        %2478 = vst [vmem:[#allocation3 + $0x90] sm:$0xff] %v2468
        %2479 = vst [vmem:[#allocation3 + $0x98] sm:$0xff] %v2469
        %v2480 = vld [vmem:[#allocation2 + $0x4] sm:$0xff]
        %v2481 = vld [vmem:[#allocation2 + $0xc] sm:$0xf]
        %v2482 = vld [vmem:[#allocation2 + $0x14] sm:$0xff]
        %v2483 = vld [vmem:[#allocation2 + $0x1c] sm:$0xf]
        %v2484 = vld [vmem:[#allocation2 + $0x24] sm:$0xff]
        %v2485 = vld [vmem:[#allocation2 + $0x2c] sm:$0xf]
        %v2486 = vld [vmem:[#allocation2 + $0x34] sm:$0xff]
        %v2487 = vld [vmem:[#allocation2 + $0x3c] sm:$0xf]
        %v2488 = vld [vmem:[#allocation2 + $0x44] sm:$0xff]
        %v2489 = vld [vmem:[#allocation2 + $0x4c] sm:$0xf]
        %v2490 = vld [vmem:[#allocation2 + $0x54] sm:$0xff]
        %v2491 = vld [vmem:[#allocation2 + $0x5c] sm:$0xf]
        %v2492 = vld [vmem:[#allocation2 + $0x64] sm:$0xff]
        %v2493 = vld [vmem:[#allocation2 + $0x6c] sm:$0xf]
        %v2494 = vld [vmem:[#allocation2 + $0x74] sm:$0xff]
        %v2495 = vld [vmem:[#allocation2 + $0x7c] sm:$0xf]
        %v2496 = vld [vmem:[#allocation2 + $0x84] sm:$0xff]
        %v2497 = vld [vmem:[#allocation2 + $0x8c] sm:$0xf]
        %v2498 = vld [vmem:[#allocation2 + $0x94] sm:$0xff]
        %v2499 = vld [vmem:[#allocation2 + $0x9c] sm:$0xf]
        %2520 = vrot.lane.b32.xlu0 %v2480, 112
        %v2521 = vpop.permute.xlu0 %2520
        %2522 = vrot.lane.b32.xlu0 %v2481, 112
        %v2523 = vpop.permute.xlu0 %2522
        %2524 = vrot.lane.b32.xlu0 %v2482, 112
        %v2525 = vpop.permute.xlu0 %2524
        %2526 = vrot.lane.b32.xlu0 %v2483, 112
        %v2527 = vpop.permute.xlu0 %2526
        %2528 = vrot.lane.b32.xlu0 %v2484, 112
        %v2529 = vpop.permute.xlu0 %2528
        %2530 = vrot.lane.b32.xlu0 %v2485, 112
        %v2531 = vpop.permute.xlu0 %2530
        %2532 = vrot.lane.b32.xlu0 %v2486, 112
        %v2533 = vpop.permute.xlu0 %2532
        %2534 = vrot.lane.b32.xlu0 %v2487, 112
        %v2535 = vpop.permute.xlu0 %2534
        %2536 = vrot.lane.b32.xlu0 %v2488, 112
        %v2537 = vpop.permute.xlu0 %2536
        %2538 = vrot.lane.b32.xlu0 %v2489, 112
        %v2539 = vpop.permute.xlu0 %2538
        %2540 = vrot.lane.b32.xlu0 %v2490, 112
        %v2541 = vpop.permute.xlu0 %2540
        %2542 = vrot.lane.b32.xlu0 %v2491, 112
        %v2543 = vpop.permute.xlu0 %2542
        %2544 = vrot.lane.b32.xlu0 %v2492, 112
        %v2545 = vpop.permute.xlu0 %2544
        %2546 = vrot.lane.b32.xlu0 %v2493, 112
        %v2547 = vpop.permute.xlu0 %2546
        %2548 = vrot.lane.b32.xlu0 %v2494, 112
        %v2549 = vpop.permute.xlu0 %2548
        %2550 = vrot.lane.b32.xlu0 %v2495, 112
        %v2551 = vpop.permute.xlu0 %2550
        %2552 = vrot.lane.b32.xlu0 %v2496, 112
        %v2553 = vpop.permute.xlu0 %2552
        %2554 = vrot.lane.b32.xlu0 %v2497, 112
        %v2555 = vpop.permute.xlu0 %2554
        %2556 = vrot.lane.b32.xlu0 %v2498, 112
        %v2557 = vpop.permute.xlu0 %2556
        %2558 = vrot.lane.b32.xlu0 %v2499, 112
        %v2559 = vpop.permute.xlu0 %2558
        %v2560 = vrot.slane %v2521, 4
        %v2561 = vrot.slane %v2523, 4
        %v2562 = vrot.slane %v2525, 4
        %v2563 = vrot.slane %v2527, 4
        %v2564 = vrot.slane %v2529, 4
        %v2565 = vrot.slane %v2531, 4
        %v2566 = vrot.slane %v2533, 4
        %v2567 = vrot.slane %v2535, 4
        %v2568 = vrot.slane %v2537, 4
        %v2569 = vrot.slane %v2539, 4
        %v2570 = vrot.slane %v2541, 4
        %v2571 = vrot.slane %v2543, 4
        %v2572 = vrot.slane %v2545, 4
        %v2573 = vrot.slane %v2547, 4
        %v2574 = vrot.slane %v2549, 4
        %v2575 = vrot.slane %v2551, 4
        %v2576 = vrot.slane %v2553, 4
        %v2577 = vrot.slane %v2555, 4
        %v2578 = vrot.slane %v2557, 4
        %v2579 = vrot.slane %v2559, 4
        %v2580 = vsel %vm376, %v2560, %v2561
        %v2581 = vsel %vm411, %v2521, %v2580
        %v2582 = vsel %vm376, %v2562, %v2563
        %v2583 = vsel %vm411, %v2525, %v2582
        %v2584 = vsel %vm376, %v2564, %v2565
        %v2585 = vsel %vm411, %v2529, %v2584
        %v2586 = vsel %vm376, %v2566, %v2567
        %v2587 = vsel %vm411, %v2533, %v2586
        %v2588 = vsel %vm376, %v2568, %v2569
        %v2589 = vsel %vm411, %v2537, %v2588
        %v2590 = vsel %vm376, %v2570, %v2571
        %v2591 = vsel %vm411, %v2541, %v2590
        %v2592 = vsel %vm376, %v2572, %v2573
        %v2593 = vsel %vm411, %v2545, %v2592
        %v2594 = vsel %vm376, %v2574, %v2575
        %v2595 = vsel %vm411, %v2549, %v2594
        %v2596 = vsel %vm376, %v2576, %v2577
        %v2597 = vsel %vm411, %v2553, %v2596
        %v2598 = vsel %vm376, %v2578, %v2579
        %v2599 = vsel %vm411, %v2557, %v2598
        %2610 = vst [vmem:[#allocation3 + $0xa0] sm:$0xff] %v2581
        %2611 = vst [vmem:[#allocation3 + $0xa8] sm:$0xff] %v2583
        %2612 = vst [vmem:[#allocation3 + $0xb0] sm:$0xff] %v2585
        %2613 = vst [vmem:[#allocation3 + $0xb8] sm:$0xff] %v2587
        %2614 = vst [vmem:[#allocation3 + $0xc0] sm:$0xff] %v2589
        %2615 = vst [vmem:[#allocation3 + $0xc8] sm:$0xff] %v2591
        %2616 = vst [vmem:[#allocation3 + $0xd0] sm:$0xff] %v2593
        %2617 = vst [vmem:[#allocation3 + $0xd8] sm:$0xff] %v2595
        %2618 = vst [vmem:[#allocation3 + $0xe0] sm:$0xff] %v2597
        %2619 = vst [vmem:[#allocation3 + $0xe8] sm:$0xff] %v2599
        %s2620 = scalar_lea.vmem [#allocation10], 32
        %v2621 = vld [vmem:[%s2620] sm:$0xff]
        %v2622 = vld [vmem:[%s2620 + $0x8] sm:$0xff]
        %v2623 = vld [vmem:[%s2620 + $0x10] sm:$0xff]
        %v2624 = vld [vmem:[%s2620 + $0x18] sm:$0xff]
        %v2625 = vld [vmem:[#allocation3] sm:$0xff]
        %v2626 = vld [vmem:[#allocation3 + $0x8] sm:$0xff]
        %v2627 = vld [vmem:[#allocation3 + $0x10] sm:$0xff]
        %v2628 = vld [vmem:[#allocation3 + $0x18] sm:$0xff]
        %v2629 = vld [vmem:[#allocation3 + $0x20] sm:$0xff]
        %v2630 = vld [vmem:[#allocation3 + $0x28] sm:$0xff]
        %v2631 = vld [vmem:[#allocation3 + $0x30] sm:$0xff]
        %v2632 = vld [vmem:[#allocation3 + $0x38] sm:$0xff]
        %v2633 = vld [vmem:[#allocation3 + $0x40] sm:$0xff]
        %v2634 = vld [vmem:[#allocation3 + $0x48] sm:$0xff]
        %v2635 = vld [vmem:[#allocation3 + $0x50] sm:$0xff]
        %v2636 = vld [vmem:[#allocation3 + $0x58] sm:$0xff]
        %v2637 = vld [vmem:[#allocation3 + $0x60] sm:$0xff]
        %v2638 = vld [vmem:[#allocation3 + $0x68] sm:$0xff]
        %v2639 = vld [vmem:[#allocation3 + $0x70] sm:$0xff]
        %v2640 = vld [vmem:[#allocation3 + $0x78] sm:$0xff]
        %v2641 = vld [vmem:[#allocation3 + $0x80] sm:$0xff]
        %v2642 = vld [vmem:[#allocation3 + $0x88] sm:$0xff]
        %v2643 = vld [vmem:[#allocation3 + $0x90] sm:$0xff]
        %v2644 = vld [vmem:[#allocation3 + $0x98] sm:$0xff]
        %v2645 = vld [vmem:[#allocation3 + $0xa0] sm:$0xff]
        %v2646 = vld [vmem:[#allocation3 + $0xa8] sm:$0xff]
        %v2647 = vld [vmem:[#allocation3 + $0xb0] sm:$0xff]
        %v2648 = vld [vmem:[#allocation3 + $0xb8] sm:$0xff]
        %v2649 = vld [vmem:[#allocation3 + $0xc0] sm:$0xff]
        %v2650 = vld [vmem:[#allocation3 + $0xc8] sm:$0xff]
        %v2651 = vld [vmem:[#allocation3 + $0xd0] sm:$0xff]
        %v2652 = vld [vmem:[#allocation3 + $0xd8] sm:$0xff]
        %v2653 = vld [vmem:[#allocation3 + $0xe0] sm:$0xff]
        %v2654 = vld [vmem:[#allocation3 + $0xe8] sm:$0xff]
        %v2655 = vld [vmem:[#allocation2] sm:$0xff]
        %v2656 = vld [vmem:[#allocation2 + $0x8] sm:$0xf]
        %v2657 = vld [vmem:[#allocation2 + $0x10] sm:$0xff]
        %v2658 = vld [vmem:[#allocation2 + $0x18] sm:$0xf]
        %v2659 = vld [vmem:[#allocation2 + $0x20] sm:$0xff]
        %v2660 = vld [vmem:[#allocation2 + $0x28] sm:$0xf]
        %v2661 = vld [vmem:[#allocation2 + $0x30] sm:$0xff]
        %v2662 = vld [vmem:[#allocation2 + $0x38] sm:$0xf]
        %v2663 = vld [vmem:[#allocation2 + $0x40] sm:$0xff]
        %v2664 = vld [vmem:[#allocation2 + $0x48] sm:$0xf]
        %v2665 = vld [vmem:[#allocation2 + $0x50] sm:$0xff]
        %v2666 = vld [vmem:[#allocation2 + $0x58] sm:$0xf]
        %v2667 = vld [vmem:[#allocation2 + $0x60] sm:$0xff]
        %v2668 = vld [vmem:[#allocation2 + $0x68] sm:$0xf]
        %v2669 = vld [vmem:[#allocation2 + $0x70] sm:$0xff]
        %v2670 = vld [vmem:[#allocation2 + $0x78] sm:$0xf]
        %v2671 = vld [vmem:[#allocation2 + $0x80] sm:$0xff]
        %v2672 = vld [vmem:[#allocation2 + $0x88] sm:$0xf]
        %v2673 = vld [vmem:[#allocation2 + $0x90] sm:$0xff]
        %v2674 = vld [vmem:[#allocation2 + $0x98] sm:$0xf]
        %2695 = vrot.lane.b32.xlu0 %v2655, 17
        %v2696 = vpop.permute.xlu0 %2695
        %2697 = vrot.lane.b32.xlu0 %v2656, 17
        %v2698 = vpop.permute.xlu0 %2697
        %2699 = vrot.lane.b32.xlu0 %v2657, 17
        %v2700 = vpop.permute.xlu0 %2699
        %2701 = vrot.lane.b32.xlu0 %v2658, 17
        %v2702 = vpop.permute.xlu0 %2701
        %2703 = vrot.lane.b32.xlu0 %v2659, 17
        %v2704 = vpop.permute.xlu0 %2703
        %2705 = vrot.lane.b32.xlu0 %v2660, 17
        %v2706 = vpop.permute.xlu0 %2705
        %2707 = vrot.lane.b32.xlu0 %v2661, 17
        %v2708 = vpop.permute.xlu0 %2707
        %2709 = vrot.lane.b32.xlu0 %v2662, 17
        %v2710 = vpop.permute.xlu0 %2709
        %2711 = vrot.lane.b32.xlu0 %v2663, 17
        %v2712 = vpop.permute.xlu0 %2711
        %2713 = vrot.lane.b32.xlu0 %v2664, 17
        %v2714 = vpop.permute.xlu0 %2713
        %2715 = vrot.lane.b32.xlu0 %v2665, 17
        %v2716 = vpop.permute.xlu0 %2715
        %2717 = vrot.lane.b32.xlu0 %v2666, 17
        %v2718 = vpop.permute.xlu0 %2717
        %2719 = vrot.lane.b32.xlu0 %v2667, 17
        %v2720 = vpop.permute.xlu0 %2719
        %2721 = vrot.lane.b32.xlu0 %v2668, 17
        %v2722 = vpop.permute.xlu0 %2721
        %2723 = vrot.lane.b32.xlu0 %v2669, 17
        %v2724 = vpop.permute.xlu0 %2723
        %2725 = vrot.lane.b32.xlu0 %v2670, 17
        %v2726 = vpop.permute.xlu0 %2725
        %2727 = vrot.lane.b32.xlu0 %v2671, 17
        %v2728 = vpop.permute.xlu0 %2727
        %2729 = vrot.lane.b32.xlu0 %v2672, 17
        %v2730 = vpop.permute.xlu0 %2729
        %2731 = vrot.lane.b32.xlu0 %v2673, 17
        %v2732 = vpop.permute.xlu0 %2731
        %2733 = vrot.lane.b32.xlu0 %v2674, 17
        %v2734 = vpop.permute.xlu0 %2733
        %v2735 = vrot.slane %v2696, 4
        %v2736 = vrot.slane %v2698, 4
        %v2737 = vrot.slane %v2700, 4
        %v2738 = vrot.slane %v2702, 4
        %v2739 = vrot.slane %v2704, 4
        %v2740 = vrot.slane %v2706, 4
        %v2741 = vrot.slane %v2708, 4
        %v2742 = vrot.slane %v2710, 4
        %v2743 = vrot.slane %v2712, 4
        %v2744 = vrot.slane %v2714, 4
        %v2745 = vrot.slane %v2716, 4
        %v2746 = vrot.slane %v2718, 4
        %v2747 = vrot.slane %v2720, 4
        %v2748 = vrot.slane %v2722, 4
        %v2749 = vrot.slane %v2724, 4
        %v2750 = vrot.slane %v2726, 4
        %v2751 = vrot.slane %v2728, 4
        %v2752 = vrot.slane %v2730, 4
        %v2753 = vrot.slane %v2732, 4
        %v2754 = vrot.slane %v2734, 4
        %v2755 = vsel %vm376, %v2735, %v2736
        %v2756 = vsel %vm451, %v2696, %v2755
        %v2757 = vsel %vm376, %v2737, %v2738
        %v2758 = vsel %vm451, %v2700, %v2757
        %v2759 = vsel %vm376, %v2739, %v2740
        %v2760 = vsel %vm451, %v2704, %v2759
        %v2761 = vsel %vm376, %v2741, %v2742
        %v2762 = vsel %vm451, %v2708, %v2761
        %v2763 = vsel %vm376, %v2743, %v2744
        %v2764 = vsel %vm451, %v2712, %v2763
        %v2765 = vsel %vm376, %v2745, %v2746
        %v2766 = vsel %vm451, %v2716, %v2765
        %v2767 = vsel %vm376, %v2747, %v2748
        %v2768 = vsel %vm451, %v2720, %v2767
        %v2769 = vsel %vm376, %v2749, %v2750
        %v2770 = vsel %vm451, %v2724, %v2769
        %v2771 = vsel %vm376, %v2751, %v2752
        %v2772 = vsel %vm451, %v2728, %v2771
        %v2773 = vsel %vm376, %v2753, %v2754
        %v2774 = vsel %vm451, %v2732, %v2773
        %2785 = vst [vmem:[%s457] sm:$0xff] %v2756
        %2786 = vst [vmem:[%s457 + $0x8] sm:$0xff] %v2758
        %2787 = vst [vmem:[%s457 + $0x10] sm:$0xff] %v2760
        %2788 = vst [vmem:[%s457 + $0x18] sm:$0xff] %v2762
        %2789 = vst [vmem:[%s457 + $0x20] sm:$0xff] %v2764
        %2790 = vst [vmem:[%s457 + $0x28] sm:$0xff] %v2766
        %2791 = vst [vmem:[%s457 + $0x30] sm:$0xff] %v2768
        %2792 = vst [vmem:[%s457 + $0x38] sm:$0xff] %v2770
        %2793 = vst [vmem:[%s457 + $0x40] sm:$0xff] %v2772
        %2794 = vst [vmem:[%s457 + $0x48] sm:$0xff] %v2774
        %v2795 = vld [vmem:[#allocation2] sm:$0xff]
        %v2796 = vld [vmem:[#allocation2 + $0x8] sm:$0xf]
        %v2797 = vld [vmem:[#allocation2 + $0x10] sm:$0xff]
        %v2798 = vld [vmem:[#allocation2 + $0x18] sm:$0xf]
        %v2799 = vld [vmem:[#allocation2 + $0x20] sm:$0xff]
        %v2800 = vld [vmem:[#allocation2 + $0x28] sm:$0xf]
        %v2801 = vld [vmem:[#allocation2 + $0x30] sm:$0xff]
        %v2802 = vld [vmem:[#allocation2 + $0x38] sm:$0xf]
        %v2803 = vld [vmem:[#allocation2 + $0x40] sm:$0xff]
        %v2804 = vld [vmem:[#allocation2 + $0x48] sm:$0xf]
        %v2805 = vld [vmem:[#allocation2 + $0x50] sm:$0xff]
        %v2806 = vld [vmem:[#allocation2 + $0x58] sm:$0xf]
        %v2807 = vld [vmem:[#allocation2 + $0x60] sm:$0xff]
        %v2808 = vld [vmem:[#allocation2 + $0x68] sm:$0xf]
        %v2809 = vld [vmem:[#allocation2 + $0x70] sm:$0xff]
        %v2810 = vld [vmem:[#allocation2 + $0x78] sm:$0xf]
        %v2811 = vld [vmem:[#allocation2 + $0x80] sm:$0xff]
        %v2812 = vld [vmem:[#allocation2 + $0x88] sm:$0xf]
        %v2813 = vld [vmem:[#allocation2 + $0x90] sm:$0xff]
        %v2814 = vld [vmem:[#allocation2 + $0x98] sm:$0xf]
        %2835 = vrot.lane.b32.xlu0 %v2795, 1
        %v2836 = vpop.permute.xlu0 %2835
        %2837 = vrot.lane.b32.xlu0 %v2796, 1
        %v2838 = vpop.permute.xlu0 %2837
        %2839 = vrot.lane.b32.xlu0 %v2797, 1
        %v2840 = vpop.permute.xlu0 %2839
        %2841 = vrot.lane.b32.xlu0 %v2798, 1
        %v2842 = vpop.permute.xlu0 %2841
        %2843 = vrot.lane.b32.xlu0 %v2799, 1
        %v2844 = vpop.permute.xlu0 %2843
        %2845 = vrot.lane.b32.xlu0 %v2800, 1
        %v2846 = vpop.permute.xlu0 %2845
        %2847 = vrot.lane.b32.xlu0 %v2801, 1
        %v2848 = vpop.permute.xlu0 %2847
        %2849 = vrot.lane.b32.xlu0 %v2802, 1
        %v2850 = vpop.permute.xlu0 %2849
        %2851 = vrot.lane.b32.xlu0 %v2803, 1
        %v2852 = vpop.permute.xlu0 %2851
        %2853 = vrot.lane.b32.xlu0 %v2804, 1
        %v2854 = vpop.permute.xlu0 %2853
        %2855 = vrot.lane.b32.xlu0 %v2805, 1
        %v2856 = vpop.permute.xlu0 %2855
        %2857 = vrot.lane.b32.xlu0 %v2806, 1
        %v2858 = vpop.permute.xlu0 %2857
        %2859 = vrot.lane.b32.xlu0 %v2807, 1
        %v2860 = vpop.permute.xlu0 %2859
        %2861 = vrot.lane.b32.xlu0 %v2808, 1
        %v2862 = vpop.permute.xlu0 %2861
        %2863 = vrot.lane.b32.xlu0 %v2809, 1
        %v2864 = vpop.permute.xlu0 %2863
        %2865 = vrot.lane.b32.xlu0 %v2810, 1
        %v2866 = vpop.permute.xlu0 %2865
        %2867 = vrot.lane.b32.xlu0 %v2811, 1
        %v2868 = vpop.permute.xlu0 %2867
        %2869 = vrot.lane.b32.xlu0 %v2812, 1
        %v2870 = vpop.permute.xlu0 %2869
        %2871 = vrot.lane.b32.xlu0 %v2813, 1
        %v2872 = vpop.permute.xlu0 %2871
        %2873 = vrot.lane.b32.xlu0 %v2814, 1
        %v2874 = vpop.permute.xlu0 %2873
        %v2875 = vrot.slane %v2836, 4
        %v2876 = vrot.slane %v2838, 4
        %v2877 = vrot.slane %v2840, 4
        %v2878 = vrot.slane %v2842, 4
        %v2879 = vrot.slane %v2844, 4
        %v2880 = vrot.slane %v2846, 4
        %v2881 = vrot.slane %v2848, 4
        %v2882 = vrot.slane %v2850, 4
        %v2883 = vrot.slane %v2852, 4
        %v2884 = vrot.slane %v2854, 4
        %v2885 = vrot.slane %v2856, 4
        %v2886 = vrot.slane %v2858, 4
        %v2887 = vrot.slane %v2860, 4
        %v2888 = vrot.slane %v2862, 4
        %v2889 = vrot.slane %v2864, 4
        %v2890 = vrot.slane %v2866, 4
        %v2891 = vrot.slane %v2868, 4
        %v2892 = vrot.slane %v2870, 4
        %v2893 = vrot.slane %v2872, 4
        %v2894 = vrot.slane %v2874, 4
        %v2895 = vsel %vm376, %v2875, %v2876
        %v2896 = vsel %vm481, %v2836, %v2895
        %v2897 = vsel %vm376, %v2877, %v2878
        %v2898 = vsel %vm481, %v2840, %v2897
        %v2899 = vsel %vm376, %v2879, %v2880
        %v2900 = vsel %vm481, %v2844, %v2899
        %v2901 = vsel %vm376, %v2881, %v2882
        %v2902 = vsel %vm481, %v2848, %v2901
        %v2903 = vsel %vm376, %v2883, %v2884
        %v2904 = vsel %vm481, %v2852, %v2903
        %v2905 = vsel %vm376, %v2885, %v2886
        %v2906 = vsel %vm481, %v2856, %v2905
        %v2907 = vsel %vm376, %v2887, %v2888
        %v2908 = vsel %vm481, %v2860, %v2907
        %v2909 = vsel %vm376, %v2889, %v2890
        %v2910 = vsel %vm481, %v2864, %v2909
        %v2911 = vsel %vm376, %v2891, %v2892
        %v2912 = vsel %vm481, %v2868, %v2911
        %v2913 = vsel %vm376, %v2893, %v2894
        %v2914 = vsel %vm481, %v2872, %v2913
        %2925 = vst [vmem:[%s457 + $0x50] sm:$0xff] %v2896
        %2926 = vst [vmem:[%s457 + $0x58] sm:$0xff] %v2898
        %2927 = vst [vmem:[%s457 + $0x60] sm:$0xff] %v2900
        %2928 = vst [vmem:[%s457 + $0x68] sm:$0xff] %v2902
        %2929 = vst [vmem:[%s457 + $0x70] sm:$0xff] %v2904
        %2930 = vst [vmem:[%s457 + $0x78] sm:$0xff] %v2906
        %2931 = vst [vmem:[%s457 + $0x80] sm:$0xff] %v2908
        %2932 = vst [vmem:[%s457 + $0x88] sm:$0xff] %v2910
        %2933 = vst [vmem:[%s457 + $0x90] sm:$0xff] %v2912
        %2934 = vst [vmem:[%s457 + $0x98] sm:$0xff] %v2914
        %v2935 = vld [vmem:[#allocation2 + $0x4] sm:$0xff]
        %v2936 = vld [vmem:[#allocation2 + $0xc] sm:$0xf]
        %v2937 = vld [vmem:[#allocation2 + $0x14] sm:$0xff]
        %v2938 = vld [vmem:[#allocation2 + $0x1c] sm:$0xf]
        %v2939 = vld [vmem:[#allocation2 + $0x24] sm:$0xff]
        %v2940 = vld [vmem:[#allocation2 + $0x2c] sm:$0xf]
        %v2941 = vld [vmem:[#allocation2 + $0x34] sm:$0xff]
        %v2942 = vld [vmem:[#allocation2 + $0x3c] sm:$0xf]
        %v2943 = vld [vmem:[#allocation2 + $0x44] sm:$0xff]
        %v2944 = vld [vmem:[#allocation2 + $0x4c] sm:$0xf]
        %v2945 = vld [vmem:[#allocation2 + $0x54] sm:$0xff]
        %v2946 = vld [vmem:[#allocation2 + $0x5c] sm:$0xf]
        %v2947 = vld [vmem:[#allocation2 + $0x64] sm:$0xff]
        %v2948 = vld [vmem:[#allocation2 + $0x6c] sm:$0xf]
        %v2949 = vld [vmem:[#allocation2 + $0x74] sm:$0xff]
        %v2950 = vld [vmem:[#allocation2 + $0x7c] sm:$0xf]
        %v2951 = vld [vmem:[#allocation2 + $0x84] sm:$0xff]
        %v2952 = vld [vmem:[#allocation2 + $0x8c] sm:$0xf]
        %v2953 = vld [vmem:[#allocation2 + $0x94] sm:$0xff]
        %v2954 = vld [vmem:[#allocation2 + $0x9c] sm:$0xf]
        %2975 = vrot.lane.b32.xlu0 %v2935, 113
        %v2976 = vpop.permute.xlu0 %2975
        %2977 = vrot.lane.b32.xlu0 %v2936, 113
        %v2978 = vpop.permute.xlu0 %2977
        %2979 = vrot.lane.b32.xlu0 %v2937, 113
        %v2980 = vpop.permute.xlu0 %2979
        %2981 = vrot.lane.b32.xlu0 %v2938, 113
        %v2982 = vpop.permute.xlu0 %2981
        %2983 = vrot.lane.b32.xlu0 %v2939, 113
        %v2984 = vpop.permute.xlu0 %2983
        %2985 = vrot.lane.b32.xlu0 %v2940, 113
        %v2986 = vpop.permute.xlu0 %2985
        %2987 = vrot.lane.b32.xlu0 %v2941, 113
        %v2988 = vpop.permute.xlu0 %2987
        %2989 = vrot.lane.b32.xlu0 %v2942, 113
        %v2990 = vpop.permute.xlu0 %2989
        %2991 = vrot.lane.b32.xlu0 %v2943, 113
        %v2992 = vpop.permute.xlu0 %2991
        %2993 = vrot.lane.b32.xlu0 %v2944, 113
        %v2994 = vpop.permute.xlu0 %2993
        %2995 = vrot.lane.b32.xlu0 %v2945, 113
        %v2996 = vpop.permute.xlu0 %2995
        %2997 = vrot.lane.b32.xlu0 %v2946, 113
        %v2998 = vpop.permute.xlu0 %2997
        %2999 = vrot.lane.b32.xlu0 %v2947, 113
        %v3000 = vpop.permute.xlu0 %2999
        %3001 = vrot.lane.b32.xlu0 %v2948, 113
        %v3002 = vpop.permute.xlu0 %3001
        %3003 = vrot.lane.b32.xlu0 %v2949, 113
        %v3004 = vpop.permute.xlu0 %3003
        %3005 = vrot.lane.b32.xlu0 %v2950, 113
        %v3006 = vpop.permute.xlu0 %3005
        %3007 = vrot.lane.b32.xlu0 %v2951, 113
        %v3008 = vpop.permute.xlu0 %3007
        %3009 = vrot.lane.b32.xlu0 %v2952, 113
        %v3010 = vpop.permute.xlu0 %3009
        %3011 = vrot.lane.b32.xlu0 %v2953, 113
        %v3012 = vpop.permute.xlu0 %3011
        %3013 = vrot.lane.b32.xlu0 %v2954, 113
        %v3014 = vpop.permute.xlu0 %3013
        %v3015 = vrot.slane %v2976, 4
        %v3016 = vrot.slane %v2978, 4
        %v3017 = vrot.slane %v2980, 4
        %v3018 = vrot.slane %v2982, 4
        %v3019 = vrot.slane %v2984, 4
        %v3020 = vrot.slane %v2986, 4
        %v3021 = vrot.slane %v2988, 4
        %v3022 = vrot.slane %v2990, 4
        %v3023 = vrot.slane %v2992, 4
        %v3024 = vrot.slane %v2994, 4
        %v3025 = vrot.slane %v2996, 4
        %v3026 = vrot.slane %v2998, 4
        %v3027 = vrot.slane %v3000, 4
        %v3028 = vrot.slane %v3002, 4
        %v3029 = vrot.slane %v3004, 4
        %v3030 = vrot.slane %v3006, 4
        %v3031 = vrot.slane %v3008, 4
        %v3032 = vrot.slane %v3010, 4
        %v3033 = vrot.slane %v3012, 4
        %v3034 = vrot.slane %v3014, 4
        %v3035 = vsel %vm376, %v3015, %v3016
        %v3036 = vsel %vm510, %v2976, %v3035
        %v3037 = vsel %vm376, %v3017, %v3018
        %v3038 = vsel %vm510, %v2980, %v3037
        %v3039 = vsel %vm376, %v3019, %v3020
        %v3040 = vsel %vm510, %v2984, %v3039
        %v3041 = vsel %vm376, %v3021, %v3022
        %v3042 = vsel %vm510, %v2988, %v3041
        %v3043 = vsel %vm376, %v3023, %v3024
        %v3044 = vsel %vm510, %v2992, %v3043
        %v3045 = vsel %vm376, %v3025, %v3026
        %v3046 = vsel %vm510, %v2996, %v3045
        %v3047 = vsel %vm376, %v3027, %v3028
        %v3048 = vsel %vm510, %v3000, %v3047
        %v3049 = vsel %vm376, %v3029, %v3030
        %v3050 = vsel %vm510, %v3004, %v3049
        %v3051 = vsel %vm376, %v3031, %v3032
        %v3052 = vsel %vm510, %v3008, %v3051
        %v3053 = vsel %vm376, %v3033, %v3034
        %v3054 = vsel %vm510, %v3012, %v3053
        %3065 = vst [vmem:[%s457 + $0xa0] sm:$0xff] %v3036
        %3066 = vst [vmem:[%s457 + $0xa8] sm:$0xff] %v3038
        %3067 = vst [vmem:[%s457 + $0xb0] sm:$0xff] %v3040
        %3068 = vst [vmem:[%s457 + $0xb8] sm:$0xff] %v3042
        %3069 = vst [vmem:[%s457 + $0xc0] sm:$0xff] %v3044
        %3070 = vst [vmem:[%s457 + $0xc8] sm:$0xff] %v3046
        %3071 = vst [vmem:[%s457 + $0xd0] sm:$0xff] %v3048
        %3072 = vst [vmem:[%s457 + $0xd8] sm:$0xff] %v3050
        %3073 = vst [vmem:[%s457 + $0xe0] sm:$0xff] %v3052
        %3074 = vst [vmem:[%s457 + $0xe8] sm:$0xff] %v3054
        %v3075 = vld [vmem:[#allocation10] sm:$0xff]
        %v3076 = vld [vmem:[#allocation10 + $0x8] sm:$0xff]
        %v3077 = vld [vmem:[#allocation10 + $0x10] sm:$0xff]
        %v3078 = vld [vmem:[#allocation10 + $0x18] sm:$0xff]
        %v3079 = vld [vmem:[%s457] sm:$0xff]
        %v3080 = vld [vmem:[%s457 + $0x8] sm:$0xff]
        %v3081 = vld [vmem:[%s457 + $0x10] sm:$0xff]
        %v3082 = vld [vmem:[%s457 + $0x18] sm:$0xff]
        %v3083 = vld [vmem:[%s457 + $0x20] sm:$0xff]
        %v3084 = vld [vmem:[%s457 + $0x28] sm:$0xff]
        %v3085 = vld [vmem:[%s457 + $0x30] sm:$0xff]
        %v3086 = vld [vmem:[%s457 + $0x38] sm:$0xff]
        %v3087 = vld [vmem:[%s457 + $0x40] sm:$0xff]
        %v3088 = vld [vmem:[%s457 + $0x48] sm:$0xff]
        %v3089 = vld [vmem:[%s457 + $0x50] sm:$0xff]
        %v3090 = vld [vmem:[%s457 + $0x58] sm:$0xff]
        %v3091 = vld [vmem:[%s457 + $0x60] sm:$0xff]
        %v3092 = vld [vmem:[%s457 + $0x68] sm:$0xff]
        %v3093 = vld [vmem:[%s457 + $0x70] sm:$0xff]
        %v3094 = vld [vmem:[%s457 + $0x78] sm:$0xff]
        %v3095 = vld [vmem:[%s457 + $0x80] sm:$0xff]
        %v3096 = vld [vmem:[%s457 + $0x88] sm:$0xff]
        %v3097 = vld [vmem:[%s457 + $0x90] sm:$0xff]
        %v3098 = vld [vmem:[%s457 + $0x98] sm:$0xff]
        %v3099 = vld [vmem:[%s457 + $0xa0] sm:$0xff]
        %v3100 = vld [vmem:[%s457 + $0xa8] sm:$0xff]
        %v3101 = vld [vmem:[%s457 + $0xb0] sm:$0xff]
        %v3102 = vld [vmem:[%s457 + $0xb8] sm:$0xff]
        %v3103 = vld [vmem:[%s457 + $0xc0] sm:$0xff]
        %v3104 = vld [vmem:[%s457 + $0xc8] sm:$0xff]
        %v3105 = vld [vmem:[%s457 + $0xd0] sm:$0xff]
        %v3106 = vld [vmem:[%s457 + $0xd8] sm:$0xff]
        %v3107 = vld [vmem:[%s457 + $0xe0] sm:$0xff]
        %v3108 = vld [vmem:[%s457 + $0xe8] sm:$0xff]
        %v3113 = vunpack.c.l.b16 %v3075
        %v3114 = vunpack.c.h.b16 %v3075
        %v3115 = vunpack.c.l.b16 %v3076
        %v3116 = vunpack.c.h.b16 %v3076
        %v3117 = vunpack.c.l.b16 %v3077
        %v3118 = vunpack.c.h.b16 %v3077
        %v3119 = vunpack.c.l.b16 %v3078
        %v3120 = vunpack.c.h.b16 %v3078
        %v3121 = vpack.c.b16 %v3115, %v3113
        %v3122 = vpack.c.b16 %v3116, %v3114
        %v3123 = vpack.c.b16 %v3119, %v3117
        %v3124 = vpack.c.b16 %v3120, %v3118
        %v3157 = vunpack.c.l.b16 %v3079
        %v3158 = vunpack.c.h.b16 %v3079
        %v3159 = vunpack.c.l.b16 %v3080
        %v3160 = vunpack.c.h.b16 %v3080
        %v3161 = vunpack.c.l.b16 %v3081
        %v3162 = vunpack.c.h.b16 %v3081
        %v3163 = vunpack.c.l.b16 %v3082
        %v3164 = vunpack.c.h.b16 %v3082
        %v3165 = vunpack.c.l.b16 %v3083
        %v3166 = vunpack.c.h.b16 %v3083
        %v3167 = vunpack.c.l.b16 %v3084
        %v3168 = vunpack.c.h.b16 %v3084
        %v3169 = vunpack.c.l.b16 %v3085
        %v3170 = vunpack.c.h.b16 %v3085
        %v3171 = vunpack.c.l.b16 %v3086
        %v3172 = vunpack.c.h.b16 %v3086
        %v3173 = vunpack.c.l.b16 %v3087
        %v3174 = vunpack.c.h.b16 %v3087
        %v3175 = vunpack.c.l.b16 %v3088
        %v3176 = vunpack.c.h.b16 %v3088
        %v3177 = vunpack.c.l.b16 %v3089
        %v3178 = vunpack.c.h.b16 %v3089
        %v3179 = vunpack.c.l.b16 %v3090
        %v3180 = vunpack.c.h.b16 %v3090
        %v3181 = vunpack.c.l.b16 %v3091
        %v3182 = vunpack.c.h.b16 %v3091
        %v3183 = vunpack.c.l.b16 %v3092
        %v3184 = vunpack.c.h.b16 %v3092
        %v3185 = vunpack.c.l.b16 %v3093
        %v3186 = vunpack.c.h.b16 %v3093
        %v3187 = vunpack.c.l.b16 %v3094
        %v3188 = vunpack.c.h.b16 %v3094
        %v3189 = vunpack.c.l.b16 %v3095
        %v3190 = vunpack.c.h.b16 %v3095
        %v3191 = vunpack.c.l.b16 %v3096
        %v3192 = vunpack.c.h.b16 %v3096
        %v3193 = vunpack.c.l.b16 %v3097
        %v3194 = vunpack.c.h.b16 %v3097
        %v3195 = vunpack.c.l.b16 %v3098
        %v3196 = vunpack.c.h.b16 %v3098
        %v3197 = vunpack.c.l.b16 %v3099
        %v3198 = vunpack.c.h.b16 %v3099
        %v3199 = vunpack.c.l.b16 %v3100
        %v3200 = vunpack.c.h.b16 %v3100
        %v3201 = vunpack.c.l.b16 %v3101
        %v3202 = vunpack.c.h.b16 %v3101
        %v3203 = vunpack.c.l.b16 %v3102
        %v3204 = vunpack.c.h.b16 %v3102
        %v3205 = vunpack.c.l.b16 %v3103
        %v3206 = vunpack.c.h.b16 %v3103
        %v3207 = vunpack.c.l.b16 %v3104
        %v3208 = vunpack.c.h.b16 %v3104
        %v3209 = vunpack.c.l.b16 %v3105
        %v3210 = vunpack.c.h.b16 %v3105
        %v3211 = vunpack.c.l.b16 %v3106
        %v3212 = vunpack.c.h.b16 %v3106
        %v3213 = vunpack.c.l.b16 %v3107
        %v3214 = vunpack.c.h.b16 %v3107
        %v3215 = vunpack.c.l.b16 %v3108
        %v3216 = vunpack.c.h.b16 %v3108
        %v3217 = vpack.c.b16 %v3159, %v3157
        %v3218 = vpack.c.b16 %v3160, %v3158
        %v3219 = vpack.c.b16 %v3163, %v3161
        %v3220 = vpack.c.b16 %v3164, %v3162
        %v3221 = vpack.c.b16 %v3167, %v3165
        %v3222 = vpack.c.b16 %v3168, %v3166
        %v3223 = vpack.c.b16 %v3171, %v3169
        %v3224 = vpack.c.b16 %v3172, %v3170
        %v3225 = vpack.c.b16 %v3175, %v3173
        %v3226 = vpack.c.b16 %v3176, %v3174
        %v3227 = vpack.c.b16 %v3179, %v3177
        %v3228 = vpack.c.b16 %v3180, %v3178
        %v3229 = vpack.c.b16 %v3183, %v3181
        %v3230 = vpack.c.b16 %v3184, %v3182
        %v3231 = vpack.c.b16 %v3187, %v3185
        %v3232 = vpack.c.b16 %v3188, %v3186
        %v3233 = vpack.c.b16 %v3191, %v3189
        %v3234 = vpack.c.b16 %v3192, %v3190
        %v3235 = vpack.c.b16 %v3195, %v3193
        %v3236 = vpack.c.b16 %v3196, %v3194
        %v3237 = vpack.c.b16 %v3199, %v3197
        %v3238 = vpack.c.b16 %v3200, %v3198
        %v3239 = vpack.c.b16 %v3203, %v3201
        %v3240 = vpack.c.b16 %v3204, %v3202
        %v3241 = vpack.c.b16 %v3207, %v3205
        %v3242 = vpack.c.b16 %v3208, %v3206
        %v3243 = vpack.c.b16 %v3211, %v3209
        %v3244 = vpack.c.b16 %v3212, %v3210
        %v3245 = vpack.c.b16 %v3215, %v3213
        %v3246 = vpack.c.b16 %v3216, %v3214
        %vm3277 = vcmask 916480
        %v3279 = vsel %vm3277, %v3122, 0
        %v3282 = vsel %vm3277, %v3124, 0
        %3284 = vmatprep.subr.bf16.mxu0 %v3232
        %3285 = vmatpush1.bf16.msra.mxu0 %v3231
        %3286 = vmatprep.subr.bf16.mxu0 %v3230
        %3287 = vmatpush1.bf16.msra.mxu0 %v3229
        %3288 = vmatprep.subr.bf16.mxu0 %v3228
        %3289 = vmatpush1.bf16.msra.mxu0 %v3227
        %3290 = vmatprep.subr.bf16.mxu0 %v3226
        %3291 = vmatpush1.bf16.msra.mxu0 %v3225
        %3292 = vmatprep.subr.bf16.mxu0 %v3224
        %3293 = vmatpush1.bf16.msra.mxu0 %v3223
        %3294 = vmatprep.subr.bf16.mxu0 %v3222
        %3295 = vmatpush1.bf16.msra.mxu0 %v3221
        %3296 = vmatprep.subr.bf16.mxu0 %v3220
        %3297 = vmatpush1.bf16.msra.mxu0 %v3219
        %3298 = vmatprep.subr.bf16.mxu0 %v3218
        %3299 = vmatpush1.bf16.msra.mxu0 %v3217
        %3300 = vmatprep.subr.bf16.mxu0 0
        %3301 = vmatpush2.bf16.msra.mxu0 0
        %3302 = vmatprep.subr.bf16.mxu0 %v3246
        %3303 = vmatpush2.bf16.msra.mxu0 %v3245
        %3304 = vmatprep.subr.bf16.mxu0 %v3244
        %3305 = vmatpush2.bf16.msra.mxu0 %v3243
        %3306 = vmatprep.subr.bf16.mxu0 %v3242
        %3307 = vmatpush2.bf16.msra.mxu0 %v3241
        %3308 = vmatprep.subr.bf16.mxu0 %v3240
        %3309 = vmatpush2.bf16.msra.mxu0 %v3239
        %3310 = vmatprep.subr.bf16.mxu0 %v3238
        %3311 = vmatpush2.bf16.msra.mxu0 %v3237
        %3312 = vmatprep.subr.bf16.mxu0 %v3236
        %3313 = vmatpush2.bf16.msra.mxu0 %v3235
        %3314 = vmatprep.subr.bf16.mxu0 %v3234
        %3315 = vmatpush2.bf16.msra.mxu0 %v3233
        %3316 = vmatprep.mubr.bf16.mxu0 %v3279
        %3317 = vmatmul.mubr.bf16.gmra.mxu0 %v3121
        %v3318 = vpop.f32.mrf.mxu0
        %v3319 = vadd.f32 0.0, %v3318
        %v3320 = vpop.f32.mrf.mxu0
        %v3321 = vadd.f32 0.0, %v3320
        %v3322 = vpop.f32.mrf.mxu0
        %v3323 = vadd.f32 0.0, %v3322
        %v3324 = vpop.f32.mrf.mxu0
        %v3325 = vadd.f32 0.0, %v3324
        %3326 = vmatprep.mubr.bf16.mxu0 %v3282
        %3327 = vmatmul.mubr.bf16.gmra.mxu0 %v3123
        %v3328 = vpop.f32.mrf.mxu0
        %v3329 = vadd.f32 0.0, %v3328
        %v3330 = vpop.f32.mrf.mxu0
        %v3331 = vadd.f32 0.0, %v3330
        %v3332 = vpop.f32.mrf.mxu0
        %v3333 = vadd.f32 0.0, %v3332
        %v3334 = vpop.f32.mrf.mxu0
        %v3335 = vadd.f32 0.0, %v3334
        %3336 = vdwg.mxu0
        %v3337 = vmul.f32 %v3319, %v632
        %v3338 = vmul.f32 %v3321, %v636
        %v3339 = vmul.f32 %v3323, %v632
        %v3340 = vmul.f32 %v3325, %v636
        %v3341 = vmul.f32 %v3329, %v632
        %v3342 = vmul.f32 %v3331, %v636
        %v3343 = vmul.f32 %v3333, %v632
        %v3344 = vmul.f32 %v3335, %v636
        %v3349 = vunpack.c.l.b16 %v2621
        %v3350 = vunpack.c.h.b16 %v2621
        %v3351 = vunpack.c.l.b16 %v2622
        %v3352 = vunpack.c.h.b16 %v2622
        %v3353 = vunpack.c.l.b16 %v2623
        %v3354 = vunpack.c.h.b16 %v2623
        %v3355 = vunpack.c.l.b16 %v2624
        %v3356 = vunpack.c.h.b16 %v2624
        %v3357 = vpack.c.b16 %v3351, %v3349
        %v3358 = vpack.c.b16 %v3352, %v3350
        %v3359 = vpack.c.b16 %v3355, %v3353
        %v3360 = vpack.c.b16 %v3356, %v3354
        %v3393 = vunpack.c.l.b16 %v2625
        %v3394 = vunpack.c.h.b16 %v2625
        %v3395 = vunpack.c.l.b16 %v2626
        %v3396 = vunpack.c.h.b16 %v2626
        %v3397 = vunpack.c.l.b16 %v2627
        %v3398 = vunpack.c.h.b16 %v2627
        %v3399 = vunpack.c.l.b16 %v2628
        %v3400 = vunpack.c.h.b16 %v2628
        %v3401 = vunpack.c.l.b16 %v2629
        %v3402 = vunpack.c.h.b16 %v2629
        %v3403 = vunpack.c.l.b16 %v2630
        %v3404 = vunpack.c.h.b16 %v2630
        %v3405 = vunpack.c.l.b16 %v2631
        %v3406 = vunpack.c.h.b16 %v2631
        %v3407 = vunpack.c.l.b16 %v2632
        %v3408 = vunpack.c.h.b16 %v2632
        %v3409 = vunpack.c.l.b16 %v2633
        %v3410 = vunpack.c.h.b16 %v2633
        %v3411 = vunpack.c.l.b16 %v2634
        %v3412 = vunpack.c.h.b16 %v2634
        %v3413 = vunpack.c.l.b16 %v2635
        %v3414 = vunpack.c.h.b16 %v2635
        %v3415 = vunpack.c.l.b16 %v2636
        %v3416 = vunpack.c.h.b16 %v2636
        %v3417 = vunpack.c.l.b16 %v2637
        %v3418 = vunpack.c.h.b16 %v2637
        %v3419 = vunpack.c.l.b16 %v2638
        %v3420 = vunpack.c.h.b16 %v2638
        %v3421 = vunpack.c.l.b16 %v2639
        %v3422 = vunpack.c.h.b16 %v2639
        %v3423 = vunpack.c.l.b16 %v2640
        %v3424 = vunpack.c.h.b16 %v2640
        %v3425 = vunpack.c.l.b16 %v2641
        %v3426 = vunpack.c.h.b16 %v2641
        %v3427 = vunpack.c.l.b16 %v2642
        %v3428 = vunpack.c.h.b16 %v2642
        %v3429 = vunpack.c.l.b16 %v2643
        %v3430 = vunpack.c.h.b16 %v2643
        %v3431 = vunpack.c.l.b16 %v2644
        %v3432 = vunpack.c.h.b16 %v2644
        %v3433 = vunpack.c.l.b16 %v2645
        %v3434 = vunpack.c.h.b16 %v2645
        %v3435 = vunpack.c.l.b16 %v2646
        %v3436 = vunpack.c.h.b16 %v2646
        %v3437 = vunpack.c.l.b16 %v2647
        %v3438 = vunpack.c.h.b16 %v2647
        %v3439 = vunpack.c.l.b16 %v2648
        %v3440 = vunpack.c.h.b16 %v2648
        %v3441 = vunpack.c.l.b16 %v2649
        %v3442 = vunpack.c.h.b16 %v2649
        %v3443 = vunpack.c.l.b16 %v2650
        %v3444 = vunpack.c.h.b16 %v2650
        %v3445 = vunpack.c.l.b16 %v2651
        %v3446 = vunpack.c.h.b16 %v2651
        %v3447 = vunpack.c.l.b16 %v2652
        %v3448 = vunpack.c.h.b16 %v2652
        %v3449 = vunpack.c.l.b16 %v2653
        %v3450 = vunpack.c.h.b16 %v2653
        %v3451 = vunpack.c.l.b16 %v2654
        %v3452 = vunpack.c.h.b16 %v2654
        %v3453 = vpack.c.b16 %v3395, %v3393
        %v3454 = vpack.c.b16 %v3396, %v3394
        %v3455 = vpack.c.b16 %v3399, %v3397
        %v3456 = vpack.c.b16 %v3400, %v3398
        %v3457 = vpack.c.b16 %v3403, %v3401
        %v3458 = vpack.c.b16 %v3404, %v3402
        %v3459 = vpack.c.b16 %v3407, %v3405
        %v3460 = vpack.c.b16 %v3408, %v3406
        %v3461 = vpack.c.b16 %v3411, %v3409
        %v3462 = vpack.c.b16 %v3412, %v3410
        %v3463 = vpack.c.b16 %v3415, %v3413
        %v3464 = vpack.c.b16 %v3416, %v3414
        %v3465 = vpack.c.b16 %v3419, %v3417
        %v3466 = vpack.c.b16 %v3420, %v3418
        %v3467 = vpack.c.b16 %v3423, %v3421
        %v3468 = vpack.c.b16 %v3424, %v3422
        %v3469 = vpack.c.b16 %v3427, %v3425
        %v3470 = vpack.c.b16 %v3428, %v3426
        %v3471 = vpack.c.b16 %v3431, %v3429
        %v3472 = vpack.c.b16 %v3432, %v3430
        %v3473 = vpack.c.b16 %v3435, %v3433
        %v3474 = vpack.c.b16 %v3436, %v3434
        %v3475 = vpack.c.b16 %v3439, %v3437
        %v3476 = vpack.c.b16 %v3440, %v3438
        %v3477 = vpack.c.b16 %v3443, %v3441
        %v3478 = vpack.c.b16 %v3444, %v3442
        %v3479 = vpack.c.b16 %v3447, %v3445
        %v3480 = vpack.c.b16 %v3448, %v3446
        %v3481 = vpack.c.b16 %v3451, %v3449
        %v3482 = vpack.c.b16 %v3452, %v3450
        %v3514 = vsel %vm3277, %v3358, 0
        %v3517 = vsel %vm3277, %v3360, 0
        %3519 = vmatprep.subr.bf16.mxu0 %v3468
        %3520 = vmatpush1.bf16.msra.mxu0 %v3467
        %3521 = vmatprep.subr.bf16.mxu0 %v3466
        %3522 = vmatpush1.bf16.msra.mxu0 %v3465
        %3523 = vmatprep.subr.bf16.mxu0 %v3464
        %3524 = vmatpush1.bf16.msra.mxu0 %v3463
        %3525 = vmatprep.subr.bf16.mxu0 %v3462
        %3526 = vmatpush1.bf16.msra.mxu0 %v3461
        %3527 = vmatprep.subr.bf16.mxu0 %v3460
        %3528 = vmatpush1.bf16.msra.mxu0 %v3459
        %3529 = vmatprep.subr.bf16.mxu0 %v3458
        %3530 = vmatpush1.bf16.msra.mxu0 %v3457
        %3531 = vmatprep.subr.bf16.mxu0 %v3456
        %3532 = vmatpush1.bf16.msra.mxu0 %v3455
        %3533 = vmatprep.subr.bf16.mxu0 %v3454
        %3534 = vmatpush1.bf16.msra.mxu0 %v3453
        %3535 = vmatprep.subr.bf16.mxu0 0
        %3536 = vmatpush2.bf16.msra.mxu0 0
        %3537 = vmatprep.subr.bf16.mxu0 %v3482
        %3538 = vmatpush2.bf16.msra.mxu0 %v3481
        %3539 = vmatprep.subr.bf16.mxu0 %v3480
        %3540 = vmatpush2.bf16.msra.mxu0 %v3479
        %3541 = vmatprep.subr.bf16.mxu0 %v3478
        %3542 = vmatpush2.bf16.msra.mxu0 %v3477
        %3543 = vmatprep.subr.bf16.mxu0 %v3476
        %3544 = vmatpush2.bf16.msra.mxu0 %v3475
        %3545 = vmatprep.subr.bf16.mxu0 %v3474
        %3546 = vmatpush2.bf16.msra.mxu0 %v3473
        %3547 = vmatprep.subr.bf16.mxu0 %v3472
        %3548 = vmatpush2.bf16.msra.mxu0 %v3471
        %3549 = vmatprep.subr.bf16.mxu0 %v3470
        %3550 = vmatpush2.bf16.msra.mxu0 %v3469
        %3551 = vmatprep.mubr.bf16.mxu0 %v3514
        %3552 = vmatmul.mubr.bf16.gmra.mxu0 %v3357
        %v3553 = vpop.f32.mrf.mxu0
        %v3554 = vadd.f32 %v3337, %v3553
        %v3555 = vpop.f32.mrf.mxu0
        %v3556 = vadd.f32 %v3338, %v3555
        %v3557 = vpop.f32.mrf.mxu0
        %v3558 = vadd.f32 %v3339, %v3557
        %v3559 = vpop.f32.mrf.mxu0
        %v3560 = vadd.f32 %v3340, %v3559
        %3561 = vmatprep.mubr.bf16.mxu0 %v3517
        %3562 = vmatmul.mubr.bf16.gmra.mxu0 %v3359
        %v3563 = vpop.f32.mrf.mxu0
        %v3564 = vadd.f32 %v3341, %v3563
        %v3565 = vpop.f32.mrf.mxu0
        %v3566 = vadd.f32 %v3342, %v3565
        %v3567 = vpop.f32.mrf.mxu0
        %v3568 = vadd.f32 %v3343, %v3567
        %v3569 = vpop.f32.mrf.mxu0
        %v3570 = vadd.f32 %v3344, %v3569
        %3571 = vdwg.mxu0
        %v3572 = vld [vmem:[#allocation2] sm:$0xff]
        %v3573 = vld [vmem:[#allocation2 + $0x8] sm:$0xf]
        %v3574 = vld [vmem:[#allocation2 + $0x10] sm:$0xff]
        %v3575 = vld [vmem:[#allocation2 + $0x18] sm:$0xf]
        %v3576 = vld [vmem:[#allocation2 + $0x20] sm:$0xff]
        %v3577 = vld [vmem:[#allocation2 + $0x28] sm:$0xf]
        %v3578 = vld [vmem:[#allocation2 + $0x30] sm:$0xff]
        %v3579 = vld [vmem:[#allocation2 + $0x38] sm:$0xf]
        %v3580 = vld [vmem:[#allocation2 + $0x40] sm:$0xff]
        %v3581 = vld [vmem:[#allocation2 + $0x48] sm:$0xf]
        %v3582 = vld [vmem:[#allocation2 + $0x50] sm:$0xff]
        %v3583 = vld [vmem:[#allocation2 + $0x58] sm:$0xf]
        %v3584 = vld [vmem:[#allocation2 + $0x60] sm:$0xff]
        %v3585 = vld [vmem:[#allocation2 + $0x68] sm:$0xf]
        %v3586 = vld [vmem:[#allocation2 + $0x70] sm:$0xff]
        %v3587 = vld [vmem:[#allocation2 + $0x78] sm:$0xf]
        %v3588 = vld [vmem:[#allocation2 + $0x80] sm:$0xff]
        %v3589 = vld [vmem:[#allocation2 + $0x88] sm:$0xf]
        %v3590 = vld [vmem:[#allocation2 + $0x90] sm:$0xff]
        %v3591 = vld [vmem:[#allocation2 + $0x98] sm:$0xf]
        %3612 = vrot.lane.b32.xlu0 %v3572, 15
        %v3613 = vpop.permute.xlu0 %3612
        %3614 = vrot.lane.b32.xlu0 %v3573, 15
        %v3615 = vpop.permute.xlu0 %3614
        %3616 = vrot.lane.b32.xlu0 %v3574, 15
        %v3617 = vpop.permute.xlu0 %3616
        %3618 = vrot.lane.b32.xlu0 %v3575, 15
        %v3619 = vpop.permute.xlu0 %3618
        %3620 = vrot.lane.b32.xlu0 %v3576, 15
        %v3621 = vpop.permute.xlu0 %3620
        %3622 = vrot.lane.b32.xlu0 %v3577, 15
        %v3623 = vpop.permute.xlu0 %3622
        %3624 = vrot.lane.b32.xlu0 %v3578, 15
        %v3625 = vpop.permute.xlu0 %3624
        %3626 = vrot.lane.b32.xlu0 %v3579, 15
        %v3627 = vpop.permute.xlu0 %3626
        %3628 = vrot.lane.b32.xlu0 %v3580, 15
        %v3629 = vpop.permute.xlu0 %3628
        %3630 = vrot.lane.b32.xlu0 %v3581, 15
        %v3631 = vpop.permute.xlu0 %3630
        %3632 = vrot.lane.b32.xlu0 %v3582, 15
        %v3633 = vpop.permute.xlu0 %3632
        %3634 = vrot.lane.b32.xlu0 %v3583, 15
        %v3635 = vpop.permute.xlu0 %3634
        %3636 = vrot.lane.b32.xlu0 %v3584, 15
        %v3637 = vpop.permute.xlu0 %3636
        %3638 = vrot.lane.b32.xlu0 %v3585, 15
        %v3639 = vpop.permute.xlu0 %3638
        %3640 = vrot.lane.b32.xlu0 %v3586, 15
        %v3641 = vpop.permute.xlu0 %3640
        %3642 = vrot.lane.b32.xlu0 %v3587, 15
        %v3643 = vpop.permute.xlu0 %3642
        %3644 = vrot.lane.b32.xlu0 %v3588, 15
        %v3645 = vpop.permute.xlu0 %3644
        %3646 = vrot.lane.b32.xlu0 %v3589, 15
        %v3647 = vpop.permute.xlu0 %3646
        %3648 = vrot.lane.b32.xlu0 %v3590, 15
        %v3649 = vpop.permute.xlu0 %3648
        %3650 = vrot.lane.b32.xlu0 %v3591, 15
        %v3651 = vpop.permute.xlu0 %3650
        %v3652 = vrot.slane %v3613, 4
        %v3653 = vrot.slane %v3615, 4
        %v3654 = vrot.slane %v3617, 4
        %v3655 = vrot.slane %v3619, 4
        %v3656 = vrot.slane %v3621, 4
        %v3657 = vrot.slane %v3623, 4
        %v3658 = vrot.slane %v3625, 4
        %v3659 = vrot.slane %v3627, 4
        %v3660 = vrot.slane %v3629, 4
        %v3661 = vrot.slane %v3631, 4
        %v3662 = vrot.slane %v3633, 4
        %v3663 = vrot.slane %v3635, 4
        %v3664 = vrot.slane %v3637, 4
        %v3665 = vrot.slane %v3639, 4
        %v3666 = vrot.slane %v3641, 4
        %v3667 = vrot.slane %v3643, 4
        %v3668 = vrot.slane %v3645, 4
        %v3669 = vrot.slane %v3647, 4
        %v3670 = vrot.slane %v3649, 4
        %v3671 = vrot.slane %v3651, 4
        %v3672 = vsel %vm376, %v3652, %v3653
        %v3673 = vsel %vm767, %v3613, %v3672
        %v3674 = vsel %vm376, %v3654, %v3655
        %v3675 = vsel %vm767, %v3617, %v3674
        %v3676 = vsel %vm376, %v3656, %v3657
        %v3677 = vsel %vm767, %v3621, %v3676
        %v3678 = vsel %vm376, %v3658, %v3659
        %v3679 = vsel %vm767, %v3625, %v3678
        %v3680 = vsel %vm376, %v3660, %v3661
        %v3681 = vsel %vm767, %v3629, %v3680
        %v3682 = vsel %vm376, %v3662, %v3663
        %v3683 = vsel %vm767, %v3633, %v3682
        %v3684 = vsel %vm376, %v3664, %v3665
        %v3685 = vsel %vm767, %v3637, %v3684
        %v3686 = vsel %vm376, %v3666, %v3667
        %v3687 = vsel %vm767, %v3641, %v3686
        %v3688 = vsel %vm376, %v3668, %v3669
        %v3689 = vsel %vm767, %v3645, %v3688
        %v3690 = vsel %vm376, %v3670, %v3671
        %v3691 = vsel %vm767, %v3649, %v3690
        %3702 = vst [vmem:[#allocation3] sm:$0xff] %v3673
        %3703 = vst [vmem:[#allocation3 + $0x8] sm:$0xff] %v3675
        %3704 = vst [vmem:[#allocation3 + $0x10] sm:$0xff] %v3677
        %3705 = vst [vmem:[#allocation3 + $0x18] sm:$0xff] %v3679
        %3706 = vst [vmem:[#allocation3 + $0x20] sm:$0xff] %v3681
        %3707 = vst [vmem:[#allocation3 + $0x28] sm:$0xff] %v3683
        %3708 = vst [vmem:[#allocation3 + $0x30] sm:$0xff] %v3685
        %3709 = vst [vmem:[#allocation3 + $0x38] sm:$0xff] %v3687
        %3710 = vst [vmem:[#allocation3 + $0x40] sm:$0xff] %v3689
        %3711 = vst [vmem:[#allocation3 + $0x48] sm:$0xff] %v3691
        %v3712 = vld [vmem:[#allocation2 + $0x4] sm:$0xff]
        %v3713 = vld [vmem:[#allocation2 + $0xc] sm:$0xf]
        %v3714 = vld [vmem:[#allocation2 + $0x14] sm:$0xff]
        %v3715 = vld [vmem:[#allocation2 + $0x1c] sm:$0xf]
        %v3716 = vld [vmem:[#allocation2 + $0x24] sm:$0xff]
        %v3717 = vld [vmem:[#allocation2 + $0x2c] sm:$0xf]
        %v3718 = vld [vmem:[#allocation2 + $0x34] sm:$0xff]
        %v3719 = vld [vmem:[#allocation2 + $0x3c] sm:$0xf]
        %v3720 = vld [vmem:[#allocation2 + $0x44] sm:$0xff]
        %v3721 = vld [vmem:[#allocation2 + $0x4c] sm:$0xf]
        %v3722 = vld [vmem:[#allocation2 + $0x54] sm:$0xff]
        %v3723 = vld [vmem:[#allocation2 + $0x5c] sm:$0xf]
        %v3724 = vld [vmem:[#allocation2 + $0x64] sm:$0xff]
        %v3725 = vld [vmem:[#allocation2 + $0x6c] sm:$0xf]
        %v3726 = vld [vmem:[#allocation2 + $0x74] sm:$0xff]
        %v3727 = vld [vmem:[#allocation2 + $0x7c] sm:$0xf]
        %v3728 = vld [vmem:[#allocation2 + $0x84] sm:$0xff]
        %v3729 = vld [vmem:[#allocation2 + $0x8c] sm:$0xf]
        %v3730 = vld [vmem:[#allocation2 + $0x94] sm:$0xff]
        %v3731 = vld [vmem:[#allocation2 + $0x9c] sm:$0xf]
        %3752 = vrot.lane.b32.xlu0 %v3712, 127
        %v3753 = vpop.permute.xlu0 %3752
        %3754 = vrot.lane.b32.xlu0 %v3713, 127
        %v3755 = vpop.permute.xlu0 %3754
        %3756 = vrot.lane.b32.xlu0 %v3714, 127
        %v3757 = vpop.permute.xlu0 %3756
        %3758 = vrot.lane.b32.xlu0 %v3715, 127
        %v3759 = vpop.permute.xlu0 %3758
        %3760 = vrot.lane.b32.xlu0 %v3716, 127
        %v3761 = vpop.permute.xlu0 %3760
        %3762 = vrot.lane.b32.xlu0 %v3717, 127
        %v3763 = vpop.permute.xlu0 %3762
        %3764 = vrot.lane.b32.xlu0 %v3718, 127
        %v3765 = vpop.permute.xlu0 %3764
        %3766 = vrot.lane.b32.xlu0 %v3719, 127
        %v3767 = vpop.permute.xlu0 %3766
        %3768 = vrot.lane.b32.xlu0 %v3720, 127
        %v3769 = vpop.permute.xlu0 %3768
        %3770 = vrot.lane.b32.xlu0 %v3721, 127
        %v3771 = vpop.permute.xlu0 %3770
        %3772 = vrot.lane.b32.xlu0 %v3722, 127
        %v3773 = vpop.permute.xlu0 %3772
        %3774 = vrot.lane.b32.xlu0 %v3723, 127
        %v3775 = vpop.permute.xlu0 %3774
        %3776 = vrot.lane.b32.xlu0 %v3724, 127
        %v3777 = vpop.permute.xlu0 %3776
        %3778 = vrot.lane.b32.xlu0 %v3725, 127
        %v3779 = vpop.permute.xlu0 %3778
        %3780 = vrot.lane.b32.xlu0 %v3726, 127
        %v3781 = vpop.permute.xlu0 %3780
        %3782 = vrot.lane.b32.xlu0 %v3727, 127
        %v3783 = vpop.permute.xlu0 %3782
        %3784 = vrot.lane.b32.xlu0 %v3728, 127
        %v3785 = vpop.permute.xlu0 %3784
        %3786 = vrot.lane.b32.xlu0 %v3729, 127
        %v3787 = vpop.permute.xlu0 %3786
        %3788 = vrot.lane.b32.xlu0 %v3730, 127
        %v3789 = vpop.permute.xlu0 %3788
        %3790 = vrot.lane.b32.xlu0 %v3731, 127
        %v3791 = vpop.permute.xlu0 %3790
        %v3792 = vrot.slane %v3753, 4
        %v3793 = vrot.slane %v3755, 4
        %v3794 = vrot.slane %v3757, 4
        %v3795 = vrot.slane %v3759, 4
        %v3796 = vrot.slane %v3761, 4
        %v3797 = vrot.slane %v3763, 4
        %v3798 = vrot.slane %v3765, 4
        %v3799 = vrot.slane %v3767, 4
        %v3800 = vrot.slane %v3769, 4
        %v3801 = vrot.slane %v3771, 4
        %v3802 = vrot.slane %v3773, 4
        %v3803 = vrot.slane %v3775, 4
        %v3804 = vrot.slane %v3777, 4
        %v3805 = vrot.slane %v3779, 4
        %v3806 = vrot.slane %v3781, 4
        %v3807 = vrot.slane %v3783, 4
        %v3808 = vrot.slane %v3785, 4
        %v3809 = vrot.slane %v3787, 4
        %v3810 = vrot.slane %v3789, 4
        %v3811 = vrot.slane %v3791, 4
        %v3812 = vsel %vm376, %v3792, %v3793
        %v3813 = vsel %vm796, %v3753, %v3812
        %v3814 = vsel %vm376, %v3794, %v3795
        %v3815 = vsel %vm796, %v3757, %v3814
        %v3816 = vsel %vm376, %v3796, %v3797
        %v3817 = vsel %vm796, %v3761, %v3816
        %v3818 = vsel %vm376, %v3798, %v3799
        %v3819 = vsel %vm796, %v3765, %v3818
        %v3820 = vsel %vm376, %v3800, %v3801
        %v3821 = vsel %vm796, %v3769, %v3820
        %v3822 = vsel %vm376, %v3802, %v3803
        %v3823 = vsel %vm796, %v3773, %v3822
        %v3824 = vsel %vm376, %v3804, %v3805
        %v3825 = vsel %vm796, %v3777, %v3824
        %v3826 = vsel %vm376, %v3806, %v3807
        %v3827 = vsel %vm796, %v3781, %v3826
        %v3828 = vsel %vm376, %v3808, %v3809
        %v3829 = vsel %vm796, %v3785, %v3828
        %v3830 = vsel %vm376, %v3810, %v3811
        %v3831 = vsel %vm796, %v3789, %v3830
        %3842 = vst [vmem:[#allocation3 + $0x50] sm:$0xff] %v3813
        %3843 = vst [vmem:[#allocation3 + $0x58] sm:$0xff] %v3815
        %3844 = vst [vmem:[#allocation3 + $0x60] sm:$0xff] %v3817
        %3845 = vst [vmem:[#allocation3 + $0x68] sm:$0xff] %v3819
        %3846 = vst [vmem:[#allocation3 + $0x70] sm:$0xff] %v3821
        %3847 = vst [vmem:[#allocation3 + $0x78] sm:$0xff] %v3823
        %3848 = vst [vmem:[#allocation3 + $0x80] sm:$0xff] %v3825
        %3849 = vst [vmem:[#allocation3 + $0x88] sm:$0xff] %v3827
        %3850 = vst [vmem:[#allocation3 + $0x90] sm:$0xff] %v3829
        %3851 = vst [vmem:[#allocation3 + $0x98] sm:$0xff] %v3831
        %v3852 = vld [vmem:[#allocation2 + $0x4] sm:$0xff]
        %v3853 = vld [vmem:[#allocation2 + $0xc] sm:$0xf]
        %v3854 = vld [vmem:[#allocation2 + $0x14] sm:$0xff]
        %v3855 = vld [vmem:[#allocation2 + $0x1c] sm:$0xf]
        %v3856 = vld [vmem:[#allocation2 + $0x24] sm:$0xff]
        %v3857 = vld [vmem:[#allocation2 + $0x2c] sm:$0xf]
        %v3858 = vld [vmem:[#allocation2 + $0x34] sm:$0xff]
        %v3859 = vld [vmem:[#allocation2 + $0x3c] sm:$0xf]
        %v3860 = vld [vmem:[#allocation2 + $0x44] sm:$0xff]
        %v3861 = vld [vmem:[#allocation2 + $0x4c] sm:$0xf]
        %v3862 = vld [vmem:[#allocation2 + $0x54] sm:$0xff]
        %v3863 = vld [vmem:[#allocation2 + $0x5c] sm:$0xf]
        %v3864 = vld [vmem:[#allocation2 + $0x64] sm:$0xff]
        %v3865 = vld [vmem:[#allocation2 + $0x6c] sm:$0xf]
        %v3866 = vld [vmem:[#allocation2 + $0x74] sm:$0xff]
        %v3867 = vld [vmem:[#allocation2 + $0x7c] sm:$0xf]
        %v3868 = vld [vmem:[#allocation2 + $0x84] sm:$0xff]
        %v3869 = vld [vmem:[#allocation2 + $0x8c] sm:$0xf]
        %v3870 = vld [vmem:[#allocation2 + $0x94] sm:$0xff]
        %v3871 = vld [vmem:[#allocation2 + $0x9c] sm:$0xf]
        %3892 = vrot.lane.b32.xlu0 %v3852, 111
        %v3893 = vpop.permute.xlu0 %3892
        %3894 = vrot.lane.b32.xlu0 %v3853, 111
        %v3895 = vpop.permute.xlu0 %3894
        %3896 = vrot.lane.b32.xlu0 %v3854, 111
        %v3897 = vpop.permute.xlu0 %3896
        %3898 = vrot.lane.b32.xlu0 %v3855, 111
        %v3899 = vpop.permute.xlu0 %3898
        %3900 = vrot.lane.b32.xlu0 %v3856, 111
        %v3901 = vpop.permute.xlu0 %3900
        %3902 = vrot.lane.b32.xlu0 %v3857, 111
        %v3903 = vpop.permute.xlu0 %3902
        %3904 = vrot.lane.b32.xlu0 %v3858, 111
        %v3905 = vpop.permute.xlu0 %3904
        %3906 = vrot.lane.b32.xlu0 %v3859, 111
        %v3907 = vpop.permute.xlu0 %3906
        %3908 = vrot.lane.b32.xlu0 %v3860, 111
        %v3909 = vpop.permute.xlu0 %3908
        %3910 = vrot.lane.b32.xlu0 %v3861, 111
        %v3911 = vpop.permute.xlu0 %3910
        %3912 = vrot.lane.b32.xlu0 %v3862, 111
        %v3913 = vpop.permute.xlu0 %3912
        %3914 = vrot.lane.b32.xlu0 %v3863, 111
        %v3915 = vpop.permute.xlu0 %3914
        %3916 = vrot.lane.b32.xlu0 %v3864, 111
        %v3917 = vpop.permute.xlu0 %3916
        %3918 = vrot.lane.b32.xlu0 %v3865, 111
        %v3919 = vpop.permute.xlu0 %3918
        %3920 = vrot.lane.b32.xlu0 %v3866, 111
        %v3921 = vpop.permute.xlu0 %3920
        %3922 = vrot.lane.b32.xlu0 %v3867, 111
        %v3923 = vpop.permute.xlu0 %3922
        %3924 = vrot.lane.b32.xlu0 %v3868, 111
        %v3925 = vpop.permute.xlu0 %3924
        %3926 = vrot.lane.b32.xlu0 %v3869, 111
        %v3927 = vpop.permute.xlu0 %3926
        %3928 = vrot.lane.b32.xlu0 %v3870, 111
        %v3929 = vpop.permute.xlu0 %3928
        %3930 = vrot.lane.b32.xlu0 %v3871, 111
        %v3931 = vpop.permute.xlu0 %3930
        %v3932 = vrot.slane %v3893, 4
        %v3933 = vrot.slane %v3895, 4
        %v3934 = vrot.slane %v3897, 4
        %v3935 = vrot.slane %v3899, 4
        %v3936 = vrot.slane %v3901, 4
        %v3937 = vrot.slane %v3903, 4
        %v3938 = vrot.slane %v3905, 4
        %v3939 = vrot.slane %v3907, 4
        %v3940 = vrot.slane %v3909, 4
        %v3941 = vrot.slane %v3911, 4
        %v3942 = vrot.slane %v3913, 4
        %v3943 = vrot.slane %v3915, 4
        %v3944 = vrot.slane %v3917, 4
        %v3945 = vrot.slane %v3919, 4
        %v3946 = vrot.slane %v3921, 4
        %v3947 = vrot.slane %v3923, 4
        %v3948 = vrot.slane %v3925, 4
        %v3949 = vrot.slane %v3927, 4
        %v3950 = vrot.slane %v3929, 4
        %v3951 = vrot.slane %v3931, 4
        %v3952 = vsel %vm376, %v3932, %v3933
        %v3953 = vsel %vm825, %v3893, %v3952
        %v3954 = vsel %vm376, %v3934, %v3935
        %v3955 = vsel %vm825, %v3897, %v3954
        %v3956 = vsel %vm376, %v3936, %v3937
        %v3957 = vsel %vm825, %v3901, %v3956
        %v3958 = vsel %vm376, %v3938, %v3939
        %v3959 = vsel %vm825, %v3905, %v3958
        %v3960 = vsel %vm376, %v3940, %v3941
        %v3961 = vsel %vm825, %v3909, %v3960
        %v3962 = vsel %vm376, %v3942, %v3943
        %v3963 = vsel %vm825, %v3913, %v3962
        %v3964 = vsel %vm376, %v3944, %v3945
        %v3965 = vsel %vm825, %v3917, %v3964
        %v3966 = vsel %vm376, %v3946, %v3947
        %v3967 = vsel %vm825, %v3921, %v3966
        %v3968 = vsel %vm376, %v3948, %v3949
        %v3969 = vsel %vm825, %v3925, %v3968
        %v3970 = vsel %vm376, %v3950, %v3951
        %v3971 = vsel %vm825, %v3929, %v3970
        %3982 = vst [vmem:[#allocation3 + $0xa0] sm:$0xff] %v3953
        %3983 = vst [vmem:[#allocation3 + $0xa8] sm:$0xff] %v3955
        %3984 = vst [vmem:[#allocation3 + $0xb0] sm:$0xff] %v3957
        %3985 = vst [vmem:[#allocation3 + $0xb8] sm:$0xff] %v3959
        %3986 = vst [vmem:[#allocation3 + $0xc0] sm:$0xff] %v3961
        %3987 = vst [vmem:[#allocation3 + $0xc8] sm:$0xff] %v3963
        %3988 = vst [vmem:[#allocation3 + $0xd0] sm:$0xff] %v3965
        %3989 = vst [vmem:[#allocation3 + $0xd8] sm:$0xff] %v3967
        %3990 = vst [vmem:[#allocation3 + $0xe0] sm:$0xff] %v3969
        %3991 = vst [vmem:[#allocation3 + $0xe8] sm:$0xff] %v3971
        %s3992 = scalar_lea.vmem [#allocation10], 64
        %v3993 = vld [vmem:[%s3992] sm:$0xff]
        %v3994 = vld [vmem:[%s3992 + $0x8] sm:$0xff]
        %v3995 = vld [vmem:[%s3992 + $0x10] sm:$0xff]
        %v3996 = vld [vmem:[%s3992 + $0x18] sm:$0xff]
        %v3997 = vld [vmem:[#allocation3] sm:$0xff]
        %v3998 = vld [vmem:[#allocation3 + $0x8] sm:$0xff]
        %v3999 = vld [vmem:[#allocation3 + $0x10] sm:$0xff]
        %v4000 = vld [vmem:[#allocation3 + $0x18] sm:$0xff]
        %v4001 = vld [vmem:[#allocation3 + $0x20] sm:$0xff]
        %v4002 = vld [vmem:[#allocation3 + $0x28] sm:$0xff]
        %v4003 = vld [vmem:[#allocation3 + $0x30] sm:$0xff]
        %v4004 = vld [vmem:[#allocation3 + $0x38] sm:$0xff]
        %v4005 = vld [vmem:[#allocation3 + $0x40] sm:$0xff]
        %v4006 = vld [vmem:[#allocation3 + $0x48] sm:$0xff]
        %v4007 = vld [vmem:[#allocation3 + $0x50] sm:$0xff]
        %v4008 = vld [vmem:[#allocation3 + $0x58] sm:$0xff]
        %v4009 = vld [vmem:[#allocation3 + $0x60] sm:$0xff]
        %v4010 = vld [vmem:[#allocation3 + $0x68] sm:$0xff]
        %v4011 = vld [vmem:[#allocation3 + $0x70] sm:$0xff]
        %v4012 = vld [vmem:[#allocation3 + $0x78] sm:$0xff]
        %v4013 = vld [vmem:[#allocation3 + $0x80] sm:$0xff]
        %v4014 = vld [vmem:[#allocation3 + $0x88] sm:$0xff]
        %v4015 = vld [vmem:[#allocation3 + $0x90] sm:$0xff]
        %v4016 = vld [vmem:[#allocation3 + $0x98] sm:$0xff]
        %v4017 = vld [vmem:[#allocation3 + $0xa0] sm:$0xff]
        %v4018 = vld [vmem:[#allocation3 + $0xa8] sm:$0xff]
        %v4019 = vld [vmem:[#allocation3 + $0xb0] sm:$0xff]
        %v4020 = vld [vmem:[#allocation3 + $0xb8] sm:$0xff]
        %v4021 = vld [vmem:[#allocation3 + $0xc0] sm:$0xff]
        %v4022 = vld [vmem:[#allocation3 + $0xc8] sm:$0xff]
        %v4023 = vld [vmem:[#allocation3 + $0xd0] sm:$0xff]
        %v4024 = vld [vmem:[#allocation3 + $0xd8] sm:$0xff]
        %v4025 = vld [vmem:[#allocation3 + $0xe0] sm:$0xff]
        %v4026 = vld [vmem:[#allocation3 + $0xe8] sm:$0xff]
        %v4031 = vunpack.c.l.b16 %v3993
        %v4032 = vunpack.c.h.b16 %v3993
        %v4033 = vunpack.c.l.b16 %v3994
        %v4034 = vunpack.c.h.b16 %v3994
        %v4035 = vunpack.c.l.b16 %v3995
        %v4036 = vunpack.c.h.b16 %v3995
        %v4037 = vunpack.c.l.b16 %v3996
        %v4038 = vunpack.c.h.b16 %v3996
        %v4039 = vpack.c.b16 %v4033, %v4031
        %v4040 = vpack.c.b16 %v4034, %v4032
        %v4041 = vpack.c.b16 %v4037, %v4035
        %v4042 = vpack.c.b16 %v4038, %v4036
        %v4075 = vunpack.c.l.b16 %v3997
        %v4076 = vunpack.c.h.b16 %v3997
        %v4077 = vunpack.c.l.b16 %v3998
        %v4078 = vunpack.c.h.b16 %v3998
        %v4079 = vunpack.c.l.b16 %v3999
        %v4080 = vunpack.c.h.b16 %v3999
        %v4081 = vunpack.c.l.b16 %v4000
        %v4082 = vunpack.c.h.b16 %v4000
        %v4083 = vunpack.c.l.b16 %v4001
        %v4084 = vunpack.c.h.b16 %v4001
        %v4085 = vunpack.c.l.b16 %v4002
        %v4086 = vunpack.c.h.b16 %v4002
        %v4087 = vunpack.c.l.b16 %v4003
        %v4088 = vunpack.c.h.b16 %v4003
        %v4089 = vunpack.c.l.b16 %v4004
        %v4090 = vunpack.c.h.b16 %v4004
        %v4091 = vunpack.c.l.b16 %v4005
        %v4092 = vunpack.c.h.b16 %v4005
        %v4093 = vunpack.c.l.b16 %v4006
        %v4094 = vunpack.c.h.b16 %v4006
        %v4095 = vunpack.c.l.b16 %v4007
        %v4096 = vunpack.c.h.b16 %v4007
        %v4097 = vunpack.c.l.b16 %v4008
        %v4098 = vunpack.c.h.b16 %v4008
        %v4099 = vunpack.c.l.b16 %v4009
        %v4100 = vunpack.c.h.b16 %v4009
        %v4101 = vunpack.c.l.b16 %v4010
        %v4102 = vunpack.c.h.b16 %v4010
        %v4103 = vunpack.c.l.b16 %v4011
        %v4104 = vunpack.c.h.b16 %v4011
        %v4105 = vunpack.c.l.b16 %v4012
        %v4106 = vunpack.c.h.b16 %v4012
        %v4107 = vunpack.c.l.b16 %v4013
        %v4108 = vunpack.c.h.b16 %v4013
        %v4109 = vunpack.c.l.b16 %v4014
        %v4110 = vunpack.c.h.b16 %v4014
        %v4111 = vunpack.c.l.b16 %v4015
        %v4112 = vunpack.c.h.b16 %v4015
        %v4113 = vunpack.c.l.b16 %v4016
        %v4114 = vunpack.c.h.b16 %v4016
        %v4115 = vunpack.c.l.b16 %v4017
        %v4116 = vunpack.c.h.b16 %v4017
        %v4117 = vunpack.c.l.b16 %v4018
        %v4118 = vunpack.c.h.b16 %v4018
        %v4119 = vunpack.c.l.b16 %v4019
        %v4120 = vunpack.c.h.b16 %v4019
        %v4121 = vunpack.c.l.b16 %v4020
        %v4122 = vunpack.c.h.b16 %v4020
        %v4123 = vunpack.c.l.b16 %v4021
        %v4124 = vunpack.c.h.b16 %v4021
        %v4125 = vunpack.c.l.b16 %v4022
        %v4126 = vunpack.c.h.b16 %v4022
        %v4127 = vunpack.c.l.b16 %v4023
        %v4128 = vunpack.c.h.b16 %v4023
        %v4129 = vunpack.c.l.b16 %v4024
        %v4130 = vunpack.c.h.b16 %v4024
        %v4131 = vunpack.c.l.b16 %v4025
        %v4132 = vunpack.c.h.b16 %v4025
        %v4133 = vunpack.c.l.b16 %v4026
        %v4134 = vunpack.c.h.b16 %v4026
        %v4135 = vpack.c.b16 %v4077, %v4075
        %v4136 = vpack.c.b16 %v4078, %v4076
        %v4137 = vpack.c.b16 %v4081, %v4079
        %v4138 = vpack.c.b16 %v4082, %v4080
        %v4139 = vpack.c.b16 %v4085, %v4083
        %v4140 = vpack.c.b16 %v4086, %v4084
        %v4141 = vpack.c.b16 %v4089, %v4087
        %v4142 = vpack.c.b16 %v4090, %v4088
        %v4143 = vpack.c.b16 %v4093, %v4091
        %v4144 = vpack.c.b16 %v4094, %v4092
        %v4145 = vpack.c.b16 %v4097, %v4095
        %v4146 = vpack.c.b16 %v4098, %v4096
        %v4147 = vpack.c.b16 %v4101, %v4099
        %v4148 = vpack.c.b16 %v4102, %v4100
        %v4149 = vpack.c.b16 %v4105, %v4103
        %v4150 = vpack.c.b16 %v4106, %v4104
        %v4151 = vpack.c.b16 %v4109, %v4107
        %v4152 = vpack.c.b16 %v4110, %v4108
        %v4153 = vpack.c.b16 %v4113, %v4111
        %v4154 = vpack.c.b16 %v4114, %v4112
        %v4155 = vpack.c.b16 %v4117, %v4115
        %v4156 = vpack.c.b16 %v4118, %v4116
        %v4157 = vpack.c.b16 %v4121, %v4119
        %v4158 = vpack.c.b16 %v4122, %v4120
        %v4159 = vpack.c.b16 %v4125, %v4123
        %v4160 = vpack.c.b16 %v4126, %v4124
        %v4161 = vpack.c.b16 %v4129, %v4127
        %v4162 = vpack.c.b16 %v4130, %v4128
        %v4163 = vpack.c.b16 %v4133, %v4131
        %v4164 = vpack.c.b16 %v4134, %v4132
        %v4196 = vsel %vm3277, %v4040, 0
        %v4199 = vsel %vm3277, %v4042, 0
        %4201 = vmatprep.subr.bf16.mxu0 %v4150
        %4202 = vmatpush1.bf16.msra.mxu0 %v4149
        %4203 = vmatprep.subr.bf16.mxu0 %v4148
        %4204 = vmatpush1.bf16.msra.mxu0 %v4147
        %4205 = vmatprep.subr.bf16.mxu0 %v4146
        %4206 = vmatpush1.bf16.msra.mxu0 %v4145
        %4207 = vmatprep.subr.bf16.mxu0 %v4144
        %4208 = vmatpush1.bf16.msra.mxu0 %v4143
        %4209 = vmatprep.subr.bf16.mxu0 %v4142
        %4210 = vmatpush1.bf16.msra.mxu0 %v4141
        %4211 = vmatprep.subr.bf16.mxu0 %v4140
        %4212 = vmatpush1.bf16.msra.mxu0 %v4139
        %4213 = vmatprep.subr.bf16.mxu0 %v4138
        %4214 = vmatpush1.bf16.msra.mxu0 %v4137
        %4215 = vmatprep.subr.bf16.mxu0 %v4136
        %4216 = vmatpush1.bf16.msra.mxu0 %v4135
        %4217 = vmatprep.subr.bf16.mxu0 0
        %4218 = vmatpush2.bf16.msra.mxu0 0
        %4219 = vmatprep.subr.bf16.mxu0 %v4164
        %4220 = vmatpush2.bf16.msra.mxu0 %v4163
        %4221 = vmatprep.subr.bf16.mxu0 %v4162
        %4222 = vmatpush2.bf16.msra.mxu0 %v4161
        %4223 = vmatprep.subr.bf16.mxu0 %v4160
        %4224 = vmatpush2.bf16.msra.mxu0 %v4159
        %4225 = vmatprep.subr.bf16.mxu0 %v4158
        %4226 = vmatpush2.bf16.msra.mxu0 %v4157
        %4227 = vmatprep.subr.bf16.mxu0 %v4156
        %4228 = vmatpush2.bf16.msra.mxu0 %v4155
        %4229 = vmatprep.subr.bf16.mxu0 %v4154
        %4230 = vmatpush2.bf16.msra.mxu0 %v4153
        %4231 = vmatprep.subr.bf16.mxu0 %v4152
        %4232 = vmatpush2.bf16.msra.mxu0 %v4151
        %4233 = vmatprep.mubr.bf16.mxu0 %v4196
        %4234 = vmatmul.mubr.bf16.gmra.mxu0 %v4039
        %v4235 = vpop.f32.mrf.mxu0
        %v4236 = vadd.f32 0.0, %v4235
        %v4237 = vpop.f32.mrf.mxu0
        %v4238 = vadd.f32 0.0, %v4237
        %v4239 = vpop.f32.mrf.mxu0
        %v4240 = vadd.f32 0.0, %v4239
        %v4241 = vpop.f32.mrf.mxu0
        %v4242 = vadd.f32 0.0, %v4241
        %4243 = vmatprep.mubr.bf16.mxu0 %v4199
        %4244 = vmatmul.mubr.bf16.gmra.mxu0 %v4041
        %v4245 = vpop.f32.mrf.mxu0
        %v4246 = vadd.f32 0.0, %v4245
        %v4247 = vpop.f32.mrf.mxu0
        %v4248 = vadd.f32 0.0, %v4247
        %v4249 = vpop.f32.mrf.mxu0
        %v4250 = vadd.f32 0.0, %v4249
        %v4251 = vpop.f32.mrf.mxu0
        %v4252 = vadd.f32 0.0, %v4251
        %4253 = vdwg.mxu0
        %v4254 = vmul.f32 %v4236, %v947
        %v4255 = vmul.f32 %v4238, %v951
        %v4256 = vmul.f32 %v4240, %v947
        %v4257 = vmul.f32 %v4242, %v951
        %v4258 = vmul.f32 %v4246, %v947
        %v4259 = vmul.f32 %v4248, %v951
        %v4260 = vmul.f32 %v4250, %v947
        %v4261 = vmul.f32 %v4252, %v951
        %v4262 = vadd.f32 %v3554, %v4254
        %v4263 = vadd.f32 %v3556, %v4255
        %v4264 = vadd.f32 %v3558, %v4256
        %v4265 = vadd.f32 %v3560, %v4257
        %v4266 = vadd.f32 %v3564, %v4258
        %v4267 = vadd.f32 %v3566, %v4259
        %v4268 = vadd.f32 %v3568, %v4260
        %v4269 = vadd.f32 %v3570, %v4261
        %v4270 = vmax.f32 %v4262, 0.0
        %v4271 = vmax.f32 %v4263, 0.0
        %v4272 = vmax.f32 %v4264, 0.0
        %v4273 = vmax.f32 %v4265, 0.0
        %v4274 = vmax.f32 %v4266, 0.0
        %v4275 = vmax.f32 %v4267, 0.0
        %v4276 = vmax.f32 %v4268, 0.0
        %v4277 = vmax.f32 %v4269, 0.0
        %v4278 = vpack.c.bf16 %v4272, %v4270
        %v4279 = vpack.c.bf16 %v4273, %v4271
        %v4280 = vpack.c.bf16 %v4276, %v4274
        %v4281 = vpack.c.bf16 %v4277, %v4275
        %v4286 = vunpack.c.l.b16 %v4278
        %v4287 = vunpack.c.l.b16 %v4279
        %v4288 = vunpack.c.h.b16 %v4278
        %v4289 = vunpack.c.h.b16 %v4279
        %v4290 = vunpack.c.l.b16 %v4280
        %v4291 = vunpack.c.l.b16 %v4281
        %v4292 = vunpack.c.h.b16 %v4280
        %v4293 = vunpack.c.h.b16 %v4281
        %v4294 = vpack.c.b16 %v4287, %v4286
        %v4295 = vpack.c.b16 %v4289, %v4288
        %v4296 = vpack.c.b16 %v4291, %v4290
        %v4297 = vpack.c.b16 %v4293, %v4292
        %4302 = vst [vmem:[#allocation2 + $0xa4] sm:$0xff] %v4294
        %4303 = vst [vmem:[#allocation2 + $0xb4] sm:$0xff] %v4295
        %4304 = vst [vmem:[#allocation2 + $0xc4] sm:$0xff] %v4296
        %4305 = vst [vmem:[#allocation2 + $0xd4] sm:$0xff] %v4297
        %v4306 = vld [vmem:[#allocation2 + $0x4] sm:$0xff]
        %v4307 = vld [vmem:[#allocation2 + $0x14] sm:$0xff]
        %v4308 = vld [vmem:[#allocation2 + $0x24] sm:$0xff]
        %v4309 = vld [vmem:[#allocation2 + $0x34] sm:$0xff]
        %v4310 = vld [vmem:[#allocation2 + $0x44] sm:$0xff]
        %v4311 = vld [vmem:[#allocation2 + $0x54] sm:$0xff]
        %v4312 = vld [vmem:[#allocation2 + $0x64] sm:$0xff]
        %v4313 = vld [vmem:[#allocation2 + $0x74] sm:$0xff]
        %v4314 = vld [vmem:[#allocation2 + $0x84] sm:$0xff]
        %v4315 = vld [vmem:[#allocation2 + $0x94] sm:$0xff]
        %v4316 = vld [vmem:[#allocation2 + $0xa4] sm:$0xff]
        %v4317 = vld [vmem:[#allocation2 + $0xb4] sm:$0xff]
        %v4318 = vld [vmem:[#allocation2 + $0xc4] sm:$0xff]
        %v4319 = vld [vmem:[#allocation2 + $0xd4] sm:$0xff]
        %v4320 = vld [vmem:[%s4] sm:$0x3]
        %v4321 = vld [vmem:[%s273] sm:$0xf]
        %v4322 = vld [vmem:[%s273 + $0x8] sm:$0xf]
        %v4337 = vunpack.c.l.b16 %v4306
        %v4338 = vunpack.c.h.b16 %v4306
        %v4339 = vunpack.c.l.b16 %v4307
        %v4340 = vunpack.c.h.b16 %v4307
        %v4341 = vunpack.c.l.b16 %v4308
        %v4342 = vunpack.c.h.b16 %v4308
        %v4343 = vunpack.c.l.b16 %v4309
        %v4344 = vunpack.c.h.b16 %v4309
        %v4345 = vunpack.c.l.b16 %v4310
        %v4346 = vunpack.c.h.b16 %v4310
        %v4347 = vunpack.c.l.b16 %v4311
        %v4348 = vunpack.c.h.b16 %v4311
        %v4349 = vunpack.c.l.b16 %v4312
        %v4350 = vunpack.c.h.b16 %v4312
        %v4351 = vunpack.c.l.b16 %v4313
        %v4352 = vunpack.c.h.b16 %v4313
        %v4353 = vunpack.c.l.b16 %v4314
        %v4354 = vunpack.c.h.b16 %v4314
        %v4355 = vunpack.c.l.b16 %v4315
        %v4356 = vunpack.c.h.b16 %v4315
        %v4357 = vunpack.c.l.b16 %v4316
        %v4358 = vunpack.c.h.b16 %v4316
        %v4359 = vunpack.c.l.b16 %v4317
        %v4360 = vunpack.c.h.b16 %v4317
        %v4361 = vunpack.c.l.b16 %v4318
        %v4362 = vunpack.c.h.b16 %v4318
        %v4363 = vunpack.c.l.b16 %v4319
        %v4364 = vunpack.c.h.b16 %v4319
        %v4365 = vpack.c.b16 %v4339, %v4337
        %v4366 = vpack.c.b16 %v4340, %v4338
        %v4367 = vpack.c.b16 %v4343, %v4341
        %v4368 = vpack.c.b16 %v4344, %v4342
        %v4369 = vpack.c.b16 %v4347, %v4345
        %v4370 = vpack.c.b16 %v4348, %v4346
        %v4371 = vpack.c.b16 %v4351, %v4349
        %v4372 = vpack.c.b16 %v4352, %v4350
        %v4373 = vpack.c.b16 %v4355, %v4353
        %v4374 = vpack.c.b16 %v4356, %v4354
        %v4375 = vpack.c.b16 %v4359, %v4357
        %v4376 = vpack.c.b16 %v4360, %v4358
        %v4377 = vpack.c.b16 %v4363, %v4361
        %v4378 = vpack.c.b16 %v4364, %v4362
        %v4394 = vsel %vm3277, %v4320, 0
        %4396 = vmatprep.subr.bf16.mxu0 0
        %4397 = vmatpush1.bf16.msra.mxu0 0
        %4398 = vmatprep.subr.bf16.mxu0 %v4378
        %4399 = vmatpush1.bf16.msra.mxu0 %v4377
        %4400 = vmatprep.subr.bf16.mxu0 %v4376
        %4401 = vmatpush1.bf16.msra.mxu0 %v4375
        %4402 = vmatprep.subr.bf16.mxu0 %v4374
        %4403 = vmatpush1.bf16.msra.mxu0 %v4373
        %4404 = vmatprep.subr.bf16.mxu0 %v4372
        %4405 = vmatpush1.bf16.msra.mxu0 %v4371
        %4406 = vmatprep.subr.bf16.mxu0 %v4370
        %4407 = vmatpush1.bf16.msra.mxu0 %v4369
        %4408 = vmatprep.subr.bf16.mxu0 %v4368
        %4409 = vmatpush1.bf16.msra.mxu0 %v4367
        %4410 = vmatprep.subr.bf16.mxu0 %v4366
        %4411 = vmatpush1.bf16.msra.mxu0 %v4365
        %4412 = vmatprep.subr.bf16.mxu0 0
        %4413 = vmatpush2.bf16.msra.mxu0 0
        %4414 = vmatprep.subr.bf16.mxu0 0
        %4415 = vmatpush2.bf16.msra.mxu0 0
        %4416 = vmatprep.subr.bf16.mxu0 0
        %4417 = vmatpush2.bf16.msra.mxu0 0
        %4418 = vmatprep.subr.bf16.mxu0 0
        %4419 = vmatpush2.bf16.msra.mxu0 0
        %4420 = vmatprep.subr.bf16.mxu0 0
        %4421 = vmatpush2.bf16.msra.mxu0 0
        %4422 = vmatprep.subr.bf16.mxu0 0
        %4423 = vmatpush2.bf16.msra.mxu0 0
        %4424 = vmatprep.subr.bf16.mxu0 0
        %4425 = vmatpush2.bf16.msra.mxu0 0
        %4426 = vmatprep.subr.bf16.mxu0 0
        %4427 = vmatpush2.bf16.msra.mxu0 0
        %4428 = vmatprep.mubr.bf16.mxu0 0
        %4429 = vmatmul.mubr.bf16.gmra.mxu0 %v4394
        %v4430 = vpop.f32.mrf.mxu0
        %v4431 = vadd.f32 %v4321, %v4430
        %v4432 = vpop.f32.mrf.mxu0
        %v4433 = vadd.f32 %v4322, %v4432
        %v4434 = vpop.f32.mrf.mxu0
        %v4435 = vpop.f32.mrf.mxu0
        %4436 = vdwg.mxu0
        %v4439 = vcombine.low %v4431, %v4433
        %4441 = vst [vmem:[%s313] sm:$0xff] %v4439
        %s4442 = sand.u32 %s164, 1
        %s4443 = scalar_lea.sflag [#allocation6], %s4442
        %s4444 = sand.u32 %s164, 1
        %s4445 = smul.addr %s4444, 8
        %s4446 = scalar_lea.vmem [#allocation12], %s4445
        // Predicated region
        $region61: #{tpu_custom_call.1} parent=43 // pred_check
          %p4447 = pneg %p174
        $region62: #{tpu_custom_call.1} parent=43 // pred_check_branch
          %4449 = sbr.rel (%p4447) target = $region64
        $region63: #{tpu_custom_call.1} parent=43 // pred_region
          %s4451 = ssub.s32 128, 128
          %4452 = vsyncadd %s4443, %s4451
          %s4453 = smul.addr %s25, 2
          %s4454 = smul.addr %s4453, 64
          %s4455 = scalar_lea.hbm %s6, %s4454
          %s4457 = sshll.u32 %s4446, 4
          %s4458 = int_to_ptr.vmem [resolvable:$true] %s4457
          %4460 = dma.vmem_to_hbm [thread:$0]  %s4458, 128, %s4455, %s4443
        $region64: #{tpu_custom_call.1} parent=43 // pred_fallthru
          _
      $region44: #{tpu_custom_call.1} parent=5 // pred_fallthru
        _
      %p4461 = scmp.le.s32.totalorder 2, %s20
      // Predicated region
      $region65: #{tpu_custom_call.1} parent=5 // pred_check
        %p4462 = pneg %p4461
      $region66: #{tpu_custom_call.1} parent=5 // pred_check_branch
        %4464 = sbr.rel (%p4462) target = $region68
      $region67: #{tpu_custom_call.1} parent=5 // pred_region
        %s4465 = ssub.s32 %s20, 2
        // Predicated region
        $region69: #{tpu_custom_call.1} parent=67 // pred_check
          %p4466 = pneg %p180
        $region70: #{tpu_custom_call.1} parent=67 // pred_check_branch
          %4468 = sbr.rel (%p4466) target = $region72
        $region71: #{tpu_custom_call.1} parent=67 // pred_region
          %s4469 = sand.u32 %s165, 1
          %s4470 = scalar_lea.sflag [#allocation6], %s4469
          %s4471 = sand.u32 %s165, 1
          %s4472 = smul.addr %s4471, 8
          %s4473 = scalar_lea.vmem [#allocation12], %s4472
          %4474 = dma.done %s4470, 128
        $region72: #{tpu_custom_call.1} parent=67 // pred_fallthru
          _
      $region68: #{tpu_custom_call.1} parent=5 // pred_fallthru
        _
    $region6: #{tpu_custom_call.1} parent=1 // loop_footer
      %s24 = sadd.s32 1, %s20
    $region7: #{tpu_custom_call.1} parent=1 // loop_footer_branch
      %19 = sbr.rel target = $region3
    $region8: #{tpu_custom_call.1} parent=1 // loop_exit
      _
    %4475 = vsyncpa [#allocation5], 1
    %s4476 = scalar_lea.sflag [#allocation5], 1
    %4477 = vsyncpa %s4476, 1
    %4478 = vsyncpa [#allocation8], 1
    %4479 = vsyncpa [#allocation11], 1
    %4480 = vsyncpa [#allocation6], 1
    %s4481 = scalar_lea.sflag [#allocation6], 1
    %4482 = vsyncpa %s4481, 1

</llo_original>
